<compile_context>
chip_gen: v7x
topology: tpu7x:2x2x1
jax: 0.10.0
libtpu: 0.0.40
codegen_flags: <defaults>
</compile_context>

<pallas_src>
import math
from functools import partial

import jax
import jax.numpy as jnp
from jax.experimental import pallas as pl
from jax.experimental.pallas import tpu as pltpu

_SQRT_2_OVER_PI = 0.7978845608028654
_BN_EPS = 1e-5
_VMEM_LIMIT_BYTES = 32 * 1024 * 1024


def _gelu(v):
    # tanh-approximate GELU (tanh runs on the EUP slot).
    # TODO(synk): nn.GELU() default is exact erf; tanh approx differs by <~1e-3.
    return 0.5 * v * (1.0 + jnp.tanh(_SQRT_2_OVER_PI * (v + 0.044715 * v * v * v)))


def _boundary_masks(hh, ww, H, W, dil):
    """Per-tap validity masks for a 3x3 conv with zero padding == dilation.

    hh / ww are (1, TILE_M) int32 row/col coordinates of each flattened
    column.  Computed ONCE per tile per dilation (hoisted out of the tap
    loop) and shared by every conv using that dilation.
    """
    masks = []
    for ih in range(3):
        for iw in range(3):
            dh = (ih - 1) * dil
            dw = (iw - 1) * dil
            if dh == 0 and dw == 0:
                masks.append(None)                        # centre tap: always valid
            else:
                valid = ((hh + dh >= 0) & (hh + dh < H) &
                         (ww + dw >= 0) & (ww + dw < W))
                masks.append(valid.astype(jnp.float32))
    return masks


def _conv1x1(v, w_ref, b_ref):
    # (Cout, Cin) bf16 @ (Cin, M) bf16 -> f32 accumulate, + f32 bias.
    return jnp.dot(w_ref[...], v.astype(w_ref.dtype),
                   preferred_element_type=jnp.float32) + b_ref[...]


def _conv3x3(v, w_ref, b_ref, masks, patch_ref, dil, W):
    """3x3 conv (stride 1, zero padding == dilation) on a (Cin, TILE_M) slab.

    Each off-centre tap is one XLU lane rotation (pltpu.roll) times a
    precomputed boundary mask, stored straight into the bf16 patch scratch
    (no concatenate copy).  The 9 taps stack along the contraction axis, so
    the conv is a single bf16 MXU matmul with f32 accumulation.
    """
    cin, tm = v.shape
    for ih in range(3):
        for iw in range(3):
            tap = ih * 3 + iw
            dh = (ih - 1) * dil
            dw = (iw - 1) * dil
            if dh == 0 and dw == 0:
                col = v
            else:
                # column m <- v[:, (m + dh*W + dw) mod TILE_M]; the wrap-around
                # columns are exactly the masked (out-of-image) ones.
                col = pltpu.roll(v, shift=(-(dh * W + dw)) % tm, axis=1)
                col = col * masks[tap]
            patch_ref[pl.ds(tap * cin, cin), :] = col.astype(patch_ref.dtype)
    return jnp.dot(w_ref[...], patch_ref[...],
                   preferred_element_type=jnp.float32) + b_ref[...]


# ---------------------------------------------------------------------------
# Kernels
# ---------------------------------------------------------------------------

def _stats_kernel(x_ref, s_ref, q_ref):
    """Per-tile per-channel sum and sum-of-squares (fused single sweep)."""
    x = x_ref[...]
    s_ref[...] = jnp.sum(x, axis=1, keepdims=True)[None]
    q_ref[...] = jnp.sum(x * x, axis=1, keepdims=True)[None]


def _attn_kernel(x_ref, hidx_ref, widx_ref, sc1_ref, sh1_ref,
                 p1w_ref, p1b_ref, c0w_ref, c0b_ref, csw_ref, csb_ref,
                 c1w_ref, c1b_ref, p2w_ref, p2b_ref,
                 x1_ref, s_ref, q_ref, patch_ref, *, H, W):
    """x1 = x + attn(norm1(x)), plus BN2 partial statistics of x1."""
    x = x_ref[...]
    hh = hidx_ref[...]
    ww = widx_ref[...]
    masks1 = _boundary_masks(hh, ww, H, W, 1)    # shared by proj_1 / conv0
    masks3 = _boundary_masks(hh, ww, H, W, 3)    # conv_spatial (dil=3)

    y = x * sc1_ref[...] + sh1_ref[...]          # norm1 (BN folded to affine)
    shortcut = y
    t = _gelu(_conv3x3(y, p1w_ref, p1b_ref, masks1, patch_ref, 1, W))   # proj_1 + GELU
    u = t
    a = _conv3x3(t, c0w_ref, c0b_ref, masks1, patch_ref, 1, W)          # conv0
    a = _conv3x3(a, csw_ref, csb_ref, masks3, patch_ref, 3, W)          # conv_spatial (cat folded)
    a = _conv1x1(a, c1w_ref, c1b_ref)                                   # conv1 (1x1)
    a = u * a                                                           # u * attn gate
    t = _conv1x1(a, p2w_ref, p2b_ref)                                   # proj_2 (1x1)
    x1 = x + t + shortcut                                               # attn shortcut + residual 1

    x1_ref[...] = x1
    # Fused BN2 partial stats: one sweep, var finalised as E[x^2] - mean^2.
    s_ref[...] = jnp.sum(x1, axis=1, keepdims=True)[None]
    q_ref[...] = jnp.sum(x1 * x1, axis=1, keepdims=True)[None]


def _mlp_kernel(x_ref, hidx_ref, widx_ref, sc2_ref, sh2_ref,
                f1w_ref, f1b_ref, dww_ref, dwb_ref, f2w_ref, f2b_ref,
                o_ref, patch_ref, *, H, W):
    """out = x1 + mlp(norm2(x1))."""
    x = x_ref[...]
    masks1 = _boundary_masks(hidx_ref[...], widx_ref[...], H, W, 1)
    z = x * sc2_ref[...] + sh2_ref[...]                                 # norm2
    m = _conv1x1(z, f1w_ref, f1b_ref)                                   # fc1 (1x1)
    m = _gelu(_conv3x3(m, dww_ref, dwb_ref, masks1, patch_ref, 1, W))   # DWConv (plain 3x3) + GELU
    m = _conv1x1(m, f2w_ref, f2b_ref)                                   # fc2 (1x1)
    o_ref[...] = x + m                                                  # residual 2
    # layer_scale_1 / layer_scale_2 exist as parameters in the PyTorch module
    # but are never used in its forward(), so they are omitted here.


# ---------------------------------------------------------------------------
# Wrapper
# ---------------------------------------------------------------------------

def _fold_bn(sum_p, sq_p, M, gamma, beta, eps=_BN_EPS):
    """Combine per-tile partials into a folded per-channel affine (scale, shift).

    Training-mode nn.BatchNorm2d (biased variance over the full batch).
    TODO(synk): running-stats (momentum) update of BatchNorm2d is not modelled.
    """
    s = jnp.sum(sum_p, axis=0)                    # (C, 1)
    q = jnp.sum(sq_p, axis=0)                     # (C, 1)
    mean = s / M
    var = jnp.maximum(q / M - mean * mean, 0.0)
    scale = gamma * jax.lax.rsqrt(var + eps)
    shift = beta - mean * scale
    return scale, shift


def _pick_images_per_tile(N, hw, C, hidden, vmem_budget):
    # Rough live-VMEM bytes per flattened column in the heaviest (MLP) pass.
    per_col = (9 * max(C, hidden) * 2        # bf16 patch scratch
               + 10 * max(C, hidden) * 4     # live f32 activation slabs
               + 4 * C * 4 * 2               # double-buffered x / out tiles
               + 4 * 4)                      # h / w coordinate rows
    budget = max(1, int(vmem_budget) // (per_col * hw))
    for imgs in range(min(N, budget), 0, -1):
        if N % imgs == 0 and ((imgs * hw) % 128 == 0 or imgs == N):
            return imgs
    return N


def block_forward_flat(x_flat, p, N, H, W, *, images_per_tile=None,
                       vmem_budget=20 * 1024 * 1024):
    """Block forward on channels-first flattened activations (C, N*H*W).

    Keep activations in this layout across consecutive Blocks; the NCHW
    transpose should only be paid once at network entry/exit.
    """
    C, M = x_flat.shape
    hw = H * W
    assert M == N * hw
    hidden = p["fc1_w"].shape[0]
    if images_per_tile is None:
        images_per_tile = _pick_images_per_tile(N, hw, C, hidden, vmem_budget)
    tile_m = images_per_tile * hw
    assert N % images_per_tile == 0 and (tile_m % 128 == 0 or tile_m == M), (
        "tiles must hold whole images and be 128-lane aligned")
    n_tiles = M // tile_m

    # Per-column (h, w) coordinates (int32) for in-kernel boundary masks.
    h_idx = jnp.broadcast_to(jnp.arange(H, dtype=jnp.int32)[None, :, None],
                             (N, H, W)).reshape(1, M)
    w_idx = jnp.broadcast_to(jnp.arange(W, dtype=jnp.int32)[None, None, :],
                             (N, H, W)).reshape(1, M)

    cparams = pltpu.CompilerParams(dimension_semantics=("parallel",),
                                   vmem_limit_bytes=_VMEM_LIMIT_BYTES)

    def tile_spec(rows):
        return pl.BlockSpec((rows, tile_m), lambda t: (0, t))

    def const_spec(a):
        return pl.BlockSpec(a.shape, lambda t, _nd=a.ndim: (0,) * _nd)

    stat_spec = pl.BlockSpec((1, C, 1), lambda t: (t, 0, 0))
    stat_shape = jax.ShapeDtypeStruct((n_tiles, C, 1), jnp.float32)

    # ---- pass 1: BN1 batch statistics ---------------------------------------
    s1p, q1p = pl.pallas_call(
        _stats_kernel,
        grid=(n_tiles,),
        in_specs=[tile_spec(C)],
        out_specs=[stat_spec, stat_spec],
        out_shape=[stat_shape, stat_shape],
        compiler_params=cparams,
    )(x_flat)
    scale1, shift1 = _fold_bn(s1p, q1p, M, p["bn1_g"], p["bn1_b"])

    # ---- pass 2: x1 = x + attn(norm1(x)); fused BN2 partial stats -----------
    attn_w = (p["proj1_w"], p["proj1_b"], p["conv0_w"], p["conv0_b"],
              p["convsp_w"], p["convsp_b"], p["conv1_w"], p["conv1_b"],
              p["proj2_w"], p["proj2_b"])
    x1, s2p, q2p = pl.pallas_call(
        partial(_attn_kernel, H=H, W=W),
        grid=(n_tiles,),
        in_specs=[tile_spec(C), tile_spec(1), tile_spec(1),
                  const_spec(scale1), const_spec(shift1)]
                 + [const_spec(a) for a in attn_w],
        out_specs=[tile_spec(C), stat_spec, stat_spec],
        out_shape=[jax.ShapeDtypeStruct((C, M), jnp.float32),
                   stat_shape, stat_shape],
        scratch_shapes=[pltpu.VMEM((9 * C, tile_m), jnp.bfloat16)],
        input_output_aliases={0: 0},            # x1 reuses x's HBM buffer
        compiler_params=cparams,
    )(x_flat, h_idx, w_idx, scale1, shift1, *attn_w)
    scale2, shift2 = _fold_bn(s2p, q2p, M, p["bn2_g"], p["bn2_b"])

    # ---- pass 3: out = x1 + mlp(norm2(x1)) -----------------------------------
    mlp_w = (p["fc1_w"], p["fc1_b"], p["dw_w"], p["dw_b"],
             p["fc2_w"], p["fc2_b"])
    out = pl.pallas_call(
        partial(_mlp_kernel, H=H, W=W),
        grid=(n_tiles,),
        in_specs=[tile_spec(C), tile_spec(1), tile_spec(1),
                  const_spec(scale2), const_spec(shift2)]
                 + [const_spec(a) for a in mlp_w],
        out_specs=tile_spec(C),
        out_shape=jax.ShapeDtypeStruct((C, M), jnp.float32),
        scratch_shapes=[pltpu.VMEM((9 * hidden, tile_m), jnp.bfloat16)],
        input_output_aliases={0: 0},            # out reuses x1's HBM buffer
        compiler_params=cparams,
    )(x1, h_idx, w_idx, scale2, shift2, *mlp_w)
    return out


def block_forward(x_nchw, p, **kw):
    """NCHW convenience wrapper (transpose paid once; see block_forward_flat)."""
    N, C, H, W = x_nchw.shape
    x_flat = jnp.transpose(x_nchw, (1, 0, 2, 3)).reshape(C, N * H * W)
    out = block_forward_flat(x_flat, p, N, H, W, **kw)
    return jnp.transpose(out.reshape(C, N, H, W), (1, 0, 2, 3))


# ---------------------------------------------------------------------------
# Parameter construction (deterministic, synthetic init, kernel-ready layout)
# ---------------------------------------------------------------------------

def qconv_init(key, in_ch, out_ch, k):
    """QuaternionConv: full OIHW weight with Hamilton-product block structure."""
    assert in_ch % 4 == 0 and out_ch % 4 == 0
    oq, iq = out_ch // 4, in_ch // 4
    kr, ki, kj, kk = jax.random.split(key, 4)
    scale = 1.0 / math.sqrt(in_ch * k * k)
    shape = (oq, iq, k, k)
    r = jax.random.normal(kr, shape, jnp.float32) * scale
    i = jax.random.normal(ki, shape, jnp.float32) * scale
    j = jax.random.normal(kj, shape, jnp.float32) * scale
    q = jax.random.normal(kk, shape, jnp.float32) * scale
    row_r = jnp.concatenate([r, -i, -j, -q], axis=1)
    row_i = jnp.concatenate([i, r, -q, j], axis=1)
    row_j = jnp.concatenate([j, q, r, -i], axis=1)
    row_k = jnp.concatenate([q, -j, i, r], axis=1)
    w = jnp.concatenate([row_r, row_i, row_j, row_k], axis=0)   # (out_ch, in_ch, k, k)
    b = jnp.zeros((out_ch,), jnp.float32)
    return w, b


def _mat3x3(w):   # OIHW (Cout, Cin, 3, 3) -> (Cout, 9*Cin) bf16, tap-major cols
    cout, cin = w.shape[0], w.shape[1]
    return jnp.transpose(w, (0, 2, 3, 1)).reshape(cout, 9 * cin).astype(jnp.bfloat16)


def _mat1x1(w):   # OIHW (Cout, Cin, 1, 1) -> (Cout, Cin) bf16
    return w[:, :, 0, 0].astype(jnp.bfloat16)


def _col(b):      # (C,) -> (C, 1) f32 for lane-broadcast inside the kernel
    return b.reshape(-1, 1).astype(jnp.float32)


def init_params(key, dim, hidden):
    ks = list(jax.random.split(key, 8))
    p = {}
    p["bn1_g"] = jnp.ones((dim, 1), jnp.float32)
    p["bn1_b"] = jnp.zeros((dim, 1), jnp.float32)
    p["bn2_g"] = jnp.ones((dim, 1), jnp.float32)
    p["bn2_b"] = jnp.zeros((dim, 1), jnp.float32)

    # SpatialAttention
    w, b = qconv_init(ks[0], dim, dim, 3)
    p["proj1_w"], p["proj1_b"] = _mat3x3(w), _col(b)
    w, b = qconv_init(ks[1], dim, dim, 3)
    p["conv0_w"], p["conv0_b"] = _mat3x3(w), _col(b)
    w, b = qconv_init(ks[2], 2 * dim, dim, 3)
    # conv_spatial sees cat([a, a], 1): W @ [a; a] == (W[:, :dim] + W[:, dim:]) @ a
    w = w[:, :dim] + w[:, dim:]
    p["convsp_w"], p["convsp_b"] = _mat3x3(w), _col(b)
    w, b = qconv_init(ks[3], dim, dim, 1)
    p["conv1_w"], p["conv1_b"] = _mat1x1(w), _col(b)
    w, b = qconv_init(ks[4], dim, dim, 1)
    p["proj2_w"], p["proj2_b"] = _mat1x1(w), _col(b)

    # Mlp
    w, b = qconv_init(ks[5], dim, hidden, 1)
    p["fc1_w"], p["fc1_b"] = _mat1x1(w), _col(b)
    w, b = qconv_init(ks[6], hidden, dim, 1)
    p["fc2_w"], p["fc2_b"] = _mat1x1(w), _col(b)
    # DWConv: despite the name, a plain nn.Conv2d(hidden, hidden, 3, padding=1)
    fan_out = 3 * 3 * hidden
    w = jax.random.normal(ks[7], (hidden, hidden, 3, 3), jnp.float32) * math.sqrt(2.0 / fan_out)
    p["dw_w"], p["dw_b"] = _mat3x3(w), _col(jnp.zeros((hidden,), jnp.float32))
    return p


if __name__ == "__main__":
    key = jax.random.PRNGKey(0)
    kx, kp = jax.random.split(key)

    N, dim, H, W = 2, 8, 16, 16            # dim divisible by 4 (quaternion conv)
    hidden = int(dim * 4.0)                # mlp_ratio = 4.0

    x = jax.random.uniform(kx, (N, dim, H, W), dtype=jnp.float32)   # NCHW input
    params = init_params(kp, dim, hidden)

    # Tiled path: one image per tile -> grid of 2, exercises the pipelined
    # multi-tile path (and megacore sharding where available).
    fwd_tiled = jax.jit(partial(block_forward, images_per_tile=1))
    out = jax.block_until_ready(fwd_tiled(x, params))

    assert out.shape == (N, dim, H, W)
    assert out.dtype == jnp.float32
    assert bool(jnp.all(jnp.isfinite(out)))

    # Auto tile selection (single tile at this size) must agree with the tiled
    # path up to fp reassociation of the BatchNorm statistics.
    fwd_auto = jax.jit(block_forward)
    out_auto = jax.block_until_ready(fwd_auto(x, params))
    assert bool(jnp.allclose(out, out_auto, rtol=1e-2, atol=1e-2))

    print("KERNEL_OK")
</pallas_src>

<mosaic_0001>
module attributes {stable_mosaic.version = 11 : i64} {
  func.func @_mlp_kernel(%arg0: i32, %arg1: memref<8x256xf32, #tpu.memory_space<vmem>>, %arg2: memref<1x256xi32, #tpu.memory_space<vmem>>, %arg3: memref<1x256xi32, #tpu.memory_space<vmem>>, %arg4: memref<8x1xf32, #tpu.memory_space<vmem>>, %arg5: memref<8x1xf32, #tpu.memory_space<vmem>>, %arg6: memref<32x8xbf16, #tpu.memory_space<vmem>>, %arg7: memref<32x1xf32, #tpu.memory_space<vmem>>, %arg8: memref<32x288xbf16, #tpu.memory_space<vmem>>, %arg9: memref<32x1xf32, #tpu.memory_space<vmem>>, %arg10: memref<8x32xbf16, #tpu.memory_space<vmem>>, %arg11: memref<8x1xf32, #tpu.memory_space<vmem>>, %arg12: memref<8x256xf32, #tpu.memory_space<vmem>>, %arg13: memref<288x256xbf16, #tpu.memory_space<vmem>>) attributes {dimension_semantics = [#tpu.dimension_semantics<parallel>], iteration_bounds = array<i64: 2>, scalar_prefetch = 0 : i64, scratch_operands = 1 : i64, tpu.core_type = #tpu.core_type<tc>, window_params = [{transform_indices = @transform_0, window_bounds = array<i64: 8, 256>}, {transform_indices = @transform_1, window_bounds = array<i64: 1, 256>}, {transform_indices = @transform_2, window_bounds = array<i64: 1, 256>}, {pipeline_mode = #tpu.pipeline_mode<synchronous>, transform_indices = @transform_3, window_bounds = array<i64: 8, 1>}, {pipeline_mode = #tpu.pipeline_mode<synchronous>, transform_indices = @transform_4, window_bounds = array<i64: 8, 1>}, {pipeline_mode = #tpu.pipeline_mode<synchronous>, transform_indices = @transform_5, window_bounds = array<i64: 32, 8>}, {pipeline_mode = #tpu.pipeline_mode<synchronous>, transform_indices = @transform_6, window_bounds = array<i64: 32, 1>}, {pipeline_mode = #tpu.pipeline_mode<synchronous>, transform_indices = @transform_7, window_bounds = array<i64: 32, 288>}, {pipeline_mode = #tpu.pipeline_mode<synchronous>, transform_indices = @transform_8, window_bounds = array<i64: 32, 1>}, {pipeline_mode = #tpu.pipeline_mode<synchronous>, transform_indices = @transform_9, window_bounds = array<i64: 8, 32>}, {pipeline_mode = #tpu.pipeline_mode<synchronous>, transform_indices = @transform_10, window_bounds = array<i64: 8, 1>}, {transform_indices = @transform_11, window_bounds = array<i64: 8, 256>}]} {
    %c0 = arith.constant 0 : index
    %c0_0 = arith.constant 0 : index
    %0 = vector.load %arg1[%c0, %c0_0] : memref<8x256xf32, #tpu.memory_space<vmem>>, vector<8x256xf32>
    %c0_1 = arith.constant 0 : index
    %c0_2 = arith.constant 0 : index
    %1 = vector.load %arg2[%c0_1, %c0_2] : memref<1x256xi32, #tpu.memory_space<vmem>>, vector<1x256xi32>
    %c0_3 = arith.constant 0 : index
    %c0_4 = arith.constant 0 : index
    %2 = vector.load %arg3[%c0_3, %c0_4] : memref<1x256xi32, #tpu.memory_space<vmem>>, vector<1x256xi32>
    %c-1_i32 = arith.constant -1 : i32
    %3 = vector.broadcast %c-1_i32 : i32 to vector<1x256xi32>
    %4 = arith.addi %1, %3 : vector<1x256xi32>
    %c0_i32 = arith.constant 0 : i32
    %5 = vector.broadcast %c0_i32 : i32 to vector<1x256xi32>
    %6 = arith.cmpi sge, %4, %5 : vector<1x256xi32>
    %c-1_i32_5 = arith.constant -1 : i32
    %7 = vector.broadcast %c-1_i32_5 : i32 to vector<1x256xi32>
    %8 = arith.addi %1, %7 : vector<1x256xi32>
    %c16_i32 = arith.constant 16 : i32
    %9 = vector.broadcast %c16_i32 : i32 to vector<1x256xi32>
    %10 = arith.cmpi slt, %8, %9 : vector<1x256xi32>
    %11 = arith.andi %6, %10 : vector<1x256xi1>
    %c-1_i32_6 = arith.constant -1 : i32
    %12 = vector.broadcast %c-1_i32_6 : i32 to vector<1x256xi32>
    %13 = arith.addi %2, %12 : vector<1x256xi32>
    %c0_i32_7 = arith.constant 0 : i32
    %14 = vector.broadcast %c0_i32_7 : i32 to vector<1x256xi32>
    %15 = arith.cmpi sge, %13, %14 : vector<1x256xi32>
    %16 = arith.andi %11, %15 : vector<1x256xi1>
    %c-1_i32_8 = arith.constant -1 : i32
    %17 = vector.broadcast %c-1_i32_8 : i32 to vector<1x256xi32>
    %18 = arith.addi %2, %17 : vector<1x256xi32>
    %c16_i32_9 = arith.constant 16 : i32
    %19 = vector.broadcast %c16_i32_9 : i32 to vector<1x256xi32>
    %20 = arith.cmpi slt, %18, %19 : vector<1x256xi32>
    %21 = arith.andi %16, %20 : vector<1x256xi1>
    %22 = arith.extui %21 : vector<1x256xi1> to vector<1x256xi32>
    %23 = arith.sitofp %22 : vector<1x256xi32> to vector<1x256xf32>
    %c-1_i32_10 = arith.constant -1 : i32
    %24 = vector.broadcast %c-1_i32_10 : i32 to vector<1x256xi32>
    %25 = arith.addi %1, %24 : vector<1x256xi32>
    %c0_i32_11 = arith.constant 0 : i32
    %26 = vector.broadcast %c0_i32_11 : i32 to vector<1x256xi32>
    %27 = arith.cmpi sge, %25, %26 : vector<1x256xi32>
    %c-1_i32_12 = arith.constant -1 : i32
    %28 = vector.broadcast %c-1_i32_12 : i32 to vector<1x256xi32>
    %29 = arith.addi %1, %28 : vector<1x256xi32>
    %c16_i32_13 = arith.constant 16 : i32
    %30 = vector.broadcast %c16_i32_13 : i32 to vector<1x256xi32>
    %31 = arith.cmpi slt, %29, %30 : vector<1x256xi32>
    %32 = arith.andi %27, %31 : vector<1x256xi1>
    %c0_i32_14 = arith.constant 0 : i32
    %33 = vector.broadcast %c0_i32_14 : i32 to vector<1x256xi32>
    %34 = arith.addi %2, %33 : vector<1x256xi32>
    %c0_i32_15 = arith.constant 0 : i32
    %35 = vector.broadcast %c0_i32_15 : i32 to vector<1x256xi32>
    %36 = arith.cmpi sge, %34, %35 : vector<1x256xi32>
    %37 = arith.andi %32, %36 : vector<1x256xi1>
    %c0_i32_16 = arith.constant 0 : i32
    %38 = vector.broadcast %c0_i32_16 : i32 to vector<1x256xi32>
    %39 = arith.addi %2, %38 : vector<1x256xi32>
    %c16_i32_17 = arith.constant 16 : i32
    %40 = vector.broadcast %c16_i32_17 : i32 to vector<1x256xi32>
    %41 = arith.cmpi slt, %39, %40 : vector<1x256xi32>
    %42 = arith.andi %37, %41 : vector<1x256xi1>
    %43 = arith.extui %42 : vector<1x256xi1> to vector<1x256xi32>
    %44 = arith.sitofp %43 : vector<1x256xi32> to vector<1x256xf32>
    %c-1_i32_18 = arith.constant -1 : i32
    %45 = vector.broadcast %c-1_i32_18 : i32 to vector<1x256xi32>
    %46 = arith.addi %1, %45 : vector<1x256xi32>
    %c0_i32_19 = arith.constant 0 : i32
    %47 = vector.broadcast %c0_i32_19 : i32 to vector<1x256xi32>
    %48 = arith.cmpi sge, %46, %47 : vector<1x256xi32>
    %c-1_i32_20 = arith.constant -1 : i32
    %49 = vector.broadcast %c-1_i32_20 : i32 to vector<1x256xi32>
    %50 = arith.addi %1, %49 : vector<1x256xi32>
    %c16_i32_21 = arith.constant 16 : i32
    %51 = vector.broadcast %c16_i32_21 : i32 to vector<1x256xi32>
    %52 = arith.cmpi slt, %50, %51 : vector<1x256xi32>
    %53 = arith.andi %48, %52 : vector<1x256xi1>
    %c1_i32 = arith.constant 1 : i32
    %54 = vector.broadcast %c1_i32 : i32 to vector<1x256xi32>
    %55 = arith.addi %2, %54 : vector<1x256xi32>
    %c0_i32_22 = arith.constant 0 : i32
    %56 = vector.broadcast %c0_i32_22 : i32 to vector<1x256xi32>
    %57 = arith.cmpi sge, %55, %56 : vector<1x256xi32>
    %58 = arith.andi %53, %57 : vector<1x256xi1>
    %c1_i32_23 = arith.constant 1 : i32
    %59 = vector.broadcast %c1_i32_23 : i32 to vector<1x256xi32>
    %60 = arith.addi %2, %59 : vector<1x256xi32>
    %c16_i32_24 = arith.constant 16 : i32
    %61 = vector.broadcast %c16_i32_24 : i32 to vector<1x256xi32>
    %62 = arith.cmpi slt, %60, %61 : vector<1x256xi32>
    %63 = arith.andi %58, %62 : vector<1x256xi1>
    %64 = arith.extui %63 : vector<1x256xi1> to vector<1x256xi32>
    %65 = arith.sitofp %64 : vector<1x256xi32> to vector<1x256xf32>
    %c0_i32_25 = arith.constant 0 : i32
    %66 = vector.broadcast %c0_i32_25 : i32 to vector<1x256xi32>
    %67 = arith.addi %1, %66 : vector<1x256xi32>
    %c0_i32_26 = arith.constant 0 : i32
    %68 = vector.broadcast %c0_i32_26 : i32 to vector<1x256xi32>
    %69 = arith.cmpi sge, %67, %68 : vector<1x256xi32>
    %c0_i32_27 = arith.constant 0 : i32
    %70 = vector.broadcast %c0_i32_27 : i32 to vector<1x256xi32>
    %71 = arith.addi %1, %70 : vector<1x256xi32>
    %c16_i32_28 = arith.constant 16 : i32
    %72 = vector.broadcast %c16_i32_28 : i32 to vector<1x256xi32>
    %73 = arith.cmpi slt, %71, %72 : vector<1x256xi32>
    %74 = arith.andi %69, %73 : vector<1x256xi1>
    %c-1_i32_29 = arith.constant -1 : i32
    %75 = vector.broadcast %c-1_i32_29 : i32 to vector<1x256xi32>
    %76 = arith.addi %2, %75 : vector<1x256xi32>
    %c0_i32_30 = arith.constant 0 : i32
    %77 = vector.broadcast %c0_i32_30 : i32 to vector<1x256xi32>
    %78 = arith.cmpi sge, %76, %77 : vector<1x256xi32>
    %79 = arith.andi %74, %78 : vector<1x256xi1>
    %c-1_i32_31 = arith.constant -1 : i32
    %80 = vector.broadcast %c-1_i32_31 : i32 to vector<1x256xi32>
    %81 = arith.addi %2, %80 : vector<1x256xi32>
    %c16_i32_32 = arith.constant 16 : i32
    %82 = vector.broadcast %c16_i32_32 : i32 to vector<1x256xi32>
    %83 = arith.cmpi slt, %81, %82 : vector<1x256xi32>
    %84 = arith.andi %79, %83 : vector<1x256xi1>
    %85 = arith.extui %84 : vector<1x256xi1> to vector<1x256xi32>
    %86 = arith.sitofp %85 : vector<1x256xi32> to vector<1x256xf32>
    %c0_i32_33 = arith.constant 0 : i32
    %87 = vector.broadcast %c0_i32_33 : i32 to vector<1x256xi32>
    %88 = arith.addi %1, %87 : vector<1x256xi32>
    %c0_i32_34 = arith.constant 0 : i32
    %89 = vector.broadcast %c0_i32_34 : i32 to vector<1x256xi32>
    %90 = arith.cmpi sge, %88, %89 : vector<1x256xi32>
    %c0_i32_35 = arith.constant 0 : i32
    %91 = vector.broadcast %c0_i32_35 : i32 to vector<1x256xi32>
    %92 = arith.addi %1, %91 : vector<1x256xi32>
    %c16_i32_36 = arith.constant 16 : i32
    %93 = vector.broadcast %c16_i32_36 : i32 to vector<1x256xi32>
    %94 = arith.cmpi slt, %92, %93 : vector<1x256xi32>
    %95 = arith.andi %90, %94 : vector<1x256xi1>
    %c1_i32_37 = arith.constant 1 : i32
    %96 = vector.broadcast %c1_i32_37 : i32 to vector<1x256xi32>
    %97 = arith.addi %2, %96 : vector<1x256xi32>
    %c0_i32_38 = arith.constant 0 : i32
    %98 = vector.broadcast %c0_i32_38 : i32 to vector<1x256xi32>
    %99 = arith.cmpi sge, %97, %98 : vector<1x256xi32>
    %100 = arith.andi %95, %99 : vector<1x256xi1>
    %c1_i32_39 = arith.constant 1 : i32
    %101 = vector.broadcast %c1_i32_39 : i32 to vector<1x256xi32>
    %102 = arith.addi %2, %101 : vector<1x256xi32>
    %c16_i32_40 = arith.constant 16 : i32
    %103 = vector.broadcast %c16_i32_40 : i32 to vector<1x256xi32>
    %104 = arith.cmpi slt, %102, %103 : vector<1x256xi32>
    %105 = arith.andi %100, %104 : vector<1x256xi1>
    %106 = arith.extui %105 : vector<1x256xi1> to vector<1x256xi32>
    %107 = arith.sitofp %106 : vector<1x256xi32> to vector<1x256xf32>
    %c1_i32_41 = arith.constant 1 : i32
    %108 = vector.broadcast %c1_i32_41 : i32 to vector<1x256xi32>
    %109 = arith.addi %1, %108 : vector<1x256xi32>
    %c0_i32_42 = arith.constant 0 : i32
    %110 = vector.broadcast %c0_i32_42 : i32 to vector<1x256xi32>
    %111 = arith.cmpi sge, %109, %110 : vector<1x256xi32>
    %c1_i32_43 = arith.constant 1 : i32
    %112 = vector.broadcast %c1_i32_43 : i32 to vector<1x256xi32>
    %113 = arith.addi %1, %112 : vector<1x256xi32>
    %c16_i32_44 = arith.constant 16 : i32
    %114 = vector.broadcast %c16_i32_44 : i32 to vector<1x256xi32>
    %115 = arith.cmpi slt, %113, %114 : vector<1x256xi32>
    %116 = arith.andi %111, %115 : vector<1x256xi1>
    %c-1_i32_45 = arith.constant -1 : i32
    %117 = vector.broadcast %c-1_i32_45 : i32 to vector<1x256xi32>
    %118 = arith.addi %2, %117 : vector<1x256xi32>
    %c0_i32_46 = arith.constant 0 : i32
    %119 = vector.broadcast %c0_i32_46 : i32 to vector<1x256xi32>
    %120 = arith.cmpi sge, %118, %119 : vector<1x256xi32>
    %121 = arith.andi %116, %120 : vector<1x256xi1>
    %c-1_i32_47 = arith.constant -1 : i32
    %122 = vector.broadcast %c-1_i32_47 : i32 to vector<1x256xi32>
    %123 = arith.addi %2, %122 : vector<1x256xi32>
    %c16_i32_48 = arith.constant 16 : i32
    %124 = vector.broadcast %c16_i32_48 : i32 to vector<1x256xi32>
    %125 = arith.cmpi slt, %123, %124 : vector<1x256xi32>
    %126 = arith.andi %121, %125 : vector<1x256xi1>
    %127 = arith.extui %126 : vector<1x256xi1> to vector<1x256xi32>
    %128 = arith.sitofp %127 : vector<1x256xi32> to vector<1x256xf32>
    %c1_i32_49 = arith.constant 1 : i32
    %129 = vector.broadcast %c1_i32_49 : i32 to vector<1x256xi32>
    %130 = arith.addi %1, %129 : vector<1x256xi32>
    %c0_i32_50 = arith.constant 0 : i32
    %131 = vector.broadcast %c0_i32_50 : i32 to vector<1x256xi32>
    %132 = arith.cmpi sge, %130, %131 : vector<1x256xi32>
    %c1_i32_51 = arith.constant 1 : i32
    %133 = vector.broadcast %c1_i32_51 : i32 to vector<1x256xi32>
    %134 = arith.addi %1, %133 : vector<1x256xi32>
    %c16_i32_52 = arith.constant 16 : i32
    %135 = vector.broadcast %c16_i32_52 : i32 to vector<1x256xi32>
    %136 = arith.cmpi slt, %134, %135 : vector<1x256xi32>
    %137 = arith.andi %132, %136 : vector<1x256xi1>
    %c0_i32_53 = arith.constant 0 : i32
    %138 = vector.broadcast %c0_i32_53 : i32 to vector<1x256xi32>
    %139 = arith.addi %2, %138 : vector<1x256xi32>
    %c0_i32_54 = arith.constant 0 : i32
    %140 = vector.broadcast %c0_i32_54 : i32 to vector<1x256xi32>
    %141 = arith.cmpi sge, %139, %140 : vector<1x256xi32>
    %142 = arith.andi %137, %141 : vector<1x256xi1>
    %c0_i32_55 = arith.constant 0 : i32
    %143 = vector.broadcast %c0_i32_55 : i32 to vector<1x256xi32>
    %144 = arith.addi %2, %143 : vector<1x256xi32>
    %c16_i32_56 = arith.constant 16 : i32
    %145 = vector.broadcast %c16_i32_56 : i32 to vector<1x256xi32>
    %146 = arith.cmpi slt, %144, %145 : vector<1x256xi32>
    %147 = arith.andi %142, %146 : vector<1x256xi1>
    %148 = arith.extui %147 : vector<1x256xi1> to vector<1x256xi32>
    %149 = arith.sitofp %148 : vector<1x256xi32> to vector<1x256xf32>
    %c1_i32_57 = arith.constant 1 : i32
    %150 = vector.broadcast %c1_i32_57 : i32 to vector<1x256xi32>
    %151 = arith.addi %1, %150 : vector<1x256xi32>
    %c0_i32_58 = arith.constant 0 : i32
    %152 = vector.broadcast %c0_i32_58 : i32 to vector<1x256xi32>
    %153 = arith.cmpi sge, %151, %152 : vector<1x256xi32>
    %c1_i32_59 = arith.constant 1 : i32
    %154 = vector.broadcast %c1_i32_59 : i32 to vector<1x256xi32>
    %155 = arith.addi %1, %154 : vector<1x256xi32>
    %c16_i32_60 = arith.constant 16 : i32
    %156 = vector.broadcast %c16_i32_60 : i32 to vector<1x256xi32>
    %157 = arith.cmpi slt, %155, %156 : vector<1x256xi32>
    %158 = arith.andi %153, %157 : vector<1x256xi1>
    %c1_i32_61 = arith.constant 1 : i32
    %159 = vector.broadcast %c1_i32_61 : i32 to vector<1x256xi32>
    %160 = arith.addi %2, %159 : vector<1x256xi32>
    %c0_i32_62 = arith.constant 0 : i32
    %161 = vector.broadcast %c0_i32_62 : i32 to vector<1x256xi32>
    %162 = arith.cmpi sge, %160, %161 : vector<1x256xi32>
    %163 = arith.andi %158, %162 : vector<1x256xi1>
    %c1_i32_63 = arith.constant 1 : i32
    %164 = vector.broadcast %c1_i32_63 : i32 to vector<1x256xi32>
    %165 = arith.addi %2, %164 : vector<1x256xi32>
    %c16_i32_64 = arith.constant 16 : i32
    %166 = vector.broadcast %c16_i32_64 : i32 to vector<1x256xi32>
    %167 = arith.cmpi slt, %165, %166 : vector<1x256xi32>
    %168 = arith.andi %163, %167 : vector<1x256xi1>
    %169 = arith.extui %168 : vector<1x256xi1> to vector<1x256xi32>
    %170 = arith.sitofp %169 : vector<1x256xi32> to vector<1x256xf32>
    %c0_65 = arith.constant 0 : index
    %c0_66 = arith.constant 0 : index
    %171 = vector.load %arg4[%c0_65, %c0_66] : memref<8x1xf32, #tpu.memory_space<vmem>>, vector<8x1xf32>
    %172 = vector.broadcast %171 : vector<8x1xf32> to vector<8x256xf32>
    %173 = arith.mulf %0, %172 : vector<8x256xf32>
    %c0_67 = arith.constant 0 : index
    %c0_68 = arith.constant 0 : index
    %174 = vector.load %arg5[%c0_67, %c0_68] : memref<8x1xf32, #tpu.memory_space<vmem>>, vector<8x1xf32>
    %175 = vector.broadcast %174 : vector<8x1xf32> to vector<8x256xf32>
    %176 = arith.addf %173, %175 : vector<8x256xf32>
    %c0_69 = arith.constant 0 : index
    %c0_70 = arith.constant 0 : index
    %177 = vector.load %arg6[%c0_69, %c0_70] : memref<32x8xbf16, #tpu.memory_space<vmem>>, vector<32x8xbf16>
    %178 = arith.truncf %176 : vector<8x256xf32> to vector<8x256xbf16>
    %cst = arith.constant dense<0.000000e+00> : vector<32x256xf32>
    %179 = tpu.matmul %177, %178, %cst {dimension_numbers = #tpu.dot_dimension_numbers<[1], [0], [0], [1], [0, 0, 1, 1], [], []>} : vector<32x8xbf16>, vector<8x256xbf16>, vector<32x256xf32> -> vector<32x256xf32>
    %c0_71 = arith.constant 0 : index
    %c0_72 = arith.constant 0 : index
    %180 = vector.load %arg7[%c0_71, %c0_72] : memref<32x1xf32, #tpu.memory_space<vmem>>, vector<32x1xf32>
    %181 = vector.broadcast %180 : vector<32x1xf32> to vector<32x256xf32>
    %182 = arith.addf %179, %181 : vector<32x256xf32>
    %c17_i32 = arith.constant 17 : i32
    %183 = tpu.dynamic_rotate %182 by %c17_i32 dim 1 : vector<32x256xf32>, i32 -> vector<32x256xf32>
    %184 = vector.broadcast %23 : vector<1x256xf32> to vector<32x256xf32>
    %185 = arith.mulf %183, %184 : vector<32x256xf32>
    %186 = arith.truncf %185 : vector<32x256xf32> to vector<32x256xbf16>
    %c0_73 = arith.constant 0 : index
    %c0_74 = arith.constant 0 : index
    %187 = vector.load %arg13[%c0_73, %c0_74] : memref<288x256xbf16, #tpu.memory_space<vmem>>, vector<32x256xbf16>
    tpu.vector_store %arg13[%c0_73, %c0_74], %186 {strides = array<i32>} : memref<288x256xbf16, #tpu.memory_space<vmem>>, vector<32x256xbf16>,
    %c16_i32_75 = arith.constant 16 : i32
    %188 = tpu.dynamic_rotate %182 by %c16_i32_75 dim 1 : vector<32x256xf32>, i32 -> vector<32x256xf32>
    %189 = vector.broadcast %44 : vector<1x256xf32> to vector<32x256xf32>
    %190 = arith.mulf %188, %189 : vector<32x256xf32>
    %191 = arith.truncf %190 : vector<32x256xf32> to vector<32x256xbf16>
    %c32 = arith.constant 32 : index
    %c0_76 = arith.constant 0 : index
    %192 = vector.load %arg13[%c32, %c0_76] : memref<288x256xbf16, #tpu.memory_space<vmem>>, vector<32x256xbf16>
    tpu.vector_store %arg13[%c32, %c0_76], %191 {strides = array<i32>} : memref<288x256xbf16, #tpu.memory_space<vmem>>, vector<32x256xbf16>,
    %c15_i32 = arith.constant 15 : i32
    %193 = tpu.dynamic_rotate %182 by %c15_i32 dim 1 : vector<32x256xf32>, i32 -> vector<32x256xf32>
    %194 = vector.broadcast %65 : vector<1x256xf32> to vector<32x256xf32>
    %195 = arith.mulf %193, %194 : vector<32x256xf32>
    %196 = arith.truncf %195 : vector<32x256xf32> to vector<32x256xbf16>
    %c64 = arith.constant 64 : index
    %c0_77 = arith.constant 0 : index
    %197 = vector.load %arg13[%c64, %c0_77] : memref<288x256xbf16, #tpu.memory_space<vmem>>, vector<32x256xbf16>
    tpu.vector_store %arg13[%c64, %c0_77], %196 {strides = array<i32>} : memref<288x256xbf16, #tpu.memory_space<vmem>>, vector<32x256xbf16>,
    %c1_i32_78 = arith.constant 1 : i32
    %198 = tpu.dynamic_rotate %182 by %c1_i32_78 dim 1 : vector<32x256xf32>, i32 -> vector<32x256xf32>
    %199 = vector.broadcast %86 : vector<1x256xf32> to vector<32x256xf32>
    %200 = arith.mulf %198, %199 : vector<32x256xf32>
    %201 = arith.truncf %200 : vector<32x256xf32> to vector<32x256xbf16>
    %c96 = arith.constant 96 : index
    %c0_79 = arith.constant 0 : index
    %202 = vector.load %arg13[%c96, %c0_79] : memref<288x256xbf16, #tpu.memory_space<vmem>>, vector<32x256xbf16>
    tpu.vector_store %arg13[%c96, %c0_79], %201 {strides = array<i32>} : memref<288x256xbf16, #tpu.memory_space<vmem>>, vector<32x256xbf16>,
    %203 = arith.truncf %182 : vector<32x256xf32> to vector<32x256xbf16>
    %c128 = arith.constant 128 : index
    %c0_80 = arith.constant 0 : index
    %204 = vector.load %arg13[%c128, %c0_80] : memref<288x256xbf16, #tpu.memory_space<vmem>>, vector<32x256xbf16>
    tpu.vector_store %arg13[%c128, %c0_80], %203 {strides = array<i32>} : memref<288x256xbf16, #tpu.memory_space<vmem>>, vector<32x256xbf16>,
    %c255_i32 = arith.constant 255 : i32
    %205 = tpu.dynamic_rotate %182 by %c255_i32 dim 1 : vector<32x256xf32>, i32 -> vector<32x256xf32>
    %206 = vector.broadcast %107 : vector<1x256xf32> to vector<32x256xf32>
    %207 = arith.mulf %205, %206 : vector<32x256xf32>
    %208 = arith.truncf %207 : vector<32x256xf32> to vector<32x256xbf16>
    %c160 = arith.constant 160 : index
    %c0_81 = arith.constant 0 : index
    %209 = vector.load %arg13[%c160, %c0_81] : memref<288x256xbf16, #tpu.memory_space<vmem>>, vector<32x256xbf16>
    tpu.vector_store %arg13[%c160, %c0_81], %208 {strides = array<i32>} : memref<288x256xbf16, #tpu.memory_space<vmem>>, vector<32x256xbf16>,
    %c241_i32 = arith.constant 241 : i32
    %210 = tpu.dynamic_rotate %182 by %c241_i32 dim 1 : vector<32x256xf32>, i32 -> vector<32x256xf32>
    %211 = vector.broadcast %128 : vector<1x256xf32> to vector<32x256xf32>
    %212 = arith.mulf %210, %211 : vector<32x256xf32>
    %213 = arith.truncf %212 : vector<32x256xf32> to vector<32x256xbf16>
    %c192 = arith.constant 192 : index
    %c0_82 = arith.constant 0 : index
    %214 = vector.load %arg13[%c192, %c0_82] : memref<288x256xbf16, #tpu.memory_space<vmem>>, vector<32x256xbf16>
    tpu.vector_store %arg13[%c192, %c0_82], %213 {strides = array<i32>} : memref<288x256xbf16, #tpu.memory_space<vmem>>, vector<32x256xbf16>,
    %c240_i32 = arith.constant 240 : i32
    %215 = tpu.dynamic_rotate %182 by %c240_i32 dim 1 : vector<32x256xf32>, i32 -> vector<32x256xf32>
    %216 = vector.broadcast %149 : vector<1x256xf32> to vector<32x256xf32>
    %217 = arith.mulf %215, %216 : vector<32x256xf32>
    %218 = arith.truncf %217 : vector<32x256xf32> to vector<32x256xbf16>
    %c224 = arith.constant 224 : index
    %c0_83 = arith.constant 0 : index
    %219 = vector.load %arg13[%c224, %c0_83] : memref<288x256xbf16, #tpu.memory_space<vmem>>, vector<32x256xbf16>
    tpu.vector_store %arg13[%c224, %c0_83], %218 {strides = array<i32>} : memref<288x256xbf16, #tpu.memory_space<vmem>>, vector<32x256xbf16>,
    %c239_i32 = arith.constant 239 : i32
    %220 = tpu.dynamic_rotate %182 by %c239_i32 dim 1 : vector<32x256xf32>, i32 -> vector<32x256xf32>
    %221 = vector.broadcast %170 : vector<1x256xf32> to vector<32x256xf32>
    %222 = arith.mulf %220, %221 : vector<32x256xf32>
    %223 = arith.truncf %222 : vector<32x256xf32> to vector<32x256xbf16>
    %c256 = arith.constant 256 : index
    %c0_84 = arith.constant 0 : index
    %224 = vector.load %arg13[%c256, %c0_84] : memref<288x256xbf16, #tpu.memory_space<vmem>>, vector<32x256xbf16>
    tpu.vector_store %arg13[%c256, %c0_84], %223 {strides = array<i32>} : memref<288x256xbf16, #tpu.memory_space<vmem>>, vector<32x256xbf16>,
    %c0_85 = arith.constant 0 : index
    %c0_86 = arith.constant 0 : index
    %225 = vector.load %arg8[%c0_85, %c0_86] : memref<32x288xbf16, #tpu.memory_space<vmem>>, vector<32x288xbf16>
    %c0_87 = arith.constant 0 : index
    %c0_88 = arith.constant 0 : index
    %226 = vector.load %arg13[%c0_87, %c0_88] : memref<288x256xbf16, #tpu.memory_space<vmem>>, vector<288x256xbf16>
    %cst_89 = arith.constant dense<0.000000e+00> : vector<32x256xf32>
    %227 = tpu.matmul %225, %226, %cst_89 {dimension_numbers = #tpu.dot_dimension_numbers<[1], [0], [0], [1], [0, 0, 1, 1], [], []>} : vector<32x288xbf16>, vector<288x256xbf16>, vector<32x256xf32> -> vector<32x256xf32>
    %c0_90 = arith.constant 0 : index
    %c0_91 = arith.constant 0 : index
    %228 = vector.load %arg9[%c0_90, %c0_91] : memref<32x1xf32, #tpu.memory_space<vmem>>, vector<32x1xf32>
    %229 = vector.broadcast %228 : vector<32x1xf32> to vector<32x256xf32>
    %230 = arith.addf %227, %229 : vector<32x256xf32>
    %cst_92 = arith.constant 5.000000e-01 : f32
    %231 = vector.broadcast %cst_92 : f32 to vector<32x256xf32>
    %232 = arith.mulf %231, %230 : vector<32x256xf32>
    %cst_93 = arith.constant 4.471500e-02 : f32
    %233 = vector.broadcast %cst_93 : f32 to vector<32x256xf32>
    %234 = arith.mulf %233, %230 : vector<32x256xf32>
    %235 = arith.mulf %234, %230 : vector<32x256xf32>
    %236 = arith.mulf %235, %230 : vector<32x256xf32>
    %237 = arith.addf %230, %236 : vector<32x256xf32>
    %cst_94 = arith.constant 0.797884583 : f32
    %238 = vector.broadcast %cst_94 : f32 to vector<32x256xf32>
    %239 = arith.mulf %238, %237 : vector<32x256xf32>
    %240 = math.tanh %239 : vector<32x256xf32>
    %cst_95 = arith.constant 1.000000e+00 : f32
    %241 = vector.broadcast %cst_95 : f32 to vector<32x256xf32>
    %242 = arith.addf %241, %240 : vector<32x256xf32>
    %243 = arith.mulf %232, %242 : vector<32x256xf32>
    %c0_96 = arith.constant 0 : index
    %c0_97 = arith.constant 0 : index
    %244 = vector.load %arg10[%c0_96, %c0_97] : memref<8x32xbf16, #tpu.memory_space<vmem>>, vector<8x32xbf16>
    %245 = arith.truncf %243 : vector<32x256xf32> to vector<32x256xbf16>
    %cst_98 = arith.constant dense<0.000000e+00> : vector<8x256xf32>
    %246 = tpu.matmul %244, %245, %cst_98 {dimension_numbers = #tpu.dot_dimension_numbers<[1], [0], [0], [1], [0, 0, 1, 1], [], []>} : vector<8x32xbf16>, vector<32x256xbf16>, vector<8x256xf32> -> vector<8x256xf32>
    %c0_99 = arith.constant 0 : index
    %c0_100 = arith.constant 0 : index
    %247 = vector.load %arg11[%c0_99, %c0_100] : memref<8x1xf32, #tpu.memory_space<vmem>>, vector<8x1xf32>
    %248 = vector.broadcast %247 : vector<8x1xf32> to vector<8x256xf32>
    %249 = arith.addf %246, %248 : vector<8x256xf32>
    %250 = arith.addf %0, %249 : vector<8x256xf32>
    %c0_101 = arith.constant 0 : index
    %c0_102 = arith.constant 0 : index
    %251 = vector.load %arg12[%c0_101, %c0_102] : memref<8x256xf32, #tpu.memory_space<vmem>>, vector<8x256xf32>
    tpu.vector_store %arg12[%c0_101, %c0_102], %250 {strides = array<i32>} : memref<8x256xf32, #tpu.memory_space<vmem>>, vector<8x256xf32>,
    return
  }
  func.func @transform_0(%arg0: i32) -> (i32, i32) {
    %c0_i32 = arith.constant 0 : i32
    %c0_i32_0 = arith.constant 0 : i32
    return %c0_i32, %arg0 : i32, i32
  }
  func.func @transform_1(%arg0: i32) -> (i32, i32) {
    %c0_i32 = arith.constant 0 : i32
    %c0_i32_0 = arith.constant 0 : i32
    return %c0_i32, %arg0 : i32, i32
  }
  func.func @transform_2(%arg0: i32) -> (i32, i32) {
    %c0_i32 = arith.constant 0 : i32
    %c0_i32_0 = arith.constant 0 : i32
    return %c0_i32, %arg0 : i32, i32
  }
  func.func @transform_3(%arg0: i32) -> (i32, i32) {
    %c0_i32 = arith.constant 0 : i32
    %c0_i32_0 = arith.constant 0 : i32
    %c0_i32_1 = arith.constant 0 : i32
    return %c0_i32, %c0_i32_0 : i32, i32
  }
  func.func @transform_4(%arg0: i32) -> (i32, i32) {
    %c0_i32 = arith.constant 0 : i32
    %c0_i32_0 = arith.constant 0 : i32
    %c0_i32_1 = arith.constant 0 : i32
    return %c0_i32, %c0_i32_0 : i32, i32
  }
  func.func @transform_5(%arg0: i32) -> (i32, i32) {
    %c0_i32 = arith.constant 0 : i32
    %c0_i32_0 = arith.constant 0 : i32
    %c0_i32_1 = arith.constant 0 : i32
    return %c0_i32, %c0_i32_0 : i32, i32
  }
  func.func @transform_6(%arg0: i32) -> (i32, i32) {
    %c0_i32 = arith.constant 0 : i32
    %c0_i32_0 = arith.constant 0 : i32
    %c0_i32_1 = arith.constant 0 : i32
    return %c0_i32, %c0_i32_0 : i32, i32
  }
  func.func @transform_7(%arg0: i32) -> (i32, i32) {
    %c0_i32 = arith.constant 0 : i32
    %c0_i32_0 = arith.constant 0 : i32
    %c0_i32_1 = arith.constant 0 : i32
    return %c0_i32, %c0_i32_0 : i32, i32
  }
  func.func @transform_8(%arg0: i32) -> (i32, i32) {
    %c0_i32 = arith.constant 0 : i32
    %c0_i32_0 = arith.constant 0 : i32
    %c0_i32_1 = arith.constant 0 : i32
    return %c0_i32, %c0_i32_0 : i32, i32
  }
  func.func @transform_9(%arg0: i32) -> (i32, i32) {
    %c0_i32 = arith.constant 0 : i32
    %c0_i32_0 = arith.constant 0 : i32
    %c0_i32_1 = arith.constant 0 : i32
    return %c0_i32, %c0_i32_0 : i32, i32
  }
  func.func @transform_10(%arg0: i32) -> (i32, i32) {
    %c0_i32 = arith.constant 0 : i32
    %c0_i32_0 = arith.constant 0 : i32
    %c0_i32_1 = arith.constant 0 : i32
    return %c0_i32, %c0_i32_0 : i32, i32
  }
  func.func @transform_11(%arg0: i32) -> (i32, i32) {
    %c0_i32 = arith.constant 0 : i32
    %c0_i32_0 = arith.constant 0 : i32
    return %c0_i32, %arg0 : i32, i32
  }
}

module attributes {stable_mosaic.version = 11 : i64} {
  func.func @_stats_kernel(%arg0: i32, %arg1: memref<8x256xf32, #tpu.memory_space<vmem>>, %arg2: memref<1x8x1xf32, #tpu.memory_space<vmem>>, %arg3: memref<1x8x1xf32, #tpu.memory_space<vmem>>) attributes {dimension_semantics = [#tpu.dimension_semantics<parallel>], iteration_bounds = array<i64: 2>, scalar_prefetch = 0 : i64, scratch_operands = 0 : i64, tpu.core_type = #tpu.core_type<tc>, window_params = [{transform_indices = @transform_0, window_bounds = array<i64: 8, 256>}, {transform_indices = @transform_1, window_bounds = array<i64: 1, 8, 1>}, {transform_indices = @transform_2, window_bounds = array<i64: 1, 8, 1>}]} {
    %c0 = arith.constant 0 : index
    %c0_0 = arith.constant 0 : index
    %0 = vector.load %arg1[%c0, %c0_0] : memref<8x256xf32, #tpu.memory_space<vmem>>, vector<8x256xf32>
    %cst = arith.constant dense<0.000000e+00> : vector<8xf32>
    %1 = vector.multi_reduction <add>, %0, %cst [1] : vector<8x256xf32> to vector<8xf32>
    %2 = vector.shape_cast %1 : vector<8xf32> to vector<8x1xf32>
    %3 = vector.shape_cast %2 : vector<8x1xf32> to vector<1x8x1xf32>
    %c0_1 = arith.constant 0 : index
    %c0_2 = arith.constant 0 : index
    %c0_3 = arith.constant 0 : index
    %4 = vector.load %arg2[%c0_1, %c0_2, %c0_3] : memref<1x8x1xf32, #tpu.memory_space<vmem>>, vector<1x8x1xf32>
    tpu.vector_store %arg2[%c0_1, %c0_2, %c0_3], %3 {strides = array<i32>} : memref<1x8x1xf32, #tpu.memory_space<vmem>>, vector<1x8x1xf32>,
    %5 = arith.mulf %0, %0 : vector<8x256xf32>
    %cst_4 = arith.constant dense<0.000000e+00> : vector<8xf32>
    %6 = vector.multi_reduction <add>, %5, %cst_4 [1] : vector<8x256xf32> to vector<8xf32>
    %7 = vector.shape_cast %6 : vector<8xf32> to vector<8x1xf32>
    %8 = vector.shape_cast %7 : vector<8x1xf32> to vector<1x8x1xf32>
    %c0_5 = arith.constant 0 : index
    %c0_6 = arith.constant 0 : index
    %c0_7 = arith.constant 0 : index
    %9 = vector.load %arg3[%c0_5, %c0_6, %c0_7] : memref<1x8x1xf32, #tpu.memory_space<vmem>>, vector<1x8x1xf32>
    tpu.vector_store %arg3[%c0_5, %c0_6, %c0_7], %8 {strides = array<i32>} : memref<1x8x1xf32, #tpu.memory_space<vmem>>, vector<1x8x1xf32>,
    return
  }
  func.func @transform_0(%arg0: i32) -> (i32, i32) {
    %c0_i32 = arith.constant 0 : i32
    %c0_i32_0 = arith.constant 0 : i32
    return %c0_i32, %arg0 : i32, i32
  }
  func.func @transform_1(%arg0: i32) -> (i32, i32, i32) {
    %c0_i32 = arith.constant 0 : i32
    %c0_i32_0 = arith.constant 0 : i32
    %c0_i32_1 = arith.constant 0 : i32
    return %arg0, %c0_i32, %c0_i32_0 : i32, i32, i32
  }
  func.func @transform_2(%arg0: i32) -> (i32, i32, i32) {
    %c0_i32 = arith.constant 0 : i32
    %c0_i32_0 = arith.constant 0 : i32
    %c0_i32_1 = arith.constant 0 : i32
    return %arg0, %c0_i32, %c0_i32_0 : i32, i32, i32
  }
}

module attributes {stable_mosaic.version = 11 : i64} {
  func.func @_attn_kernel(%arg0: i32, %arg1: memref<8x256xf32, #tpu.memory_space<vmem>>, %arg2: memref<1x256xi32, #tpu.memory_space<vmem>>, %arg3: memref<1x256xi32, #tpu.memory_space<vmem>>, %arg4: memref<8x1xf32, #tpu.memory_space<vmem>>, %arg5: memref<8x1xf32, #tpu.memory_space<vmem>>, %arg6: memref<8x72xbf16, #tpu.memory_space<vmem>>, %arg7: memref<8x1xf32, #tpu.memory_space<vmem>>, %arg8: memref<8x72xbf16, #tpu.memory_space<vmem>>, %arg9: memref<8x1xf32, #tpu.memory_space<vmem>>, %arg10: memref<8x72xbf16, #tpu.memory_space<vmem>>, %arg11: memref<8x1xf32, #tpu.memory_space<vmem>>, %arg12: memref<8x8xbf16, #tpu.memory_space<vmem>>, %arg13: memref<8x1xf32, #tpu.memory_space<vmem>>, %arg14: memref<8x8xbf16, #tpu.memory_space<vmem>>, %arg15: memref<8x1xf32, #tpu.memory_space<vmem>>, %arg16: memref<8x256xf32, #tpu.memory_space<vmem>>, %arg17: memref<1x8x1xf32, #tpu.memory_space<vmem>>, %arg18: memref<1x8x1xf32, #tpu.memory_space<vmem>>, %arg19: memref<72x256xbf16, #tpu.memory_space<vmem>>) attributes {dimension_semantics = [#tpu.dimension_semantics<parallel>], iteration_bounds = array<i64: 2>, scalar_prefetch = 0 : i64, scratch_operands = 1 : i64, tpu.core_type = #tpu.core_type<tc>, window_params = [{transform_indices = @transform_0, window_bounds = array<i64: 8, 256>}, {transform_indices = @transform_1, window_bounds = array<i64: 1, 256>}, {transform_indices = @transform_2, window_bounds = array<i64: 1, 256>}, {pipeline_mode = #tpu.pipeline_mode<synchronous>, transform_indices = @transform_3, window_bounds = array<i64: 8, 1>}, {pipeline_mode = #tpu.pipeline_mode<synchronous>, transform_indices = @transform_4, window_bounds = array<i64: 8, 1>}, {pipeline_mode = #tpu.pipeline_mode<synchronous>, transform_indices = @transform_5, window_bounds = array<i64: 8, 72>}, {pipeline_mode = #tpu.pipeline_mode<synchronous>, transform_indices = @transform_6, window_bounds = array<i64: 8, 1>}, {pipeline_mode = #tpu.pipeline_mode<synchronous>, transform_indices = @transform_7, window_bounds = array<i64: 8, 72>}, {pipeline_mode = #tpu.pipeline_mode<synchronous>, transform_indices = @transform_8, window_bounds = array<i64: 8, 1>}, {pipeline_mode = #tpu.pipeline_mode<synchronous>, transform_indices = @transform_9, window_bounds = array<i64: 8, 72>}, {pipeline_mode = #tpu.pipeline_mode<synchronous>, transform_indices = @transform_10, window_bounds = array<i64: 8, 1>}, {pipeline_mode = #tpu.pipeline_mode<synchronous>, transform_indices = @transform_11, window_bounds = array<i64: 8, 8>}, {pipeline_mode = #tpu.pipeline_mode<synchronous>, transform_indices = @transform_12, window_bounds = array<i64: 8, 1>}, {pipeline_mode = #tpu.pipeline_mode<synchronous>, transform_indices = @transform_13, window_bounds = array<i64: 8, 8>}, {pipeline_mode = #tpu.pipeline_mode<synchronous>, transform_indices = @transform_14, window_bounds = array<i64: 8, 1>}, {transform_indices = @transform_15, window_bounds = array<i64: 8, 256>}, {transform_indices = @transform_16, window_bounds = array<i64: 1, 8, 1>}, {transform_indices = @transform_17, window_bounds = array<i64: 1, 8, 1>}]} {
    %c0 = arith.constant 0 : index
    %c0_0 = arith.constant 0 : index
    %0 = vector.load %arg1[%c0, %c0_0] : memref<8x256xf32, #tpu.memory_space<vmem>>, vector<8x256xf32>
    %c0_1 = arith.constant 0 : index
    %c0_2 = arith.constant 0 : index
    %1 = vector.load %arg2[%c0_1, %c0_2] : memref<1x256xi32, #tpu.memory_space<vmem>>, vector<1x256xi32>
    %c0_3 = arith.constant 0 : index
    %c0_4 = arith.constant 0 : index
    %2 = vector.load %arg3[%c0_3, %c0_4] : memref<1x256xi32, #tpu.memory_space<vmem>>, vector<1x256xi32>
    %c-1_i32 = arith.constant -1 : i32
    %3 = vector.broadcast %c-1_i32 : i32 to vector<1x256xi32>
    %4 = arith.addi %1, %3 : vector<1x256xi32>
    %c0_i32 = arith.constant 0 : i32
    %5 = vector.broadcast %c0_i32 : i32 to vector<1x256xi32>
    %6 = arith.cmpi sge, %4, %5 : vector<1x256xi32>
    %c-1_i32_5 = arith.constant -1 : i32
    %7 = vector.broadcast %c-1_i32_5 : i32 to vector<1x256xi32>
    %8 = arith.addi %1, %7 : vector<1x256xi32>
    %c16_i32 = arith.constant 16 : i32
    %9 = vector.broadcast %c16_i32 : i32 to vector<1x256xi32>
    %10 = arith.cmpi slt, %8, %9 : vector<1x256xi32>
    %11 = arith.andi %6, %10 : vector<1x256xi1>
    %c-1_i32_6 = arith.constant -1 : i32
    %12 = vector.broadcast %c-1_i32_6 : i32 to vector<1x256xi32>
    %13 = arith.addi %2, %12 : vector<1x256xi32>
    %c0_i32_7 = arith.constant 0 : i32
    %14 = vector.broadcast %c0_i32_7 : i32 to vector<1x256xi32>
    %15 = arith.cmpi sge, %13, %14 : vector<1x256xi32>
    %16 = arith.andi %11, %15 : vector<1x256xi1>
    %c-1_i32_8 = arith.constant -1 : i32
    %17 = vector.broadcast %c-1_i32_8 : i32 to vector<1x256xi32>
    %18 = arith.addi %2, %17 : vector<1x256xi32>
    %c16_i32_9 = arith.constant 16 : i32
    %19 = vector.broadcast %c16_i32_9 : i32 to vector<1x256xi32>
    %20 = arith.cmpi slt, %18, %19 : vector<1x256xi32>
    %21 = arith.andi %16, %20 : vector<1x256xi1>
    %22 = arith.extui %21 : vector<1x256xi1> to vector<1x256xi32>
    %23 = arith.sitofp %22 : vector<1x256xi32> to vector<1x256xf32>
    %c-1_i32_10 = arith.constant -1 : i32
    %24 = vector.broadcast %c-1_i32_10 : i32 to vector<1x256xi32>
    %25 = arith.addi %1, %24 : vector<1x256xi32>
    %c0_i32_11 = arith.constant 0 : i32
    %26 = vector.broadcast %c0_i32_11 : i32 to vector<1x256xi32>
    %27 = arith.cmpi sge, %25, %26 : vector<1x256xi32>
    %c-1_i32_12 = arith.constant -1 : i32
    %28 = vector.broadcast %c-1_i32_12 : i32 to vector<1x256xi32>
    %29 = arith.addi %1, %28 : vector<1x256xi32>
    %c16_i32_13 = arith.constant 16 : i32
    %30 = vector.broadcast %c16_i32_13 : i32 to vector<1x256xi32>
    %31 = arith.cmpi slt, %29, %30 : vector<1x256xi32>
    %32 = arith.andi %27, %31 : vector<1x256xi1>
    %c0_i32_14 = arith.constant 0 : i32
    %33 = vector.broadcast %c0_i32_14 : i32 to vector<1x256xi32>
    %34 = arith.addi %2, %33 : vector<1x256xi32>
    %c0_i32_15 = arith.constant 0 : i32
    %35 = vector.broadcast %c0_i32_15 : i32 to vector<1x256xi32>
    %36 = arith.cmpi sge, %34, %35 : vector<1x256xi32>
    %37 = arith.andi %32, %36 : vector<1x256xi1>
    %c0_i32_16 = arith.constant 0 : i32
    %38 = vector.broadcast %c0_i32_16 : i32 to vector<1x256xi32>
    %39 = arith.addi %2, %38 : vector<1x256xi32>
    %c16_i32_17 = arith.constant 16 : i32
    %40 = vector.broadcast %c16_i32_17 : i32 to vector<1x256xi32>
    %41 = arith.cmpi slt, %39, %40 : vector<1x256xi32>
    %42 = arith.andi %37, %41 : vector<1x256xi1>
    %43 = arith.extui %42 : vector<1x256xi1> to vector<1x256xi32>
    %44 = arith.sitofp %43 : vector<1x256xi32> to vector<1x256xf32>
    %c-1_i32_18 = arith.constant -1 : i32
    %45 = vector.broadcast %c-1_i32_18 : i32 to vector<1x256xi32>
    %46 = arith.addi %1, %45 : vector<1x256xi32>
    %c0_i32_19 = arith.constant 0 : i32
    %47 = vector.broadcast %c0_i32_19 : i32 to vector<1x256xi32>
    %48 = arith.cmpi sge, %46, %47 : vector<1x256xi32>
    %c-1_i32_20 = arith.constant -1 : i32
    %49 = vector.broadcast %c-1_i32_20 : i32 to vector<1x256xi32>
    %50 = arith.addi %1, %49 : vector<1x256xi32>
    %c16_i32_21 = arith.constant 16 : i32
    %51 = vector.broadcast %c16_i32_21 : i32 to vector<1x256xi32>
    %52 = arith.cmpi slt, %50, %51 : vector<1x256xi32>
    %53 = arith.andi %48, %52 : vector<1x256xi1>
    %c1_i32 = arith.constant 1 : i32
    %54 = vector.broadcast %c1_i32 : i32 to vector<1x256xi32>
    %55 = arith.addi %2, %54 : vector<1x256xi32>
    %c0_i32_22 = arith.constant 0 : i32
    %56 = vector.broadcast %c0_i32_22 : i32 to vector<1x256xi32>
    %57 = arith.cmpi sge, %55, %56 : vector<1x256xi32>
    %58 = arith.andi %53, %57 : vector<1x256xi1>
    %c1_i32_23 = arith.constant 1 : i32
    %59 = vector.broadcast %c1_i32_23 : i32 to vector<1x256xi32>
    %60 = arith.addi %2, %59 : vector<1x256xi32>
    %c16_i32_24 = arith.constant 16 : i32
    %61 = vector.broadcast %c16_i32_24 : i32 to vector<1x256xi32>
    %62 = arith.cmpi slt, %60, %61 : vector<1x256xi32>
    %63 = arith.andi %58, %62 : vector<1x256xi1>
    %64 = arith.extui %63 : vector<1x256xi1> to vector<1x256xi32>
    %65 = arith.sitofp %64 : vector<1x256xi32> to vector<1x256xf32>
    %c0_i32_25 = arith.constant 0 : i32
    %66 = vector.broadcast %c0_i32_25 : i32 to vector<1x256xi32>
    %67 = arith.addi %1, %66 : vector<1x256xi32>
    %c0_i32_26 = arith.constant 0 : i32
    %68 = vector.broadcast %c0_i32_26 : i32 to vector<1x256xi32>
    %69 = arith.cmpi sge, %67, %68 : vector<1x256xi32>
    %c0_i32_27 = arith.constant 0 : i32
    %70 = vector.broadcast %c0_i32_27 : i32 to vector<1x256xi32>
    %71 = arith.addi %1, %70 : vector<1x256xi32>
    %c16_i32_28 = arith.constant 16 : i32
    %72 = vector.broadcast %c16_i32_28 : i32 to vector<1x256xi32>
    %73 = arith.cmpi slt, %71, %72 : vector<1x256xi32>
    %74 = arith.andi %69, %73 : vector<1x256xi1>
    %c-1_i32_29 = arith.constant -1 : i32
    %75 = vector.broadcast %c-1_i32_29 : i32 to vector<1x256xi32>
    %76 = arith.addi %2, %75 : vector<1x256xi32>
    %c0_i32_30 = arith.constant 0 : i32
    %77 = vector.broadcast %c0_i32_30 : i32 to vector<1x256xi32>
    %78 = arith.cmpi sge, %76, %77 : vector<1x256xi32>
    %79 = arith.andi %74, %78 : vector<1x256xi1>
    %c-1_i32_31 = arith.constant -1 : i32
    %80 = vector.broadcast %c-1_i32_31 : i32 to vector<1x256xi32>
    %81 = arith.addi %2, %80 : vector<1x256xi32>
    %c16_i32_32 = arith.constant 16 : i32
    %82 = vector.broadcast %c16_i32_32 : i32 to vector<1x256xi32>
    %83 = arith.cmpi slt, %81, %82 : vector<1x256xi32>
    %84 = arith.andi %79, %83 : vector<1x256xi1>
    %85 = arith.extui %84 : vector<1x256xi1> to vector<1x256xi32>
    %86 = arith.sitofp %85 : vector<1x256xi32> to vector<1x256xf32>
    %c0_i32_33 = arith.constant 0 : i32
    %87 = vector.broadcast %c0_i32_33 : i32 to vector<1x256xi32>
    %88 = arith.addi %1, %87 : vector<1x256xi32>
    %c0_i32_34 = arith.constant 0 : i32
    %89 = vector.broadcast %c0_i32_34 : i32 to vector<1x256xi32>
    %90 = arith.cmpi sge, %88, %89 : vector<1x256xi32>
    %c0_i32_35 = arith.constant 0 : i32
    %91 = vector.broadcast %c0_i32_35 : i32 to vector<1x256xi32>
    %92 = arith.addi %1, %91 : vector<1x256xi32>
    %c16_i32_36 = arith.constant 16 : i32
    %93 = vector.broadcast %c16_i32_36 : i32 to vector<1x256xi32>
    %94 = arith.cmpi slt, %92, %93 : vector<1x256xi32>
    %95 = arith.andi %90, %94 : vector<1x256xi1>
    %c1_i32_37 = arith.constant 1 : i32
    %96 = vector.broadcast %c1_i32_37 : i32 to vector<1x256xi32>
    %97 = arith.addi %2, %96 : vector<1x256xi32>
    %c0_i32_38 = arith.constant 0 : i32
    %98 = vector.broadcast %c0_i32_38 : i32 to vector<1x256xi32>
    %99 = arith.cmpi sge, %97, %98 : vector<1x256xi32>
    %100 = arith.andi %95, %99 : vector<1x256xi1>
    %c1_i32_39 = arith.constant 1 : i32
    %101 = vector.broadcast %c1_i32_39 : i32 to vector<1x256xi32>
    %102 = arith.addi %2, %101 : vector<1x256xi32>
    %c16_i32_40 = arith.constant 16 : i32
    %103 = vector.broadcast %c16_i32_40 : i32 to vector<1x256xi32>
    %104 = arith.cmpi slt, %102, %103 : vector<1x256xi32>
    %105 = arith.andi %100, %104 : vector<1x256xi1>
    %106 = arith.extui %105 : vector<1x256xi1> to vector<1x256xi32>
    %107 = arith.sitofp %106 : vector<1x256xi32> to vector<1x256xf32>
    %c1_i32_41 = arith.constant 1 : i32
    %108 = vector.broadcast %c1_i32_41 : i32 to vector<1x256xi32>
    %109 = arith.addi %1, %108 : vector<1x256xi32>
    %c0_i32_42 = arith.constant 0 : i32
    %110 = vector.broadcast %c0_i32_42 : i32 to vector<1x256xi32>
    %111 = arith.cmpi sge, %109, %110 : vector<1x256xi32>
    %c1_i32_43 = arith.constant 1 : i32
    %112 = vector.broadcast %c1_i32_43 : i32 to vector<1x256xi32>
    %113 = arith.addi %1, %112 : vector<1x256xi32>
    %c16_i32_44 = arith.constant 16 : i32
    %114 = vector.broadcast %c16_i32_44 : i32 to vector<1x256xi32>
    %115 = arith.cmpi slt, %113, %114 : vector<1x256xi32>
    %116 = arith.andi %111, %115 : vector<1x256xi1>
    %c-1_i32_45 = arith.constant -1 : i32
    %117 = vector.broadcast %c-1_i32_45 : i32 to vector<1x256xi32>
    %118 = arith.addi %2, %117 : vector<1x256xi32>
    %c0_i32_46 = arith.constant 0 : i32
    %119 = vector.broadcast %c0_i32_46 : i32 to vector<1x256xi32>
    %120 = arith.cmpi sge, %118, %119 : vector<1x256xi32>
    %121 = arith.andi %116, %120 : vector<1x256xi1>
    %c-1_i32_47 = arith.constant -1 : i32
    %122 = vector.broadcast %c-1_i32_47 : i32 to vector<1x256xi32>
    %123 = arith.addi %2, %122 : vector<1x256xi32>
    %c16_i32_48 = arith.constant 16 : i32
    %124 = vector.broadcast %c16_i32_48 : i32 to vector<1x256xi32>
    %125 = arith.cmpi slt, %123, %124 : vector<1x256xi32>
    %126 = arith.andi %121, %125 : vector<1x256xi1>
    %127 = arith.extui %126 : vector<1x256xi1> to vector<1x256xi32>
    %128 = arith.sitofp %127 : vector<1x256xi32> to vector<1x256xf32>
    %c1_i32_49 = arith.constant 1 : i32
    %129 = vector.broadcast %c1_i32_49 : i32 to vector<1x256xi32>
    %130 = arith.addi %1, %129 : vector<1x256xi32>
    %c0_i32_50 = arith.constant 0 : i32
    %131 = vector.broadcast %c0_i32_50 : i32 to vector<1x256xi32>
    %132 = arith.cmpi sge, %130, %131 : vector<1x256xi32>
    %c1_i32_51 = arith.constant 1 : i32
    %133 = vector.broadcast %c1_i32_51 : i32 to vector<1x256xi32>
    %134 = arith.addi %1, %133 : vector<1x256xi32>
    %c16_i32_52 = arith.constant 16 : i32
    %135 = vector.broadcast %c16_i32_52 : i32 to vector<1x256xi32>
    %136 = arith.cmpi slt, %134, %135 : vector<1x256xi32>
    %137 = arith.andi %132, %136 : vector<1x256xi1>
    %c0_i32_53 = arith.constant 0 : i32
    %138 = vector.broadcast %c0_i32_53 : i32 to vector<1x256xi32>
    %139 = arith.addi %2, %138 : vector<1x256xi32>
    %c0_i32_54 = arith.constant 0 : i32
    %140 = vector.broadcast %c0_i32_54 : i32 to vector<1x256xi32>
    %141 = arith.cmpi sge, %139, %140 : vector<1x256xi32>
    %142 = arith.andi %137, %141 : vector<1x256xi1>
    %c0_i32_55 = arith.constant 0 : i32
    %143 = vector.broadcast %c0_i32_55 : i32 to vector<1x256xi32>
    %144 = arith.addi %2, %143 : vector<1x256xi32>
    %c16_i32_56 = arith.constant 16 : i32
    %145 = vector.broadcast %c16_i32_56 : i32 to vector<1x256xi32>
    %146 = arith.cmpi slt, %144, %145 : vector<1x256xi32>
    %147 = arith.andi %142, %146 : vector<1x256xi1>
    %148 = arith.extui %147 : vector<1x256xi1> to vector<1x256xi32>
    %149 = arith.sitofp %148 : vector<1x256xi32> to vector<1x256xf32>
    %c1_i32_57 = arith.constant 1 : i32
    %150 = vector.broadcast %c1_i32_57 : i32 to vector<1x256xi32>
    %151 = arith.addi %1, %150 : vector<1x256xi32>
    %c0_i32_58 = arith.constant 0 : i32
    %152 = vector.broadcast %c0_i32_58 : i32 to vector<1x256xi32>
    %153 = arith.cmpi sge, %151, %152 : vector<1x256xi32>
    %c1_i32_59 = arith.constant 1 : i32
    %154 = vector.broadcast %c1_i32_59 : i32 to vector<1x256xi32>
    %155 = arith.addi %1, %154 : vector<1x256xi32>
    %c16_i32_60 = arith.constant 16 : i32
    %156 = vector.broadcast %c16_i32_60 : i32 to vector<1x256xi32>
    %157 = arith.cmpi slt, %155, %156 : vector<1x256xi32>
    %158 = arith.andi %153, %157 : vector<1x256xi1>
    %c1_i32_61 = arith.constant 1 : i32
    %159 = vector.broadcast %c1_i32_61 : i32 to vector<1x256xi32>
    %160 = arith.addi %2, %159 : vector<1x256xi32>
    %c0_i32_62 = arith.constant 0 : i32
    %161 = vector.broadcast %c0_i32_62 : i32 to vector<1x256xi32>
    %162 = arith.cmpi sge, %160, %161 : vector<1x256xi32>
    %163 = arith.andi %158, %162 : vector<1x256xi1>
    %c1_i32_63 = arith.constant 1 : i32
    %164 = vector.broadcast %c1_i32_63 : i32 to vector<1x256xi32>
    %165 = arith.addi %2, %164 : vector<1x256xi32>
    %c16_i32_64 = arith.constant 16 : i32
    %166 = vector.broadcast %c16_i32_64 : i32 to vector<1x256xi32>
    %167 = arith.cmpi slt, %165, %166 : vector<1x256xi32>
    %168 = arith.andi %163, %167 : vector<1x256xi1>
    %169 = arith.extui %168 : vector<1x256xi1> to vector<1x256xi32>
    %170 = arith.sitofp %169 : vector<1x256xi32> to vector<1x256xf32>
    %c-3_i32 = arith.constant -3 : i32
    %171 = vector.broadcast %c-3_i32 : i32 to vector<1x256xi32>
    %172 = arith.addi %1, %171 : vector<1x256xi32>
    %c0_i32_65 = arith.constant 0 : i32
    %173 = vector.broadcast %c0_i32_65 : i32 to vector<1x256xi32>
    %174 = arith.cmpi sge, %172, %173 : vector<1x256xi32>
    %c-3_i32_66 = arith.constant -3 : i32
    %175 = vector.broadcast %c-3_i32_66 : i32 to vector<1x256xi32>
    %176 = arith.addi %1, %175 : vector<1x256xi32>
    %c16_i32_67 = arith.constant 16 : i32
    %177 = vector.broadcast %c16_i32_67 : i32 to vector<1x256xi32>
    %178 = arith.cmpi slt, %176, %177 : vector<1x256xi32>
    %179 = arith.andi %174, %178 : vector<1x256xi1>
    %c-3_i32_68 = arith.constant -3 : i32
    %180 = vector.broadcast %c-3_i32_68 : i32 to vector<1x256xi32>
    %181 = arith.addi %2, %180 : vector<1x256xi32>
    %c0_i32_69 = arith.constant 0 : i32
    %182 = vector.broadcast %c0_i32_69 : i32 to vector<1x256xi32>
    %183 = arith.cmpi sge, %181, %182 : vector<1x256xi32>
    %184 = arith.andi %179, %183 : vector<1x256xi1>
    %c-3_i32_70 = arith.constant -3 : i32
    %185 = vector.broadcast %c-3_i32_70 : i32 to vector<1x256xi32>
    %186 = arith.addi %2, %185 : vector<1x256xi32>
    %c16_i32_71 = arith.constant 16 : i32
    %187 = vector.broadcast %c16_i32_71 : i32 to vector<1x256xi32>
    %188 = arith.cmpi slt, %186, %187 : vector<1x256xi32>
    %189 = arith.andi %184, %188 : vector<1x256xi1>
    %190 = arith.extui %189 : vector<1x256xi1> to vector<1x256xi32>
    %191 = arith.sitofp %190 : vector<1x256xi32> to vector<1x256xf32>
    %c-3_i32_72 = arith.constant -3 : i32
    %192 = vector.broadcast %c-3_i32_72 : i32 to vector<1x256xi32>
    %193 = arith.addi %1, %192 : vector<1x256xi32>
    %c0_i32_73 = arith.constant 0 : i32
    %194 = vector.broadcast %c0_i32_73 : i32 to vector<1x256xi32>
    %195 = arith.cmpi sge, %193, %194 : vector<1x256xi32>
    %c-3_i32_74 = arith.constant -3 : i32
    %196 = vector.broadcast %c-3_i32_74 : i32 to vector<1x256xi32>
    %197 = arith.addi %1, %196 : vector<1x256xi32>
    %c16_i32_75 = arith.constant 16 : i32
    %198 = vector.broadcast %c16_i32_75 : i32 to vector<1x256xi32>
    %199 = arith.cmpi slt, %197, %198 : vector<1x256xi32>
    %200 = arith.andi %195, %199 : vector<1x256xi1>
    %c0_i32_76 = arith.constant 0 : i32
    %201 = vector.broadcast %c0_i32_76 : i32 to vector<1x256xi32>
    %202 = arith.addi %2, %201 : vector<1x256xi32>
    %c0_i32_77 = arith.constant 0 : i32
    %203 = vector.broadcast %c0_i32_77 : i32 to vector<1x256xi32>
    %204 = arith.cmpi sge, %202, %203 : vector<1x256xi32>
    %205 = arith.andi %200, %204 : vector<1x256xi1>
    %c0_i32_78 = arith.constant 0 : i32
    %206 = vector.broadcast %c0_i32_78 : i32 to vector<1x256xi32>
    %207 = arith.addi %2, %206 : vector<1x256xi32>
    %c16_i32_79 = arith.constant 16 : i32
    %208 = vector.broadcast %c16_i32_79 : i32 to vector<1x256xi32>
    %209 = arith.cmpi slt, %207, %208 : vector<1x256xi32>
    %210 = arith.andi %205, %209 : vector<1x256xi1>
    %211 = arith.extui %210 : vector<1x256xi1> to vector<1x256xi32>
    %212 = arith.sitofp %211 : vector<1x256xi32> to vector<1x256xf32>
    %c-3_i32_80 = arith.constant -3 : i32
    %213 = vector.broadcast %c-3_i32_80 : i32 to vector<1x256xi32>
    %214 = arith.addi %1, %213 : vector<1x256xi32>
    %c0_i32_81 = arith.constant 0 : i32
    %215 = vector.broadcast %c0_i32_81 : i32 to vector<1x256xi32>
    %216 = arith.cmpi sge, %214, %215 : vector<1x256xi32>
    %c-3_i32_82 = arith.constant -3 : i32
    %217 = vector.broadcast %c-3_i32_82 : i32 to vector<1x256xi32>
    %218 = arith.addi %1, %217 : vector<1x256xi32>
    %c16_i32_83 = arith.constant 16 : i32
    %219 = vector.broadcast %c16_i32_83 : i32 to vector<1x256xi32>
    %220 = arith.cmpi slt, %218, %219 : vector<1x256xi32>
    %221 = arith.andi %216, %220 : vector<1x256xi1>
    %c3_i32 = arith.constant 3 : i32
    %222 = vector.broadcast %c3_i32 : i32 to vector<1x256xi32>
    %223 = arith.addi %2, %222 : vector<1x256xi32>
    %c0_i32_84 = arith.constant 0 : i32
    %224 = vector.broadcast %c0_i32_84 : i32 to vector<1x256xi32>
    %225 = arith.cmpi sge, %223, %224 : vector<1x256xi32>
    %226 = arith.andi %221, %225 : vector<1x256xi1>
    %c3_i32_85 = arith.constant 3 : i32
    %227 = vector.broadcast %c3_i32_85 : i32 to vector<1x256xi32>
    %228 = arith.addi %2, %227 : vector<1x256xi32>
    %c16_i32_86 = arith.constant 16 : i32
    %229 = vector.broadcast %c16_i32_86 : i32 to vector<1x256xi32>
    %230 = arith.cmpi slt, %228, %229 : vector<1x256xi32>
    %231 = arith.andi %226, %230 : vector<1x256xi1>
    %232 = arith.extui %231 : vector<1x256xi1> to vector<1x256xi32>
    %233 = arith.sitofp %232 : vector<1x256xi32> to vector<1x256xf32>
    %c0_i32_87 = arith.constant 0 : i32
    %234 = vector.broadcast %c0_i32_87 : i32 to vector<1x256xi32>
    %235 = arith.addi %1, %234 : vector<1x256xi32>
    %c0_i32_88 = arith.constant 0 : i32
    %236 = vector.broadcast %c0_i32_88 : i32 to vector<1x256xi32>
    %237 = arith.cmpi sge, %235, %236 : vector<1x256xi32>
    %c0_i32_89 = arith.constant 0 : i32
    %238 = vector.broadcast %c0_i32_89 : i32 to vector<1x256xi32>
    %239 = arith.addi %1, %238 : vector<1x256xi32>
    %c16_i32_90 = arith.constant 16 : i32
    %240 = vector.broadcast %c16_i32_90 : i32 to vector<1x256xi32>
    %241 = arith.cmpi slt, %239, %240 : vector<1x256xi32>
    %242 = arith.andi %237, %241 : vector<1x256xi1>
    %c-3_i32_91 = arith.constant -3 : i32
    %243 = vector.broadcast %c-3_i32_91 : i32 to vector<1x256xi32>
    %244 = arith.addi %2, %243 : vector<1x256xi32>
    %c0_i32_92 = arith.constant 0 : i32
    %245 = vector.broadcast %c0_i32_92 : i32 to vector<1x256xi32>
    %246 = arith.cmpi sge, %244, %245 : vector<1x256xi32>
    %247 = arith.andi %242, %246 : vector<1x256xi1>
    %c-3_i32_93 = arith.constant -3 : i32
    %248 = vector.broadcast %c-3_i32_93 : i32 to vector<1x256xi32>
    %249 = arith.addi %2, %248 : vector<1x256xi32>
    %c16_i32_94 = arith.constant 16 : i32
    %250 = vector.broadcast %c16_i32_94 : i32 to vector<1x256xi32>
    %251 = arith.cmpi slt, %249, %250 : vector<1x256xi32>
    %252 = arith.andi %247, %251 : vector<1x256xi1>
    %253 = arith.extui %252 : vector<1x256xi1> to vector<1x256xi32>
    %254 = arith.sitofp %253 : vector<1x256xi32> to vector<1x256xf32>
    %c0_i32_95 = arith.constant 0 : i32
    %255 = vector.broadcast %c0_i32_95 : i32 to vector<1x256xi32>
    %256 = arith.addi %1, %255 : vector<1x256xi32>
    %c0_i32_96 = arith.constant 0 : i32
    %257 = vector.broadcast %c0_i32_96 : i32 to vector<1x256xi32>
    %258 = arith.cmpi sge, %256, %257 : vector<1x256xi32>
    %c0_i32_97 = arith.constant 0 : i32
    %259 = vector.broadcast %c0_i32_97 : i32 to vector<1x256xi32>
    %260 = arith.addi %1, %259 : vector<1x256xi32>
    %c16_i32_98 = arith.constant 16 : i32
    %261 = vector.broadcast %c16_i32_98 : i32 to vector<1x256xi32>
    %262 = arith.cmpi slt, %260, %261 : vector<1x256xi32>
    %263 = arith.andi %258, %262 : vector<1x256xi1>
    %c3_i32_99 = arith.constant 3 : i32
    %264 = vector.broadcast %c3_i32_99 : i32 to vector<1x256xi32>
    %265 = arith.addi %2, %264 : vector<1x256xi32>
    %c0_i32_100 = arith.constant 0 : i32
    %266 = vector.broadcast %c0_i32_100 : i32 to vector<1x256xi32>
    %267 = arith.cmpi sge, %265, %266 : vector<1x256xi32>
    %268 = arith.andi %263, %267 : vector<1x256xi1>
    %c3_i32_101 = arith.constant 3 : i32
    %269 = vector.broadcast %c3_i32_101 : i32 to vector<1x256xi32>
    %270 = arith.addi %2, %269 : vector<1x256xi32>
    %c16_i32_102 = arith.constant 16 : i32
    %271 = vector.broadcast %c16_i32_102 : i32 to vector<1x256xi32>
    %272 = arith.cmpi slt, %270, %271 : vector<1x256xi32>
    %273 = arith.andi %268, %272 : vector<1x256xi1>
    %274 = arith.extui %273 : vector<1x256xi1> to vector<1x256xi32>
    %275 = arith.sitofp %274 : vector<1x256xi32> to vector<1x256xf32>
    %c3_i32_103 = arith.constant 3 : i32
    %276 = vector.broadcast %c3_i32_103 : i32 to vector<1x256xi32>
    %277 = arith.addi %1, %276 : vector<1x256xi32>
    %c0_i32_104 = arith.constant 0 : i32
    %278 = vector.broadcast %c0_i32_104 : i32 to vector<1x256xi32>
    %279 = arith.cmpi sge, %277, %278 : vector<1x256xi32>
    %c3_i32_105 = arith.constant 3 : i32
    %280 = vector.broadcast %c3_i32_105 : i32 to vector<1x256xi32>
    %281 = arith.addi %1, %280 : vector<1x256xi32>
    %c16_i32_106 = arith.constant 16 : i32
    %282 = vector.broadcast %c16_i32_106 : i32 to vector<1x256xi32>
    %283 = arith.cmpi slt, %281, %282 : vector<1x256xi32>
    %284 = arith.andi %279, %283 : vector<1x256xi1>
    %c-3_i32_107 = arith.constant -3 : i32
    %285 = vector.broadcast %c-3_i32_107 : i32 to vector<1x256xi32>
    %286 = arith.addi %2, %285 : vector<1x256xi32>
    %c0_i32_108 = arith.constant 0 : i32
    %287 = vector.broadcast %c0_i32_108 : i32 to vector<1x256xi32>
    %288 = arith.cmpi sge, %286, %287 : vector<1x256xi32>
    %289 = arith.andi %284, %288 : vector<1x256xi1>
    %c-3_i32_109 = arith.constant -3 : i32
    %290 = vector.broadcast %c-3_i32_109 : i32 to vector<1x256xi32>
    %291 = arith.addi %2, %290 : vector<1x256xi32>
    %c16_i32_110 = arith.constant 16 : i32
    %292 = vector.broadcast %c16_i32_110 : i32 to vector<1x256xi32>
    %293 = arith.cmpi slt, %291, %292 : vector<1x256xi32>
    %294 = arith.andi %289, %293 : vector<1x256xi1>
    %295 = arith.extui %294 : vector<1x256xi1> to vector<1x256xi32>
    %296 = arith.sitofp %295 : vector<1x256xi32> to vector<1x256xf32>
    %c3_i32_111 = arith.constant 3 : i32
    %297 = vector.broadcast %c3_i32_111 : i32 to vector<1x256xi32>
    %298 = arith.addi %1, %297 : vector<1x256xi32>
    %c0_i32_112 = arith.constant 0 : i32
    %299 = vector.broadcast %c0_i32_112 : i32 to vector<1x256xi32>
    %300 = arith.cmpi sge, %298, %299 : vector<1x256xi32>
    %c3_i32_113 = arith.constant 3 : i32
    %301 = vector.broadcast %c3_i32_113 : i32 to vector<1x256xi32>
    %302 = arith.addi %1, %301 : vector<1x256xi32>
    %c16_i32_114 = arith.constant 16 : i32
    %303 = vector.broadcast %c16_i32_114 : i32 to vector<1x256xi32>
    %304 = arith.cmpi slt, %302, %303 : vector<1x256xi32>
    %305 = arith.andi %300, %304 : vector<1x256xi1>
    %c0_i32_115 = arith.constant 0 : i32
    %306 = vector.broadcast %c0_i32_115 : i32 to vector<1x256xi32>
    %307 = arith.addi %2, %306 : vector<1x256xi32>
    %c0_i32_116 = arith.constant 0 : i32
    %308 = vector.broadcast %c0_i32_116 : i32 to vector<1x256xi32>
    %309 = arith.cmpi sge, %307, %308 : vector<1x256xi32>
    %310 = arith.andi %305, %309 : vector<1x256xi1>
    %c0_i32_117 = arith.constant 0 : i32
    %311 = vector.broadcast %c0_i32_117 : i32 to vector<1x256xi32>
    %312 = arith.addi %2, %311 : vector<1x256xi32>
    %c16_i32_118 = arith.constant 16 : i32
    %313 = vector.broadcast %c16_i32_118 : i32 to vector<1x256xi32>
    %314 = arith.cmpi slt, %312, %313 : vector<1x256xi32>
    %315 = arith.andi %310, %314 : vector<1x256xi1>
    %316 = arith.extui %315 : vector<1x256xi1> to vector<1x256xi32>
    %317 = arith.sitofp %316 : vector<1x256xi32> to vector<1x256xf32>
    %c3_i32_119 = arith.constant 3 : i32
    %318 = vector.broadcast %c3_i32_119 : i32 to vector<1x256xi32>
    %319 = arith.addi %1, %318 : vector<1x256xi32>
    %c0_i32_120 = arith.constant 0 : i32
    %320 = vector.broadcast %c0_i32_120 : i32 to vector<1x256xi32>
    %321 = arith.cmpi sge, %319, %320 : vector<1x256xi32>
    %c3_i32_121 = arith.constant 3 : i32
    %322 = vector.broadcast %c3_i32_121 : i32 to vector<1x256xi32>
    %323 = arith.addi %1, %322 : vector<1x256xi32>
    %c16_i32_122 = arith.constant 16 : i32
    %324 = vector.broadcast %c16_i32_122 : i32 to vector<1x256xi32>
    %325 = arith.cmpi slt, %323, %324 : vector<1x256xi32>
    %326 = arith.andi %321, %325 : vector<1x256xi1>
    %c3_i32_123 = arith.constant 3 : i32
    %327 = vector.broadcast %c3_i32_123 : i32 to vector<1x256xi32>
    %328 = arith.addi %2, %327 : vector<1x256xi32>
    %c0_i32_124 = arith.constant 0 : i32
    %329 = vector.broadcast %c0_i32_124 : i32 to vector<1x256xi32>
    %330 = arith.cmpi sge, %328, %329 : vector<1x256xi32>
    %331 = arith.andi %326, %330 : vector<1x256xi1>
    %c3_i32_125 = arith.constant 3 : i32
    %332 = vector.broadcast %c3_i32_125 : i32 to vector<1x256xi32>
    %333 = arith.addi %2, %332 : vector<1x256xi32>
    %c16_i32_126 = arith.constant 16 : i32
    %334 = vector.broadcast %c16_i32_126 : i32 to vector<1x256xi32>
    %335 = arith.cmpi slt, %333, %334 : vector<1x256xi32>
    %336 = arith.andi %331, %335 : vector<1x256xi1>
    %337 = arith.extui %336 : vector<1x256xi1> to vector<1x256xi32>
    %338 = arith.sitofp %337 : vector<1x256xi32> to vector<1x256xf32>
    %c0_127 = arith.constant 0 : index
    %c0_128 = arith.constant 0 : index
    %339 = vector.load %arg4[%c0_127, %c0_128] : memref<8x1xf32, #tpu.memory_space<vmem>>, vector<8x1xf32>
    %340 = vector.broadcast %339 : vector<8x1xf32> to vector<8x256xf32>
    %341 = arith.mulf %0, %340 : vector<8x256xf32>
    %c0_129 = arith.constant 0 : index
    %c0_130 = arith.constant 0 : index
    %342 = vector.load %arg5[%c0_129, %c0_130] : memref<8x1xf32, #tpu.memory_space<vmem>>, vector<8x1xf32>
    %343 = vector.broadcast %342 : vector<8x1xf32> to vector<8x256xf32>
    %344 = arith.addf %341, %343 : vector<8x256xf32>
    %c17_i32 = arith.constant 17 : i32
    %345 = tpu.dynamic_rotate %344 by %c17_i32 dim 1 : vector<8x256xf32>, i32 -> vector<8x256xf32>
    %346 = vector.broadcast %23 : vector<1x256xf32> to vector<8x256xf32>
    %347 = arith.mulf %345, %346 : vector<8x256xf32>
    %348 = arith.truncf %347 : vector<8x256xf32> to vector<8x256xbf16>
    %c0_131 = arith.constant 0 : index
    %c0_132 = arith.constant 0 : index
    %349 = vector.load %arg19[%c0_131, %c0_132] : memref<72x256xbf16, #tpu.memory_space<vmem>>, vector<8x256xbf16>
    tpu.vector_store %arg19[%c0_131, %c0_132], %348 {strides = array<i32>} : memref<72x256xbf16, #tpu.memory_space<vmem>>, vector<8x256xbf16>,
    %c16_i32_133 = arith.constant 16 : i32
    %350 = tpu.dynamic_rotate %344 by %c16_i32_133 dim 1 : vector<8x256xf32>, i32 -> vector<8x256xf32>
    %351 = vector.broadcast %44 : vector<1x256xf32> to vector<8x256xf32>
    %352 = arith.mulf %350, %351 : vector<8x256xf32>
    %353 = arith.truncf %352 : vector<8x256xf32> to vector<8x256xbf16>
    %c8 = arith.constant 8 : index
    %c0_134 = arith.constant 0 : index
    %354 = vector.load %arg19[%c8, %c0_134] : memref<72x256xbf16, #tpu.memory_space<vmem>>, vector<8x256xbf16>
    tpu.vector_store %arg19[%c8, %c0_134], %353 {strides = array<i32>} : memref<72x256xbf16, #tpu.memory_space<vmem>>, vector<8x256xbf16>,
    %c15_i32 = arith.constant 15 : i32
    %355 = tpu.dynamic_rotate %344 by %c15_i32 dim 1 : vector<8x256xf32>, i32 -> vector<8x256xf32>
    %356 = vector.broadcast %65 : vector<1x256xf32> to vector<8x256xf32>
    %357 = arith.mulf %355, %356 : vector<8x256xf32>
    %358 = arith.truncf %357 : vector<8x256xf32> to vector<8x256xbf16>
    %c16 = arith.constant 16 : index
    %c0_135 = arith.constant 0 : index
    %359 = vector.load %arg19[%c16, %c0_135] : memref<72x256xbf16, #tpu.memory_space<vmem>>, vector<8x256xbf16>
    tpu.vector_store %arg19[%c16, %c0_135], %358 {strides = array<i32>} : memref<72x256xbf16, #tpu.memory_space<vmem>>, vector<8x256xbf16>,
    %c1_i32_136 = arith.constant 1 : i32
    %360 = tpu.dynamic_rotate %344 by %c1_i32_136 dim 1 : vector<8x256xf32>, i32 -> vector<8x256xf32>
    %361 = vector.broadcast %86 : vector<1x256xf32> to vector<8x256xf32>
    %362 = arith.mulf %360, %361 : vector<8x256xf32>
    %363 = arith.truncf %362 : vector<8x256xf32> to vector<8x256xbf16>
    %c24 = arith.constant 24 : index
    %c0_137 = arith.constant 0 : index
    %364 = vector.load %arg19[%c24, %c0_137] : memref<72x256xbf16, #tpu.memory_space<vmem>>, vector<8x256xbf16>
    tpu.vector_store %arg19[%c24, %c0_137], %363 {strides = array<i32>} : memref<72x256xbf16, #tpu.memory_space<vmem>>, vector<8x256xbf16>,
    %365 = arith.truncf %344 : vector<8x256xf32> to vector<8x256xbf16>
    %c32 = arith.constant 32 : index
    %c0_138 = arith.constant 0 : index
    %366 = vector.load %arg19[%c32, %c0_138] : memref<72x256xbf16, #tpu.memory_space<vmem>>, vector<8x256xbf16>
    tpu.vector_store %arg19[%c32, %c0_138], %365 {strides = array<i32>} : memref<72x256xbf16, #tpu.memory_space<vmem>>, vector<8x256xbf16>,
    %c255_i32 = arith.constant 255 : i32
    %367 = tpu.dynamic_rotate %344 by %c255_i32 dim 1 : vector<8x256xf32>, i32 -> vector<8x256xf32>
    %368 = vector.broadcast %107 : vector<1x256xf32> to vector<8x256xf32>
    %369 = arith.mulf %367, %368 : vector<8x256xf32>
    %370 = arith.truncf %369 : vector<8x256xf32> to vector<8x256xbf16>
    %c40 = arith.constant 40 : index
    %c0_139 = arith.constant 0 : index
    %371 = vector.load %arg19[%c40, %c0_139] : memref<72x256xbf16, #tpu.memory_space<vmem>>, vector<8x256xbf16>
    tpu.vector_store %arg19[%c40, %c0_139], %370 {strides = array<i32>} : memref<72x256xbf16, #tpu.memory_space<vmem>>, vector<8x256xbf16>,
    %c241_i32 = arith.constant 241 : i32
    %372 = tpu.dynamic_rotate %344 by %c241_i32 dim 1 : vector<8x256xf32>, i32 -> vector<8x256xf32>
    %373 = vector.broadcast %128 : vector<1x256xf32> to vector<8x256xf32>
    %374 = arith.mulf %372, %373 : vector<8x256xf32>
    %375 = arith.truncf %374 : vector<8x256xf32> to vector<8x256xbf16>
    %c48 = arith.constant 48 : index
    %c0_140 = arith.constant 0 : index
    %376 = vector.load %arg19[%c48, %c0_140] : memref<72x256xbf16, #tpu.memory_space<vmem>>, vector<8x256xbf16>
    tpu.vector_store %arg19[%c48, %c0_140], %375 {strides = array<i32>} : memref<72x256xbf16, #tpu.memory_space<vmem>>, vector<8x256xbf16>,
    %c240_i32 = arith.constant 240 : i32
    %377 = tpu.dynamic_rotate %344 by %c240_i32 dim 1 : vector<8x256xf32>, i32 -> vector<8x256xf32>
    %378 = vector.broadcast %149 : vector<1x256xf32> to vector<8x256xf32>
    %379 = arith.mulf %377, %378 : vector<8x256xf32>
    %380 = arith.truncf %379 : vector<8x256xf32> to vector<8x256xbf16>
    %c56 = arith.constant 56 : index
    %c0_141 = arith.constant 0 : index
    %381 = vector.load %arg19[%c56, %c0_141] : memref<72x256xbf16, #tpu.memory_space<vmem>>, vector<8x256xbf16>
    tpu.vector_store %arg19[%c56, %c0_141], %380 {strides = array<i32>} : memref<72x256xbf16, #tpu.memory_space<vmem>>, vector<8x256xbf16>,
    %c239_i32 = arith.constant 239 : i32
    %382 = tpu.dynamic_rotate %344 by %c239_i32 dim 1 : vector<8x256xf32>, i32 -> vector<8x256xf32>
    %383 = vector.broadcast %170 : vector<1x256xf32> to vector<8x256xf32>
    %384 = arith.mulf %382, %383 : vector<8x256xf32>
    %385 = arith.truncf %384 : vector<8x256xf32> to vector<8x256xbf16>
    %c64 = arith.constant 64 : index
    %c0_142 = arith.constant 0 : index
    %386 = vector.load %arg19[%c64, %c0_142] : memref<72x256xbf16, #tpu.memory_space<vmem>>, vector<8x256xbf16>
    tpu.vector_store %arg19[%c64, %c0_142], %385 {strides = array<i32>} : memref<72x256xbf16, #tpu.memory_space<vmem>>, vector<8x256xbf16>,
    %c0_143 = arith.constant 0 : index
    %c0_144 = arith.constant 0 : index
    %387 = vector.load %arg6[%c0_143, %c0_144] : memref<8x72xbf16, #tpu.memory_space<vmem>>, vector<8x72xbf16>
    %c0_145 = arith.constant 0 : index
    %c0_146 = arith.constant 0 : index
    %388 = vector.load %arg19[%c0_145, %c0_146] : memref<72x256xbf16, #tpu.memory_space<vmem>>, vector<72x256xbf16>
    %cst = arith.constant dense<0.000000e+00> : vector<8x256xf32>
    %389 = tpu.matmul %387, %388, %cst {dimension_numbers = #tpu.dot_dimension_numbers<[1], [0], [0], [1], [0, 0, 1, 1], [], []>} : vector<8x72xbf16>, vector<72x256xbf16>, vector<8x256xf32> -> vector<8x256xf32>
    %c0_147 = arith.constant 0 : index
    %c0_148 = arith.constant 0 : index
    %390 = vector.load %arg7[%c0_147, %c0_148] : memref<8x1xf32, #tpu.memory_space<vmem>>, vector<8x1xf32>
    %391 = vector.broadcast %390 : vector<8x1xf32> to vector<8x256xf32>
    %392 = arith.addf %389, %391 : vector<8x256xf32>
    %cst_149 = arith.constant 5.000000e-01 : f32
    %393 = vector.broadcast %cst_149 : f32 to vector<8x256xf32>
    %394 = arith.mulf %393, %392 : vector<8x256xf32>
    %cst_150 = arith.constant 4.471500e-02 : f32
    %395 = vector.broadcast %cst_150 : f32 to vector<8x256xf32>
    %396 = arith.mulf %395, %392 : vector<8x256xf32>
    %397 = arith.mulf %396, %392 : vector<8x256xf32>
    %398 = arith.mulf %397, %392 : vector<8x256xf32>
    %399 = arith.addf %392, %398 : vector<8x256xf32>
    %cst_151 = arith.constant 0.797884583 : f32
    %400 = vector.broadcast %cst_151 : f32 to vector<8x256xf32>
    %401 = arith.mulf %400, %399 : vector<8x256xf32>
    %402 = math.tanh %401 : vector<8x256xf32>
    %cst_152 = arith.constant 1.000000e+00 : f32
    %403 = vector.broadcast %cst_152 : f32 to vector<8x256xf32>
    %404 = arith.addf %403, %402 : vector<8x256xf32>
    %405 = arith.mulf %394, %404 : vector<8x256xf32>
    %c17_i32_153 = arith.constant 17 : i32
    %406 = tpu.dynamic_rotate %405 by %c17_i32_153 dim 1 : vector<8x256xf32>, i32 -> vector<8x256xf32>
    %407 = vector.broadcast %23 : vector<1x256xf32> to vector<8x256xf32>
    %408 = arith.mulf %406, %407 : vector<8x256xf32>
    %409 = arith.truncf %408 : vector<8x256xf32> to vector<8x256xbf16>
    %c0_154 = arith.constant 0 : index
    %c0_155 = arith.constant 0 : index
    %410 = vector.load %arg19[%c0_154, %c0_155] : memref<72x256xbf16, #tpu.memory_space<vmem>>, vector<8x256xbf16>
    tpu.vector_store %arg19[%c0_154, %c0_155], %409 {strides = array<i32>} : memref<72x256xbf16, #tpu.memory_space<vmem>>, vector<8x256xbf16>,
    %c16_i32_156 = arith.constant 16 : i32
    %411 = tpu.dynamic_rotate %405 by %c16_i32_156 dim 1 : vector<8x256xf32>, i32 -> vector<8x256xf32>
    %412 = vector.broadcast %44 : vector<1x256xf32> to vector<8x256xf32>
    %413 = arith.mulf %411, %412 : vector<8x256xf32>
    %414 = arith.truncf %413 : vector<8x256xf32> to vector<8x256xbf16>
    %c8_157 = arith.constant 8 : index
    %c0_158 = arith.constant 0 : index
    %415 = vector.load %arg19[%c8_157, %c0_158] : memref<72x256xbf16, #tpu.memory_space<vmem>>, vector<8x256xbf16>
    tpu.vector_store %arg19[%c8_157, %c0_158], %414 {strides = array<i32>} : memref<72x256xbf16, #tpu.memory_space<vmem>>, vector<8x256xbf16>,
    %c15_i32_159 = arith.constant 15 : i32
    %416 = tpu.dynamic_rotate %405 by %c15_i32_159 dim 1 : vector<8x256xf32>, i32 -> vector<8x256xf32>
    %417 = vector.broadcast %65 : vector<1x256xf32> to vector<8x256xf32>
    %418 = arith.mulf %416, %417 : vector<8x256xf32>
    %419 = arith.truncf %418 : vector<8x256xf32> to vector<8x256xbf16>
    %c16_160 = arith.constant 16 : index
    %c0_161 = arith.constant 0 : index
    %420 = vector.load %arg19[%c16_160, %c0_161] : memref<72x256xbf16, #tpu.memory_space<vmem>>, vector<8x256xbf16>
    tpu.vector_store %arg19[%c16_160, %c0_161], %419 {strides = array<i32>} : memref<72x256xbf16, #tpu.memory_space<vmem>>, vector<8x256xbf16>,
    %c1_i32_162 = arith.constant 1 : i32
    %421 = tpu.dynamic_rotate %405 by %c1_i32_162 dim 1 : vector<8x256xf32>, i32 -> vector<8x256xf32>
    %422 = vector.broadcast %86 : vector<1x256xf32> to vector<8x256xf32>
    %423 = arith.mulf %421, %422 : vector<8x256xf32>
    %424 = arith.truncf %423 : vector<8x256xf32> to vector<8x256xbf16>
    %c24_163 = arith.constant 24 : index
    %c0_164 = arith.constant 0 : index
    %425 = vector.load %arg19[%c24_163, %c0_164] : memref<72x256xbf16, #tpu.memory_space<vmem>>, vector<8x256xbf16>
    tpu.vector_store %arg19[%c24_163, %c0_164], %424 {strides = array<i32>} : memref<72x256xbf16, #tpu.memory_space<vmem>>, vector<8x256xbf16>,
    %426 = arith.truncf %405 : vector<8x256xf32> to vector<8x256xbf16>
    %c32_165 = arith.constant 32 : index
    %c0_166 = arith.constant 0 : index
    %427 = vector.load %arg19[%c32_165, %c0_166] : memref<72x256xbf16, #tpu.memory_space<vmem>>, vector<8x256xbf16>
    tpu.vector_store %arg19[%c32_165, %c0_166], %426 {strides = array<i32>} : memref<72x256xbf16, #tpu.memory_space<vmem>>, vector<8x256xbf16>,
    %c255_i32_167 = arith.constant 255 : i32
    %428 = tpu.dynamic_rotate %405 by %c255_i32_167 dim 1 : vector<8x256xf32>, i32 -> vector<8x256xf32>
    %429 = vector.broadcast %107 : vector<1x256xf32> to vector<8x256xf32>
    %430 = arith.mulf %428, %429 : vector<8x256xf32>
    %431 = arith.truncf %430 : vector<8x256xf32> to vector<8x256xbf16>
    %c40_168 = arith.constant 40 : index
    %c0_169 = arith.constant 0 : index
    %432 = vector.load %arg19[%c40_168, %c0_169] : memref<72x256xbf16, #tpu.memory_space<vmem>>, vector<8x256xbf16>
    tpu.vector_store %arg19[%c40_168, %c0_169], %431 {strides = array<i32>} : memref<72x256xbf16, #tpu.memory_space<vmem>>, vector<8x256xbf16>,
    %c241_i32_170 = arith.constant 241 : i32
    %433 = tpu.dynamic_rotate %405 by %c241_i32_170 dim 1 : vector<8x256xf32>, i32 -> vector<8x256xf32>
    %434 = vector.broadcast %128 : vector<1x256xf32> to vector<8x256xf32>
    %435 = arith.mulf %433, %434 : vector<8x256xf32>
    %436 = arith.truncf %435 : vector<8x256xf32> to vector<8x256xbf16>
    %c48_171 = arith.constant 48 : index
    %c0_172 = arith.constant 0 : index
    %437 = vector.load %arg19[%c48_171, %c0_172] : memref<72x256xbf16, #tpu.memory_space<vmem>>, vector<8x256xbf16>
    tpu.vector_store %arg19[%c48_171, %c0_172], %436 {strides = array<i32>} : memref<72x256xbf16, #tpu.memory_space<vmem>>, vector<8x256xbf16>,
    %c240_i32_173 = arith.constant 240 : i32
    %438 = tpu.dynamic_rotate %405 by %c240_i32_173 dim 1 : vector<8x256xf32>, i32 -> vector<8x256xf32>
    %439 = vector.broadcast %149 : vector<1x256xf32> to vector<8x256xf32>
    %440 = arith.mulf %438, %439 : vector<8x256xf32>
    %441 = arith.truncf %440 : vector<8x256xf32> to vector<8x256xbf16>
    %c56_174 = arith.constant 56 : index
    %c0_175 = arith.constant 0 : index
    %442 = vector.load %arg19[%c56_174, %c0_175] : memref<72x256xbf16, #tpu.memory_space<vmem>>, vector<8x256xbf16>
    tpu.vector_store %arg19[%c56_174, %c0_175], %441 {strides = array<i32>} : memref<72x256xbf16, #tpu.memory_space<vmem>>, vector<8x256xbf16>,
    %c239_i32_176 = arith.constant 239 : i32
    %443 = tpu.dynamic_rotate %405 by %c239_i32_176 dim 1 : vector<8x256xf32>, i32 -> vector<8x256xf32>
    %444 = vector.broadcast %170 : vector<1x256xf32> to vector<8x256xf32>
    %445 = arith.mulf %443, %444 : vector<8x256xf32>
    %446 = arith.truncf %445 : vector<8x256xf32> to vector<8x256xbf16>
    %c64_177 = arith.constant 64 : index
    %c0_178 = arith.constant 0 : index
    %447 = vector.load %arg19[%c64_177, %c0_178] : memref<72x256xbf16, #tpu.memory_space<vmem>>, vector<8x256xbf16>
    tpu.vector_store %arg19[%c64_177, %c0_178], %446 {strides = array<i32>} : memref<72x256xbf16, #tpu.memory_space<vmem>>, vector<8x256xbf16>,
    %c0_179 = arith.constant 0 : index
    %c0_180 = arith.constant 0 : index
    %448 = vector.load %arg8[%c0_179, %c0_180] : memref<8x72xbf16, #tpu.memory_space<vmem>>, vector<8x72xbf16>
    %c0_181 = arith.constant 0 : index
    %c0_182 = arith.constant 0 : index
    %449 = vector.load %arg19[%c0_181, %c0_182] : memref<72x256xbf16, #tpu.memory_space<vmem>>, vector<72x256xbf16>
    %cst_183 = arith.constant dense<0.000000e+00> : vector<8x256xf32>
    %450 = tpu.matmul %448, %449, %cst_183 {dimension_numbers = #tpu.dot_dimension_numbers<[1], [0], [0], [1], [0, 0, 1, 1], [], []>} : vector<8x72xbf16>, vector<72x256xbf16>, vector<8x256xf32> -> vector<8x256xf32>
    %c0_184 = arith.constant 0 : index
    %c0_185 = arith.constant 0 : index
    %451 = vector.load %arg9[%c0_184, %c0_185] : memref<8x1xf32, #tpu.memory_space<vmem>>, vector<8x1xf32>
    %452 = vector.broadcast %451 : vector<8x1xf32> to vector<8x256xf32>
    %453 = arith.addf %450, %452 : vector<8x256xf32>
    %c51_i32 = arith.constant 51 : i32
    %454 = tpu.dynamic_rotate %453 by %c51_i32 dim 1 : vector<8x256xf32>, i32 -> vector<8x256xf32>
    %455 = vector.broadcast %191 : vector<1x256xf32> to vector<8x256xf32>
    %456 = arith.mulf %454, %455 : vector<8x256xf32>
    %457 = arith.truncf %456 : vector<8x256xf32> to vector<8x256xbf16>
    %c0_186 = arith.constant 0 : index
    %c0_187 = arith.constant 0 : index
    %458 = vector.load %arg19[%c0_186, %c0_187] : memref<72x256xbf16, #tpu.memory_space<vmem>>, vector<8x256xbf16>
    tpu.vector_store %arg19[%c0_186, %c0_187], %457 {strides = array<i32>} : memref<72x256xbf16, #tpu.memory_space<vmem>>, vector<8x256xbf16>,
    %c48_i32 = arith.constant 48 : i32
    %459 = tpu.dynamic_rotate %453 by %c48_i32 dim 1 : vector<8x256xf32>, i32 -> vector<8x256xf32>
    %460 = vector.broadcast %212 : vector<1x256xf32> to vector<8x256xf32>
    %461 = arith.mulf %459, %460 : vector<8x256xf32>
    %462 = arith.truncf %461 : vector<8x256xf32> to vector<8x256xbf16>
    %c8_188 = arith.constant 8 : index
    %c0_189 = arith.constant 0 : index
    %463 = vector.load %arg19[%c8_188, %c0_189] : memref<72x256xbf16, #tpu.memory_space<vmem>>, vector<8x256xbf16>
    tpu.vector_store %arg19[%c8_188, %c0_189], %462 {strides = array<i32>} : memref<72x256xbf16, #tpu.memory_space<vmem>>, vector<8x256xbf16>,
    %c45_i32 = arith.constant 45 : i32
    %464 = tpu.dynamic_rotate %453 by %c45_i32 dim 1 : vector<8x256xf32>, i32 -> vector<8x256xf32>
    %465 = vector.broadcast %233 : vector<1x256xf32> to vector<8x256xf32>
    %466 = arith.mulf %464, %465 : vector<8x256xf32>
    %467 = arith.truncf %466 : vector<8x256xf32> to vector<8x256xbf16>
    %c16_190 = arith.constant 16 : index
    %c0_191 = arith.constant 0 : index
    %468 = vector.load %arg19[%c16_190, %c0_191] : memref<72x256xbf16, #tpu.memory_space<vmem>>, vector<8x256xbf16>
    tpu.vector_store %arg19[%c16_190, %c0_191], %467 {strides = array<i32>} : memref<72x256xbf16, #tpu.memory_space<vmem>>, vector<8x256xbf16>,
    %c3_i32_192 = arith.constant 3 : i32
    %469 = tpu.dynamic_rotate %453 by %c3_i32_192 dim 1 : vector<8x256xf32>, i32 -> vector<8x256xf32>
    %470 = vector.broadcast %254 : vector<1x256xf32> to vector<8x256xf32>
    %471 = arith.mulf %469, %470 : vector<8x256xf32>
    %472 = arith.truncf %471 : vector<8x256xf32> to vector<8x256xbf16>
    %c24_193 = arith.constant 24 : index
    %c0_194 = arith.constant 0 : index
    %473 = vector.load %arg19[%c24_193, %c0_194] : memref<72x256xbf16, #tpu.memory_space<vmem>>, vector<8x256xbf16>
    tpu.vector_store %arg19[%c24_193, %c0_194], %472 {strides = array<i32>} : memref<72x256xbf16, #tpu.memory_space<vmem>>, vector<8x256xbf16>,
    %474 = arith.truncf %453 : vector<8x256xf32> to vector<8x256xbf16>
    %c32_195 = arith.constant 32 : index
    %c0_196 = arith.constant 0 : index
    %475 = vector.load %arg19[%c32_195, %c0_196] : memref<72x256xbf16, #tpu.memory_space<vmem>>, vector<8x256xbf16>
    tpu.vector_store %arg19[%c32_195, %c0_196], %474 {strides = array<i32>} : memref<72x256xbf16, #tpu.memory_space<vmem>>, vector<8x256xbf16>,
    %c253_i32 = arith.constant 253 : i32
    %476 = tpu.dynamic_rotate %453 by %c253_i32 dim 1 : vector<8x256xf32>, i32 -> vector<8x256xf32>
    %477 = vector.broadcast %275 : vector<1x256xf32> to vector<8x256xf32>
    %478 = arith.mulf %476, %477 : vector<8x256xf32>
    %479 = arith.truncf %478 : vector<8x256xf32> to vector<8x256xbf16>
    %c40_197 = arith.constant 40 : index
    %c0_198 = arith.constant 0 : index
    %480 = vector.load %arg19[%c40_197, %c0_198] : memref<72x256xbf16, #tpu.memory_space<vmem>>, vector<8x256xbf16>
    tpu.vector_store %arg19[%c40_197, %c0_198], %479 {strides = array<i32>} : memref<72x256xbf16, #tpu.memory_space<vmem>>, vector<8x256xbf16>,
    %c211_i32 = arith.constant 211 : i32
    %481 = tpu.dynamic_rotate %453 by %c211_i32 dim 1 : vector<8x256xf32>, i32 -> vector<8x256xf32>
    %482 = vector.broadcast %296 : vector<1x256xf32> to vector<8x256xf32>
    %483 = arith.mulf %481, %482 : vector<8x256xf32>
    %484 = arith.truncf %483 : vector<8x256xf32> to vector<8x256xbf16>
    %c48_199 = arith.constant 48 : index
    %c0_200 = arith.constant 0 : index
    %485 = vector.load %arg19[%c48_199, %c0_200] : memref<72x256xbf16, #tpu.memory_space<vmem>>, vector<8x256xbf16>
    tpu.vector_store %arg19[%c48_199, %c0_200], %484 {strides = array<i32>} : memref<72x256xbf16, #tpu.memory_space<vmem>>, vector<8x256xbf16>,
    %c208_i32 = arith.constant 208 : i32
    %486 = tpu.dynamic_rotate %453 by %c208_i32 dim 1 : vector<8x256xf32>, i32 -> vector<8x256xf32>
    %487 = vector.broadcast %317 : vector<1x256xf32> to vector<8x256xf32>
    %488 = arith.mulf %486, %487 : vector<8x256xf32>
    %489 = arith.truncf %488 : vector<8x256xf32> to vector<8x256xbf16>
    %c56_201 = arith.constant 56 : index
    %c0_202 = arith.constant 0 : index
    %490 = vector.load %arg19[%c56_201, %c0_202] : memref<72x256xbf16, #tpu.memory_space<vmem>>, vector<8x256xbf16>
    tpu.vector_store %arg19[%c56_201, %c0_202], %489 {strides = array<i32>} : memref<72x256xbf16, #tpu.memory_space<vmem>>, vector<8x256xbf16>,
    %c205_i32 = arith.constant 205 : i32
    %491 = tpu.dynamic_rotate %453 by %c205_i32 dim 1 : vector<8x256xf32>, i32 -> vector<8x256xf32>
    %492 = vector.broadcast %338 : vector<1x256xf32> to vector<8x256xf32>
    %493 = arith.mulf %491, %492 : vector<8x256xf32>
    %494 = arith.truncf %493 : vector<8x256xf32> to vector<8x256xbf16>
    %c64_203 = arith.constant 64 : index
    %c0_204 = arith.constant 0 : index
    %495 = vector.load %arg19[%c64_203, %c0_204] : memref<72x256xbf16, #tpu.memory_space<vmem>>, vector<8x256xbf16>
    tpu.vector_store %arg19[%c64_203, %c0_204], %494 {strides = array<i32>} : memref<72x256xbf16, #tpu.memory_space<vmem>>, vector<8x256xbf16>,
    %c0_205 = arith.constant 0 : index
    %c0_206 = arith.constant 0 : index
    %496 = vector.load %arg10[%c0_205, %c0_206] : memref<8x72xbf16, #tpu.memory_space<vmem>>, vector<8x72xbf16>
    %c0_207 = arith.constant 0 : index
    %c0_208 = arith.constant 0 : index
    %497 = vector.load %arg19[%c0_207, %c0_208] : memref<72x256xbf16, #tpu.memory_space<vmem>>, vector<72x256xbf16>
    %cst_209 = arith.constant dense<0.000000e+00> : vector<8x256xf32>
    %498 = tpu.matmul %496, %497, %cst_209 {dimension_numbers = #tpu.dot_dimension_numbers<[1], [0], [0], [1], [0, 0, 1, 1], [], []>} : vector<8x72xbf16>, vector<72x256xbf16>, vector<8x256xf32> -> vector<8x256xf32>
    %c0_210 = arith.constant 0 : index
    %c0_211 = arith.constant 0 : index
    %499 = vector.load %arg11[%c0_210, %c0_211] : memref<8x1xf32, #tpu.memory_space<vmem>>, vector<8x1xf32>
    %500 = vector.broadcast %499 : vector<8x1xf32> to vector<8x256xf32>
    %501 = arith.addf %498, %500 : vector<8x256xf32>
    %c0_212 = arith.constant 0 : index
    %c0_213 = arith.constant 0 : index
    %502 = vector.load %arg12[%c0_212, %c0_213] : memref<8x8xbf16, #tpu.memory_space<vmem>>, vector<8x8xbf16>
    %503 = arith.truncf %501 : vector<8x256xf32> to vector<8x256xbf16>
    %cst_214 = arith.constant dense<0.000000e+00> : vector<8x256xf32>
    %504 = tpu.matmul %502, %503, %cst_214 {dimension_numbers = #tpu.dot_dimension_numbers<[1], [0], [0], [1], [0, 0, 1, 1], [], []>} : vector<8x8xbf16>, vector<8x256xbf16>, vector<8x256xf32> -> vector<8x256xf32>
    %c0_215 = arith.constant 0 : index
    %c0_216 = arith.constant 0 : index
    %505 = vector.load %arg13[%c0_215, %c0_216] : memref<8x1xf32, #tpu.memory_space<vmem>>, vector<8x1xf32>
    %506 = vector.broadcast %505 : vector<8x1xf32> to vector<8x256xf32>
    %507 = arith.addf %504, %506 : vector<8x256xf32>
    %508 = arith.mulf %405, %507 : vector<8x256xf32>
    %c0_217 = arith.constant 0 : index
    %c0_218 = arith.constant 0 : index
    %509 = vector.load %arg14[%c0_217, %c0_218] : memref<8x8xbf16, #tpu.memory_space<vmem>>, vector<8x8xbf16>
    %510 = arith.truncf %508 : vector<8x256xf32> to vector<8x256xbf16>
    %cst_219 = arith.constant dense<0.000000e+00> : vector<8x256xf32>
    %511 = tpu.matmul %509, %510, %cst_219 {dimension_numbers = #tpu.dot_dimension_numbers<[1], [0], [0], [1], [0, 0, 1, 1], [], []>} : vector<8x8xbf16>, vector<8x256xbf16>, vector<8x256xf32> -> vector<8x256xf32>
    %c0_220 = arith.constant 0 : index
    %c0_221 = arith.constant 0 : index
    %512 = vector.load %arg15[%c0_220, %c0_221] : memref<8x1xf32, #tpu.memory_space<vmem>>, vector<8x1xf32>
    %513 = vector.broadcast %512 : vector<8x1xf32> to vector<8x256xf32>
    %514 = arith.addf %511, %513 : vector<8x256xf32>
    %515 = arith.addf %0, %514 : vector<8x256xf32>
    %516 = arith.addf %515, %344 : vector<8x256xf32>
    %c0_222 = arith.constant 0 : index
    %c0_223 = arith.constant 0 : index
    %517 = vector.load %arg16[%c0_222, %c0_223] : memref<8x256xf32, #tpu.memory_space<vmem>>, vector<8x256xf32>
    tpu.vector_store %arg16[%c0_222, %c0_223], %516 {strides = array<i32>} : memref<8x256xf32, #tpu.memory_space<vmem>>, vector<8x256xf32>,
    %cst_224 = arith.constant dense<0.000000e+00> : vector<8xf32>
    %518 = vector.multi_reduction <add>, %516, %cst_224 [1] : vector<8x256xf32> to vector<8xf32>
    %519 = vector.shape_cast %518 : vector<8xf32> to vector<8x1xf32>
    %520 = vector.shape_cast %519 : vector<8x1xf32> to vector<1x8x1xf32>
    %c0_225 = arith.constant 0 : index
    %c0_226 = arith.constant 0 : index
    %c0_227 = arith.constant 0 : index
    %521 = vector.load %arg17[%c0_225, %c0_226, %c0_227] : memref<1x8x1xf32, #tpu.memory_space<vmem>>, vector<1x8x1xf32>
    tpu.vector_store %arg17[%c0_225, %c0_226, %c0_227], %520 {strides = array<i32>} : memref<1x8x1xf32, #tpu.memory_space<vmem>>, vector<1x8x1xf32>,
    %522 = arith.mulf %516, %516 : vector<8x256xf32>
    %cst_228 = arith.constant dense<0.000000e+00> : vector<8xf32>
    %523 = vector.multi_reduction <add>, %522, %cst_228 [1] : vector<8x256xf32> to vector<8xf32>
    %524 = vector.shape_cast %523 : vector<8xf32> to vector<8x1xf32>
    %525 = vector.shape_cast %524 : vector<8x1xf32> to vector<1x8x1xf32>
    %c0_229 = arith.constant 0 : index
    %c0_230 = arith.constant 0 : index
    %c0_231 = arith.constant 0 : index
    %526 = vector.load %arg18[%c0_229, %c0_230, %c0_231] : memref<1x8x1xf32, #tpu.memory_space<vmem>>, vector<1x8x1xf32>
    tpu.vector_store %arg18[%c0_229, %c0_230, %c0_231], %525 {strides = array<i32>} : memref<1x8x1xf32, #tpu.memory_space<vmem>>, vector<1x8x1xf32>,
    return
  }
  func.func @transform_0(%arg0: i32) -> (i32, i32) {
    %c0_i32 = arith.constant 0 : i32
    %c0_i32_0 = arith.constant 0 : i32
    return %c0_i32, %arg0 : i32, i32
  }
  func.func @transform_1(%arg0: i32) -> (i32, i32) {
    %c0_i32 = arith.constant 0 : i32
    %c0_i32_0 = arith.constant 0 : i32
    return %c0_i32, %arg0 : i32, i32
  }
  func.func @transform_2(%arg0: i32) -> (i32, i32) {
    %c0_i32 = arith.constant 0 : i32
    %c0_i32_0 = arith.constant 0 : i32
    return %c0_i32, %arg0 : i32, i32
  }
  func.func @transform_3(%arg0: i32) -> (i32, i32) {
    %c0_i32 = arith.constant 0 : i32
    %c0_i32_0 = arith.constant 0 : i32
    %c0_i32_1 = arith.constant 0 : i32
    return %c0_i32, %c0_i32_0 : i32, i32
  }
  func.func @transform_4(%arg0: i32) -> (i32, i32) {
    %c0_i32 = arith.constant 0 : i32
    %c0_i32_0 = arith.constant 0 : i32
    %c0_i32_1 = arith.constant 0 : i32
    return %c0_i32, %c0_i32_0 : i32, i32
  }
  func.func @transform_5(%arg0: i32) -> (i32, i32) {
    %c0_i32 = arith.constant 0 : i32
    %c0_i32_0 = arith.constant 0 : i32
    %c0_i32_1 = arith.constant 0 : i32
    return %c0_i32, %c0_i32_0 : i32, i32
  }
  func.func @transform_6(%arg0: i32) -> (i32, i32) {
    %c0_i32 = arith.constant 0 : i32
    %c0_i32_0 = arith.constant 0 : i32
    %c0_i32_1 = arith.constant 0 : i32
    return %c0_i32, %c0_i32_0 : i32, i32
  }
  func.func @transform_7(%arg0: i32) -> (i32, i32) {
    %c0_i32 = arith.constant 0 : i32
    %c0_i32_0 = arith.constant 0 : i32
    %c0_i32_1 = arith.constant 0 : i32
    return %c0_i32, %c0_i32_0 : i32, i32
  }
  func.func @transform_8(%arg0: i32) -> (i32, i32) {
    %c0_i32 = arith.constant 0 : i32
    %c0_i32_0 = arith.constant 0 : i32
    %c0_i32_1 = arith.constant 0 : i32
    return %c0_i32, %c0_i32_0 : i32, i32
  }
  func.func @transform_9(%arg0: i32) -> (i32, i32) {
    %c0_i32 = arith.constant 0 : i32
    %c0_i32_0 = arith.constant 0 : i32
    %c0_i32_1 = arith.constant 0 : i32
    return %c0_i32, %c0_i32_0 : i32, i32
  }
  func.func @transform_10(%arg0: i32) -> (i32, i32) {
    %c0_i32 = arith.constant 0 : i32
    %c0_i32_0 = arith.constant 0 : i32
    %c0_i32_1 = arith.constant 0 : i32
    return %c0_i32, %c0_i32_0 : i32, i32
  }
  func.func @transform_11(%arg0: i32) -> (i32, i32) {
    %c0_i32 = arith.constant 0 : i32
    %c0_i32_0 = arith.constant 0 : i32
    %c0_i32_1 = arith.constant 0 : i32
    return %c0_i32, %c0_i32_0 : i32, i32
  }
  func.func @transform_12(%arg0: i32) -> (i32, i32) {
    %c0_i32 = arith.constant 0 : i32
    %c0_i32_0 = arith.constant 0 : i32
    %c0_i32_1 = arith.constant 0 : i32
    return %c0_i32, %c0_i32_0 : i32, i32
  }
  func.func @transform_13(%arg0: i32) -> (i32, i32) {
    %c0_i32 = arith.constant 0 : i32
    %c0_i32_0 = arith.constant 0 : i32
    %c0_i32_1 = arith.constant 0 : i32
    return %c0_i32, %c0_i32_0 : i32, i32
  }
  func.func @transform_14(%arg0: i32) -> (i32, i32) {
    %c0_i32 = arith.constant 0 : i32
    %c0_i32_0 = arith.constant 0 : i32
    %c0_i32_1 = arith.constant 0 : i32
    return %c0_i32, %c0_i32_0 : i32, i32
  }
  func.func @transform_15(%arg0: i32) -> (i32, i32) {
    %c0_i32 = arith.constant 0 : i32
    %c0_i32_0 = arith.constant 0 : i32
    return %c0_i32, %arg0 : i32, i32
  }
  func.func @transform_16(%arg0: i32) -> (i32, i32, i32) {
    %c0_i32 = arith.constant 0 : i32
    %c0_i32_0 = arith.constant 0 : i32
    %c0_i32_1 = arith.constant 0 : i32
    return %arg0, %c0_i32, %c0_i32_0 : i32, i32, i32
  }
  func.func @transform_17(%arg0: i32) -> (i32, i32, i32) {
    %c0_i32 = arith.constant 0 : i32
    %c0_i32_0 = arith.constant 0 : i32
    %c0_i32_1 = arith.constant 0 : i32
    return %arg0, %c0_i32, %c0_i32_0 : i32, i32, i32
  }
}

</mosaic_0001>

<llo_original>
// kernel: block_forward.3
$region0: #{block_forward.3}
  #allocation0 [shape = 'u32[]', space=smem, size = 0x4, offset = 0x4, fixed_abs, tag = 'smem constant byte address 0x4 - core index']
  #allocation1 [shape = 'u32[144,128]{1,0:T(1,128)}', space=vmem, size = 0x12000, scoped, tag = 'internal scratch']
  %s0 = inlined_call_operand.vmem [shape: f32[8,512], index: 0, kind: input, shape index: {}]
  %s1 = inlined_call_operand.vmem [shape: f32[2,8,1], index: 1, kind: output, shape index: {0}]
  %s2 = inlined_call_operand.vmem [shape: f32[2,8,1], index: 2, kind: output, shape index: {1}]
  %3 = xla_tuple %s1, %s2
  %s4 = sld [smem:[#allocation0]]
  $region45: #{block_forward.3} parent=0
    _
  %s6 = ssub.s32 1, %s4
  %s7 = scalar_select 0, %s6, %s4
  loop: start=0, step=1, limit=4
  $region2: #{block_forward.3} parent=0 // loop_pre_header
    _
  $region3: #{block_forward.3} parent=0 // loop_header
    %s9 = sphi 0, %s13
    %p10 = scmp.ge.s32.totalorder %s9, 4
    %s19 = sphi 0, %s21
    %s22 = sphi 0, %s19
    %s23 = sphi 0, %s22
    %s39 = sphi 0, %s23
    %s45 = sphi 0, %s47
    %s48 = sphi 0, %s45
    %s49 = sphi 0, %s48
    %s65 = sphi 0, %s49
    %s71 = sphi 0, %s73
    %s74 = sphi 0, %s71
    %s75 = sphi 0, %s74
    %s91 = sphi 0, %s75
  $region4: #{block_forward.3} parent=0 // loop_header_branch
    %12 = sbr.rel (%p10) target = $region8
  $region5: #{block_forward.3} parent=0 // loop_body
    %s14 = ssub.s32 %s9, 1
    %s15 = ssub.s32 %s9, 2
    %s16 = sadd.s32 %s9, 1
    %s17 = ssub.s32 %s9, %s16
    %p18 = scmp.eq.s32.totalorder %s17, 0
    %s20 = sadd.s32 %s19, 1
    %s21 = scalar_select %p18, %s19, %s20
    %p24 = pneg %p18
    %p25 = scmp.eq.s32.totalorder %s9, 1
    %p26 = por %p24, %p25
    %p27 = scmp.ne.s32.totalorder %s19, %s22
    %p28 = scmp.eq.s32.totalorder %s9, 0
    %p29 = por %p27, %p28
    %p30 = scmp.ne.s32.totalorder %s19, %s22
    %p31 = scmp.eq.s32.totalorder %s14, 1
    %p32 = por %p30, %p31
    %p33 = scmp.ne.s32.totalorder %s22, %s23
    %p34 = scmp.eq.s32.totalorder %s14, 0
    %p35 = por %p33, %p34
    %p36 = scmp.ne.s32.totalorder %s22, %s23
    %p37 = scmp.eq.s32.totalorder %s15, 1
    %p38 = por %p36, %p37
    %p40 = scmp.ne.s32.totalorder %s23, %s39
    %p41 = scmp.eq.s32.totalorder %s15, 0
    %p42 = por %p40, %p41
    %s43 = ssub.s32 %s9, %s16
    %p44 = scmp.eq.s32.totalorder %s43, 0
    %s46 = sadd.s32 %s45, 1
    %s47 = scalar_select %p44, %s45, %s46
    %p50 = pneg %p44
    %p51 = scmp.eq.s32.totalorder %s9, 1
    %p52 = por %p50, %p51
    %p53 = scmp.ne.s32.totalorder %s45, %s48
    %p54 = scmp.eq.s32.totalorder %s9, 0
    %p55 = por %p53, %p54
    %p56 = scmp.ne.s32.totalorder %s45, %s48
    %p57 = scmp.eq.s32.totalorder %s14, 1
    %p58 = por %p56, %p57
    %p59 = scmp.ne.s32.totalorder %s48, %s49
    %p60 = scmp.eq.s32.totalorder %s14, 0
    %p61 = por %p59, %p60
    %p62 = scmp.ne.s32.totalorder %s48, %s49
    %p63 = scmp.eq.s32.totalorder %s15, 1
    %p64 = por %p62, %p63
    %p66 = scmp.ne.s32.totalorder %s49, %s65
    %p67 = scmp.eq.s32.totalorder %s15, 0
    %p68 = por %p66, %p67
    %s69 = ssub.s32 %s9, %s16
    %p70 = scmp.eq.s32.totalorder %s69, 0
    %s72 = sadd.s32 %s71, 1
    %s73 = scalar_select %p70, %s71, %s72
    %p76 = pneg %p70
    %p77 = scmp.eq.s32.totalorder %s9, 1
    %p78 = por %p76, %p77
    %p79 = scmp.ne.s32.totalorder %s71, %s74
    %p80 = scmp.eq.s32.totalorder %s9, 0
    %p81 = por %p79, %p80
    %p82 = scmp.ne.s32.totalorder %s71, %s74
    %p83 = scmp.eq.s32.totalorder %s14, 1
    %p84 = por %p82, %p83
    %p85 = scmp.ne.s32.totalorder %s74, %s75
    %p86 = scmp.eq.s32.totalorder %s14, 0
    %p87 = por %p85, %p86
    %p88 = scmp.ne.s32.totalorder %s74, %s75
    %p89 = scmp.eq.s32.totalorder %s15, 1
    %p90 = por %p88, %p89
    %p92 = scmp.ne.s32.totalorder %s75, %s91
    %p93 = scmp.eq.s32.totalorder %s15, 0
    %p94 = por %p92, %p93
    %p95 = scmp.le.s32.totalorder 1, %s9
    %p96 = scmp.lt.s32.totalorder %s9, 3
    %p97 = pnand %p95, %p96
    %p98 = pneg %p97
    // Predicated region
    $region9: #{block_forward.3} parent=5 // pred_check
      _
    $region10: #{block_forward.3} parent=5 // pred_check_branch
      %100 = sbr.rel (%p97) target = $region12
    $region11: #{block_forward.3} parent=5 // pred_region
      %s101 = ssub.s32 %s9, 1
    $region12: #{block_forward.3} parent=5 // pred_fallthru
      _
    %p102 = scmp.lt.s32.totalorder %s9, 2
    // Predicated region
    $region13: #{block_forward.3} parent=5 // pred_check
      %p103 = pneg %p102
    $region14: #{block_forward.3} parent=5 // pred_check_branch
      %105 = sbr.rel (%p103) target = $region16
    $region15: #{block_forward.3} parent=5 // pred_region
      // Predicated region
      $region17: #{block_forward.3} parent=15 // pred_check
        %p106 = pneg %p29
      $region18: #{block_forward.3} parent=15 // pred_check_branch
        %108 = sbr.rel (%p106) target = $region20
      $region19: #{block_forward.3} parent=15 // pred_region
        %s109 = smul.u32 2, %s9
        %p110 = scmp.lt.s32.totalorder %s109, 3
        %s111 = scalar_select %p110, %s109, 3
        %s112 = smul.addr %s111, 8
        %s113 = scalar_lea.vmem %s0, %s112
        %s114 = smul.u32 2, %s9
      $region20: #{block_forward.3} parent=15 // pred_fallthru
        _
    $region16: #{block_forward.3} parent=5 // pred_fallthru
      _
    %p115 = scmp.le.s32.totalorder 1, %s9
    %p116 = scmp.lt.s32.totalorder %s9, 3
    %p117 = pnand %p115, %p116
    %p118 = pneg %p117
    // Predicated region
    $region21: #{block_forward.3} parent=5 // pred_check
      _
    $region22: #{block_forward.3} parent=5 // pred_check_branch
      %120 = sbr.rel (%p117) target = $region24
    $region23: #{block_forward.3} parent=5 // pred_region
      %s121 = ssub.s32 %s9, 1
      %s122 = smul.u32 2, %s14
      %p123 = scmp.lt.s32.totalorder %s122, 3
      %s124 = scalar_select %p123, %s122, 3
      %s125 = smul.addr %s124, 8
      %s126 = scalar_lea.vmem %s0, %s125
      %p127 = pneg %p35
      %p128 = pneg %p32
      %p129 = pneg %p61
      %p130 = pneg %p58
      %p131 = scmp.lt.s32.totalorder %s14, 1
      %s132 = scalar_select %p131, %s14, 1
      %s133 = smul.addr %s132, 8
      %s134 = scalar_lea.vmem %s1, %s133
      %p135 = pneg %p87
      %p136 = pneg %p84
      %p137 = scmp.lt.s32.totalorder %s14, 1
      %s138 = scalar_select %p137, %s14, 1
      %s139 = smul.addr %s138, 8
      %s140 = scalar_lea.vmem %s2, %s139
      %s141 = smul.u32 2, %s14
      %p142 = scmp.lt.s32.totalorder %s141, 3
      %s143 = scalar_select %p142, %s141, 3
      %s144 = smul.addr %s143, 8
      %s145 = scalar_lea.vmem %s0, %s144
      %s146 = smul.u32 2, %s14
      %p147 = scmp.lt.s32.totalorder %s14, 1
      %s148 = scalar_select %p147, %s14, 1
      %s149 = smul.addr %s148, 8
      %s150 = scalar_lea.vmem %s1, %s149
      %p151 = scmp.lt.s32.totalorder %s14, 1
      %s152 = scalar_select %p151, %s14, 1
      %s153 = smul.addr %s152, 8
      %s154 = scalar_lea.vmem %s2, %s153
      %v155 = vld [vmem:[%s145] sm:$0xff]
      %v156 = vld [vmem:[%s145 + $0x8] sm:$0xff]
      %v157 = vadd.f32 %v155, %v156
      %158 = vadd.xlane.f32.xlu0 %v157
      %v159 = vpop.xlane.xlu0 %158
      %vm160 = vcmask 7168
      %161 = vst.msk [vmem:[%s150] sm:$0xff] %vm160, %v159
      %v162 = vmul.f32 %v155, %v155
      %v163 = vmul.f32 %v156, %v156
      %v164 = vadd.f32 %v162, %v163
      %165 = vadd.xlane.f32.xlu0 %v164
      %v166 = vpop.xlane.xlu0 %165
      %167 = vst.msk [vmem:[%s154] sm:$0xff] %vm160, %v166
      %p168 = scmp.lt.s32.totalorder %s14, 1
      %s169 = scalar_select %p168, %s14, 1
      %s170 = smul.addr %s169, 8
      %s171 = scalar_lea.vmem %s1, %s170
      %p172 = scmp.lt.s32.totalorder %s14, 1
      %s173 = scalar_select %p172, %s14, 1
      %s174 = smul.addr %s173, 8
      %s175 = scalar_lea.vmem %s2, %s174
      // Predicated region
      $region25: #{block_forward.3} parent=23 // pred_check
        %p176 = pneg %p58
      $region26: #{block_forward.3} parent=23 // pred_check_branch
        %178 = sbr.rel (%p176) target = $region28
      $region27: #{block_forward.3} parent=23 // pred_region
        _
      $region28: #{block_forward.3} parent=23 // pred_fallthru
        _
      // Predicated region
      $region29: #{block_forward.3} parent=23 // pred_check
        %p179 = pneg %p84
      $region30: #{block_forward.3} parent=23 // pred_check_branch
        %181 = sbr.rel (%p179) target = $region32
      $region31: #{block_forward.3} parent=23 // pred_region
        _
      $region32: #{block_forward.3} parent=23 // pred_fallthru
        _
    $region24: #{block_forward.3} parent=5 // pred_fallthru
      _
    %p182 = scmp.le.s32.totalorder 2, %s9
    // Predicated region
    $region33: #{block_forward.3} parent=5 // pred_check
      %p183 = pneg %p182
    $region34: #{block_forward.3} parent=5 // pred_check_branch
      %185 = sbr.rel (%p183) target = $region36
    $region35: #{block_forward.3} parent=5 // pred_region
      %s186 = ssub.s32 %s9, 2
      // Predicated region
      $region37: #{block_forward.3} parent=35 // pred_check
        %p187 = pneg %p64
      $region38: #{block_forward.3} parent=35 // pred_check_branch
        %189 = sbr.rel (%p187) target = $region40
      $region39: #{block_forward.3} parent=35 // pred_region
        %p190 = scmp.lt.s32.totalorder %s15, 1
        %s191 = scalar_select %p190, %s15, 1
        %s192 = smul.addr %s191, 8
        %s193 = scalar_lea.vmem %s1, %s192
      $region40: #{block_forward.3} parent=35 // pred_fallthru
        _
      // Predicated region
      $region41: #{block_forward.3} parent=35 // pred_check
        %p194 = pneg %p90
      $region42: #{block_forward.3} parent=35 // pred_check_branch
        %196 = sbr.rel (%p194) target = $region44
      $region43: #{block_forward.3} parent=35 // pred_region
        %p197 = scmp.lt.s32.totalorder %s15, 1
        %s198 = scalar_select %p197, %s15, 1
        %s199 = smul.addr %s198, 8
        %s200 = scalar_lea.vmem %s2, %s199
      $region44: #{block_forward.3} parent=35 // pred_fallthru
        _
    $region36: #{block_forward.3} parent=5 // pred_fallthru
      _
  $region6: #{block_forward.3} parent=0 // loop_footer
    %s13 = sadd.s32 1, %s9
  $region7: #{block_forward.3} parent=0 // loop_footer_branch
    %8 = sbr.rel target = $region3
  $region8: #{block_forward.3} parent=0 // loop_exit
    _

// kernel: block_forward.5
$region0: #{block_forward.5}
  #allocation0 [shape = 'u32[]', space=smem, size = 0x4, offset = 0x4, fixed_abs, tag = 'smem constant byte address 0x4 - core index']
  #allocation1 [shape = 'u32[144,128]{1,0:T(1,128)}', space=vmem, size = 0x12000, scoped, tag = 'internal scratch']
  #allocation2 [shape = 'bf16[288,256]{1,0:T(16,128)(2,1)}', space=vmem, size = 0x24000, scoped, tag = 'scratch operand']
  %s0 = inlined_call_operand.vmem [shape: f32[8,512], index: 0, kind: input, shape index: {}, may-alias: {0,11}]
  %s1 = inlined_call_operand.vmem [shape: s32[1,512], index: 1, kind: input, shape index: {}]
  %s2 = inlined_call_operand.vmem [shape: s32[1,512], index: 2, kind: input, shape index: {}]
  %s3 = inlined_call_operand.vmem [shape: f32[8,1], index: 3, kind: input, shape index: {}]
  %s4 = inlined_call_operand.vmem [shape: f32[8,1], index: 4, kind: input, shape index: {}]
  %s5 = inlined_call_operand.vmem [shape: bf16[32,8], index: 5, kind: input, shape index: {}]
  %s6 = inlined_call_operand.vmem [shape: f32[32,1], index: 6, kind: input, shape index: {}]
  %s7 = inlined_call_operand.vmem [shape: bf16[32,288], index: 7, kind: input, shape index: {}]
  %s8 = inlined_call_operand.vmem [shape: f32[32,1], index: 8, kind: input, shape index: {}]
  %s9 = inlined_call_operand.vmem [shape: bf16[8,32], index: 9, kind: input, shape index: {}]
  %s10 = inlined_call_operand.vmem [shape: f32[8,1], index: 10, kind: input, shape index: {}]
  %s11 = inlined_call_operand.vmem [shape: f32[8,512], index: 11, kind: output, shape index: {}, may-alias: {0,11}]
  %s12 = sld [smem:[#allocation0]]
  $region77: #{block_forward.5} parent=0
    _
  %s14 = ssub.s32 1, %s12
  %s15 = scalar_select 0, %s14, %s12
  loop: start=0, step=1, limit=4
  $region2: #{block_forward.5} parent=0 // loop_pre_header
    _
  $region3: #{block_forward.5} parent=0 // loop_header
    %s17 = sphi 0, %s21
    %p18 = scmp.ge.s32.totalorder %s17, 4
    %s27 = sphi 0, %s29
    %s30 = sphi 0, %s27
    %s31 = sphi 0, %s30
    %s47 = sphi 0, %s31
    %s53 = sphi 0, %s55
    %s56 = sphi 0, %s53
    %s57 = sphi 0, %s56
    %s73 = sphi 0, %s57
    %s79 = sphi 0, %s81
    %s82 = sphi 0, %s79
    %s83 = sphi 0, %s82
    %s99 = sphi 0, %s83
    %s103 = sphi 0, %s103
    %s105 = sphi 0, %s103
    %s106 = sphi 0, %s105
    %s120 = sphi 0, %s106
    %s124 = sphi 0, %s124
    %s126 = sphi 0, %s124
    %s127 = sphi 0, %s126
    %s141 = sphi 0, %s127
    %s145 = sphi 0, %s145
    %s147 = sphi 0, %s145
    %s148 = sphi 0, %s147
    %s162 = sphi 0, %s148
    %s166 = sphi 0, %s166
    %s168 = sphi 0, %s166
    %s169 = sphi 0, %s168
    %s183 = sphi 0, %s169
    %s187 = sphi 0, %s187
    %s189 = sphi 0, %s187
    %s190 = sphi 0, %s189
    %s204 = sphi 0, %s190
    %s208 = sphi 0, %s208
    %s210 = sphi 0, %s208
    %s211 = sphi 0, %s210
    %s225 = sphi 0, %s211
    %s229 = sphi 0, %s229
    %s231 = sphi 0, %s229
    %s232 = sphi 0, %s231
    %s246 = sphi 0, %s232
    %s250 = sphi 0, %s250
    %s252 = sphi 0, %s250
    %s253 = sphi 0, %s252
    %s267 = sphi 0, %s253
    %s273 = sphi 0, %s275
    %s276 = sphi 0, %s273
    %s277 = sphi 0, %s276
    %s293 = sphi 0, %s277
  $region4: #{block_forward.5} parent=0 // loop_header_branch
    %20 = sbr.rel (%p18) target = $region8
  $region5: #{block_forward.5} parent=0 // loop_body
    %s22 = ssub.s32 %s17, 1
    %s23 = ssub.s32 %s17, 2
    %s24 = sadd.s32 %s17, 1
    %s25 = ssub.s32 %s17, %s24
    %p26 = scmp.eq.s32.totalorder %s25, 0
    %s28 = sadd.s32 %s27, 1
    %s29 = scalar_select %p26, %s27, %s28
    %p32 = pneg %p26
    %p33 = scmp.eq.s32.totalorder %s17, 1
    %p34 = por %p32, %p33
    %p35 = scmp.ne.s32.totalorder %s27, %s30
    %p36 = scmp.eq.s32.totalorder %s17, 0
    %p37 = por %p35, %p36
    %p38 = scmp.ne.s32.totalorder %s27, %s30
    %p39 = scmp.eq.s32.totalorder %s22, 1
    %p40 = por %p38, %p39
    %p41 = scmp.ne.s32.totalorder %s30, %s31
    %p42 = scmp.eq.s32.totalorder %s22, 0
    %p43 = por %p41, %p42
    %p44 = scmp.ne.s32.totalorder %s30, %s31
    %p45 = scmp.eq.s32.totalorder %s23, 1
    %p46 = por %p44, %p45
    %p48 = scmp.ne.s32.totalorder %s31, %s47
    %p49 = scmp.eq.s32.totalorder %s23, 0
    %p50 = por %p48, %p49
    %s51 = ssub.s32 %s17, %s24
    %p52 = scmp.eq.s32.totalorder %s51, 0
    %s54 = sadd.s32 %s53, 1
    %s55 = scalar_select %p52, %s53, %s54
    %p58 = pneg %p52
    %p59 = scmp.eq.s32.totalorder %s17, 1
    %p60 = por %p58, %p59
    %p61 = scmp.ne.s32.totalorder %s53, %s56
    %p62 = scmp.eq.s32.totalorder %s17, 0
    %p63 = por %p61, %p62
    %p64 = scmp.ne.s32.totalorder %s53, %s56
    %p65 = scmp.eq.s32.totalorder %s22, 1
    %p66 = por %p64, %p65
    %p67 = scmp.ne.s32.totalorder %s56, %s57
    %p68 = scmp.eq.s32.totalorder %s22, 0
    %p69 = por %p67, %p68
    %p70 = scmp.ne.s32.totalorder %s56, %s57
    %p71 = scmp.eq.s32.totalorder %s23, 1
    %p72 = por %p70, %p71
    %p74 = scmp.ne.s32.totalorder %s57, %s73
    %p75 = scmp.eq.s32.totalorder %s23, 0
    %p76 = por %p74, %p75
    %s77 = ssub.s32 %s17, %s24
    %p78 = scmp.eq.s32.totalorder %s77, 0
    %s80 = sadd.s32 %s79, 1
    %s81 = scalar_select %p78, %s79, %s80
    %p84 = pneg %p78
    %p85 = scmp.eq.s32.totalorder %s17, 1
    %p86 = por %p84, %p85
    %p87 = scmp.ne.s32.totalorder %s79, %s82
    %p88 = scmp.eq.s32.totalorder %s17, 0
    %p89 = por %p87, %p88
    %p90 = scmp.ne.s32.totalorder %s79, %s82
    %p91 = scmp.eq.s32.totalorder %s22, 1
    %p92 = por %p90, %p91
    %p93 = scmp.ne.s32.totalorder %s82, %s83
    %p94 = scmp.eq.s32.totalorder %s22, 0
    %p95 = por %p93, %p94
    %p96 = scmp.ne.s32.totalorder %s82, %s83
    %p97 = scmp.eq.s32.totalorder %s23, 1
    %p98 = por %p96, %p97
    %p100 = scmp.ne.s32.totalorder %s83, %s99
    %p101 = scmp.eq.s32.totalorder %s23, 0
    %p102 = por %p100, %p101
    %s104 = sadd.s32 %s103, 1
    %p107 = scmp.eq.s32.totalorder %s17, 1
    %p108 = scmp.ne.s32.totalorder %s103, %s105
    %p109 = scmp.eq.s32.totalorder %s17, 0
    %p110 = por %p108, %p109
    %p111 = scmp.ne.s32.totalorder %s103, %s105
    %p112 = scmp.eq.s32.totalorder %s22, 1
    %p113 = por %p111, %p112
    %p114 = scmp.ne.s32.totalorder %s105, %s106
    %p115 = scmp.eq.s32.totalorder %s22, 0
    %p116 = por %p114, %p115
    %p117 = scmp.ne.s32.totalorder %s105, %s106
    %p118 = scmp.eq.s32.totalorder %s23, 1
    %p119 = por %p117, %p118
    %p121 = scmp.ne.s32.totalorder %s106, %s120
    %p122 = scmp.eq.s32.totalorder %s23, 0
    %p123 = por %p121, %p122
    %s125 = sadd.s32 %s124, 1
    %p128 = scmp.eq.s32.totalorder %s17, 1
    %p129 = scmp.ne.s32.totalorder %s124, %s126
    %p130 = scmp.eq.s32.totalorder %s17, 0
    %p131 = por %p129, %p130
    %p132 = scmp.ne.s32.totalorder %s124, %s126
    %p133 = scmp.eq.s32.totalorder %s22, 1
    %p134 = por %p132, %p133
    %p135 = scmp.ne.s32.totalorder %s126, %s127
    %p136 = scmp.eq.s32.totalorder %s22, 0
    %p137 = por %p135, %p136
    %p138 = scmp.ne.s32.totalorder %s126, %s127
    %p139 = scmp.eq.s32.totalorder %s23, 1
    %p140 = por %p138, %p139
    %p142 = scmp.ne.s32.totalorder %s127, %s141
    %p143 = scmp.eq.s32.totalorder %s23, 0
    %p144 = por %p142, %p143
    %s146 = sadd.s32 %s145, 1
    %p149 = scmp.eq.s32.totalorder %s17, 1
    %p150 = scmp.ne.s32.totalorder %s145, %s147
    %p151 = scmp.eq.s32.totalorder %s17, 0
    %p152 = por %p150, %p151
    %p153 = scmp.ne.s32.totalorder %s145, %s147
    %p154 = scmp.eq.s32.totalorder %s22, 1
    %p155 = por %p153, %p154
    %p156 = scmp.ne.s32.totalorder %s147, %s148
    %p157 = scmp.eq.s32.totalorder %s22, 0
    %p158 = por %p156, %p157
    %p159 = scmp.ne.s32.totalorder %s147, %s148
    %p160 = scmp.eq.s32.totalorder %s23, 1
    %p161 = por %p159, %p160
    %p163 = scmp.ne.s32.totalorder %s148, %s162
    %p164 = scmp.eq.s32.totalorder %s23, 0
    %p165 = por %p163, %p164
    %s167 = sadd.s32 %s166, 1
    %p170 = scmp.eq.s32.totalorder %s17, 1
    %p171 = scmp.ne.s32.totalorder %s166, %s168
    %p172 = scmp.eq.s32.totalorder %s17, 0
    %p173 = por %p171, %p172
    %p174 = scmp.ne.s32.totalorder %s166, %s168
    %p175 = scmp.eq.s32.totalorder %s22, 1
    %p176 = por %p174, %p175
    %p177 = scmp.ne.s32.totalorder %s168, %s169
    %p178 = scmp.eq.s32.totalorder %s22, 0
    %p179 = por %p177, %p178
    %p180 = scmp.ne.s32.totalorder %s168, %s169
    %p181 = scmp.eq.s32.totalorder %s23, 1
    %p182 = por %p180, %p181
    %p184 = scmp.ne.s32.totalorder %s169, %s183
    %p185 = scmp.eq.s32.totalorder %s23, 0
    %p186 = por %p184, %p185
    %s188 = sadd.s32 %s187, 1
    %p191 = scmp.eq.s32.totalorder %s17, 1
    %p192 = scmp.ne.s32.totalorder %s187, %s189
    %p193 = scmp.eq.s32.totalorder %s17, 0
    %p194 = por %p192, %p193
    %p195 = scmp.ne.s32.totalorder %s187, %s189
    %p196 = scmp.eq.s32.totalorder %s22, 1
    %p197 = por %p195, %p196
    %p198 = scmp.ne.s32.totalorder %s189, %s190
    %p199 = scmp.eq.s32.totalorder %s22, 0
    %p200 = por %p198, %p199
    %p201 = scmp.ne.s32.totalorder %s189, %s190
    %p202 = scmp.eq.s32.totalorder %s23, 1
    %p203 = por %p201, %p202
    %p205 = scmp.ne.s32.totalorder %s190, %s204
    %p206 = scmp.eq.s32.totalorder %s23, 0
    %p207 = por %p205, %p206
    %s209 = sadd.s32 %s208, 1
    %p212 = scmp.eq.s32.totalorder %s17, 1
    %p213 = scmp.ne.s32.totalorder %s208, %s210
    %p214 = scmp.eq.s32.totalorder %s17, 0
    %p215 = por %p213, %p214
    %p216 = scmp.ne.s32.totalorder %s208, %s210
    %p217 = scmp.eq.s32.totalorder %s22, 1
    %p218 = por %p216, %p217
    %p219 = scmp.ne.s32.totalorder %s210, %s211
    %p220 = scmp.eq.s32.totalorder %s22, 0
    %p221 = por %p219, %p220
    %p222 = scmp.ne.s32.totalorder %s210, %s211
    %p223 = scmp.eq.s32.totalorder %s23, 1
    %p224 = por %p222, %p223
    %p226 = scmp.ne.s32.totalorder %s211, %s225
    %p227 = scmp.eq.s32.totalorder %s23, 0
    %p228 = por %p226, %p227
    %s230 = sadd.s32 %s229, 1
    %p233 = scmp.eq.s32.totalorder %s17, 1
    %p234 = scmp.ne.s32.totalorder %s229, %s231
    %p235 = scmp.eq.s32.totalorder %s17, 0
    %p236 = por %p234, %p235
    %p237 = scmp.ne.s32.totalorder %s229, %s231
    %p238 = scmp.eq.s32.totalorder %s22, 1
    %p239 = por %p237, %p238
    %p240 = scmp.ne.s32.totalorder %s231, %s232
    %p241 = scmp.eq.s32.totalorder %s22, 0
    %p242 = por %p240, %p241
    %p243 = scmp.ne.s32.totalorder %s231, %s232
    %p244 = scmp.eq.s32.totalorder %s23, 1
    %p245 = por %p243, %p244
    %p247 = scmp.ne.s32.totalorder %s232, %s246
    %p248 = scmp.eq.s32.totalorder %s23, 0
    %p249 = por %p247, %p248
    %s251 = sadd.s32 %s250, 1
    %p254 = scmp.eq.s32.totalorder %s17, 1
    %p255 = scmp.ne.s32.totalorder %s250, %s252
    %p256 = scmp.eq.s32.totalorder %s17, 0
    %p257 = por %p255, %p256
    %p258 = scmp.ne.s32.totalorder %s250, %s252
    %p259 = scmp.eq.s32.totalorder %s22, 1
    %p260 = por %p258, %p259
    %p261 = scmp.ne.s32.totalorder %s252, %s253
    %p262 = scmp.eq.s32.totalorder %s22, 0
    %p263 = por %p261, %p262
    %p264 = scmp.ne.s32.totalorder %s252, %s253
    %p265 = scmp.eq.s32.totalorder %s23, 1
    %p266 = por %p264, %p265
    %p268 = scmp.ne.s32.totalorder %s253, %s267
    %p269 = scmp.eq.s32.totalorder %s23, 0
    %p270 = por %p268, %p269
    %s271 = ssub.s32 %s17, %s24
    %p272 = scmp.eq.s32.totalorder %s271, 0
    %s274 = sadd.s32 %s273, 1
    %s275 = scalar_select %p272, %s273, %s274
    %p278 = pneg %p272
    %p279 = scmp.eq.s32.totalorder %s17, 1
    %p280 = por %p278, %p279
    %p281 = scmp.ne.s32.totalorder %s273, %s276
    %p282 = scmp.eq.s32.totalorder %s17, 0
    %p283 = por %p281, %p282
    %p284 = scmp.ne.s32.totalorder %s273, %s276
    %p285 = scmp.eq.s32.totalorder %s22, 1
    %p286 = por %p284, %p285
    %p287 = scmp.ne.s32.totalorder %s276, %s277
    %p288 = scmp.eq.s32.totalorder %s22, 0
    %p289 = por %p287, %p288
    %p290 = scmp.ne.s32.totalorder %s276, %s277
    %p291 = scmp.eq.s32.totalorder %s23, 1
    %p292 = por %p290, %p291
    %p294 = scmp.ne.s32.totalorder %s277, %s293
    %p295 = scmp.eq.s32.totalorder %s23, 0
    %p296 = por %p294, %p295
    %p297 = scmp.le.s32.totalorder 1, %s17
    %p298 = scmp.lt.s32.totalorder %s17, 3
    %p299 = pnand %p297, %p298
    %p300 = pneg %p299
    // Predicated region
    $region9: #{block_forward.5} parent=5 // pred_check
      _
    $region10: #{block_forward.5} parent=5 // pred_check_branch
      %302 = sbr.rel (%p299) target = $region12
    $region11: #{block_forward.5} parent=5 // pred_region
      %s303 = ssub.s32 %s17, 1
      // Predicated region
      $region13: #{block_forward.5} parent=11 // pred_check
        %p304 = pneg %p116
      $region14: #{block_forward.5} parent=11 // pred_check_branch
        %306 = sbr.rel (%p304) target = $region16
      $region15: #{block_forward.5} parent=11 // pred_region
        _
      $region16: #{block_forward.5} parent=11 // pred_fallthru
        _
      // Predicated region
      $region17: #{block_forward.5} parent=11 // pred_check
        %p307 = pneg %p137
      $region18: #{block_forward.5} parent=11 // pred_check_branch
        %309 = sbr.rel (%p307) target = $region20
      $region19: #{block_forward.5} parent=11 // pred_region
        _
      $region20: #{block_forward.5} parent=11 // pred_fallthru
        _
      // Predicated region
      $region21: #{block_forward.5} parent=11 // pred_check
        %p310 = pneg %p158
      $region22: #{block_forward.5} parent=11 // pred_check_branch
        %312 = sbr.rel (%p310) target = $region24
      $region23: #{block_forward.5} parent=11 // pred_region
        _
      $region24: #{block_forward.5} parent=11 // pred_fallthru
        _
      // Predicated region
      $region25: #{block_forward.5} parent=11 // pred_check
        %p313 = pneg %p179
      $region26: #{block_forward.5} parent=11 // pred_check_branch
        %315 = sbr.rel (%p313) target = $region28
      $region27: #{block_forward.5} parent=11 // pred_region
        _
      $region28: #{block_forward.5} parent=11 // pred_fallthru
        _
      // Predicated region
      $region29: #{block_forward.5} parent=11 // pred_check
        %p316 = pneg %p200
      $region30: #{block_forward.5} parent=11 // pred_check_branch
        %318 = sbr.rel (%p316) target = $region32
      $region31: #{block_forward.5} parent=11 // pred_region
        _
      $region32: #{block_forward.5} parent=11 // pred_fallthru
        _
      // Predicated region
      $region33: #{block_forward.5} parent=11 // pred_check
        %p319 = pneg %p221
      $region34: #{block_forward.5} parent=11 // pred_check_branch
        %321 = sbr.rel (%p319) target = $region36
      $region35: #{block_forward.5} parent=11 // pred_region
        _
      $region36: #{block_forward.5} parent=11 // pred_fallthru
        _
      // Predicated region
      $region37: #{block_forward.5} parent=11 // pred_check
        %p322 = pneg %p242
      $region38: #{block_forward.5} parent=11 // pred_check_branch
        %324 = sbr.rel (%p322) target = $region40
      $region39: #{block_forward.5} parent=11 // pred_region
        _
      $region40: #{block_forward.5} parent=11 // pred_fallthru
        _
      // Predicated region
      $region41: #{block_forward.5} parent=11 // pred_check
        %p325 = pneg %p263
      $region42: #{block_forward.5} parent=11 // pred_check_branch
        %327 = sbr.rel (%p325) target = $region44
      $region43: #{block_forward.5} parent=11 // pred_region
        _
      $region44: #{block_forward.5} parent=11 // pred_fallthru
        _
    $region12: #{block_forward.5} parent=5 // pred_fallthru
      _
    %p328 = scmp.lt.s32.totalorder %s17, 2
    // Predicated region
    $region45: #{block_forward.5} parent=5 // pred_check
      %p329 = pneg %p328
    $region46: #{block_forward.5} parent=5 // pred_check_branch
      %331 = sbr.rel (%p329) target = $region48
    $region47: #{block_forward.5} parent=5 // pred_region
      // Predicated region
      $region49: #{block_forward.5} parent=47 // pred_check
        %p332 = pneg %p37
      $region50: #{block_forward.5} parent=47 // pred_check_branch
        %334 = sbr.rel (%p332) target = $region52
      $region51: #{block_forward.5} parent=47 // pred_region
        %s335 = smul.u32 2, %s17
        %p336 = scmp.lt.s32.totalorder %s335, 3
        %s337 = scalar_select %p336, %s335, 3
        %s338 = smul.addr %s337, 8
        %s339 = scalar_lea.vmem %s0, %s338
        %s340 = smul.u32 2, %s17
      $region52: #{block_forward.5} parent=47 // pred_fallthru
        _
      // Predicated region
      $region53: #{block_forward.5} parent=47 // pred_check
        %p341 = pneg %p63
      $region54: #{block_forward.5} parent=47 // pred_check_branch
        %343 = sbr.rel (%p341) target = $region56
      $region55: #{block_forward.5} parent=47 // pred_region
        %s344 = smul.u32 2, %s17
        %p345 = scmp.lt.s32.totalorder %s344, 3
        %s346 = scalar_select %p345, %s344, 3
        %s347 = scalar_lea.vmem %s1, %s346
        %s348 = smul.u32 2, %s17
      $region56: #{block_forward.5} parent=47 // pred_fallthru
        _
      // Predicated region
      $region57: #{block_forward.5} parent=47 // pred_check
        %p349 = pneg %p89
      $region58: #{block_forward.5} parent=47 // pred_check_branch
        %351 = sbr.rel (%p349) target = $region60
      $region59: #{block_forward.5} parent=47 // pred_region
        %s352 = smul.u32 2, %s17
        %p353 = scmp.lt.s32.totalorder %s352, 3
        %s354 = scalar_select %p353, %s352, 3
        %s355 = scalar_lea.vmem %s2, %s354
        %s356 = smul.u32 2, %s17
      $region60: #{block_forward.5} parent=47 // pred_fallthru
        _
    $region48: #{block_forward.5} parent=5 // pred_fallthru
      _
    %p357 = scmp.le.s32.totalorder 1, %s17
    %p358 = scmp.lt.s32.totalorder %s17, 3
    %p359 = pnand %p357, %p358
    %p360 = pneg %p359
    // Predicated region
    $region61: #{block_forward.5} parent=5 // pred_check
      _
    $region62: #{block_forward.5} parent=5 // pred_check_branch
      %362 = sbr.rel (%p359) target = $region64
    $region63: #{block_forward.5} parent=5 // pred_region
      %s363 = ssub.s32 %s17, 1
      %s364 = smul.u32 2, %s22
      %p365 = scmp.lt.s32.totalorder %s364, 3
      %s366 = scalar_select %p365, %s364, 3
      %s367 = smul.addr %s366, 8
      %s368 = scalar_lea.vmem %s0, %s367
      %p369 = pneg %p43
      %p370 = pneg %p40
      %s371 = smul.u32 2, %s22
      %p372 = scmp.lt.s32.totalorder %s371, 3
      %s373 = scalar_select %p372, %s371, 3
      %s374 = scalar_lea.vmem %s1, %s373
      %p375 = pneg %p69
      %p376 = pneg %p66
      %s377 = smul.u32 2, %s22
      %p378 = scmp.lt.s32.totalorder %s377, 3
      %s379 = scalar_select %p378, %s377, 3
      %s380 = scalar_lea.vmem %s2, %s379
      %p381 = pneg %p95
      %p382 = pneg %p92
      %p383 = pneg %p116
      %p384 = pneg %p113
      %p385 = pneg %p137
      %p386 = pneg %p134
      %p387 = pneg %p158
      %p388 = pneg %p155
      %p389 = pneg %p179
      %p390 = pneg %p176
      %p391 = pneg %p200
      %p392 = pneg %p197
      %p393 = pneg %p221
      %p394 = pneg %p218
      %p395 = pneg %p242
      %p396 = pneg %p239
      %p397 = pneg %p263
      %p398 = pneg %p260
      %p399 = pneg %p289
      %p400 = pneg %p286
      %s401 = smul.u32 2, %s22
      %p402 = scmp.lt.s32.totalorder %s401, 3
      %s403 = scalar_select %p402, %s401, 3
      %s404 = smul.addr %s403, 8
      %s405 = scalar_lea.vmem %s11, %s404
      %s406 = smul.u32 2, %s22
      %p407 = scmp.lt.s32.totalorder %s406, 3
      %s408 = scalar_select %p407, %s406, 3
      %s409 = smul.addr %s408, 8
      %s410 = scalar_lea.vmem %s0, %s409
      %s411 = smul.u32 2, %s22
      %s412 = smul.u32 2, %s22
      %p413 = scmp.lt.s32.totalorder %s412, 3
      %s414 = scalar_select %p413, %s412, 3
      %s415 = scalar_lea.vmem %s1, %s414
      %s416 = smul.u32 2, %s22
      %s417 = smul.u32 2, %s22
      %p418 = scmp.lt.s32.totalorder %s417, 3
      %s419 = scalar_select %p418, %s417, 3
      %s420 = scalar_lea.vmem %s2, %s419
      %s421 = smul.u32 2, %s22
      %s422 = smul.u32 2, %s22
      %p423 = scmp.lt.s32.totalorder %s422, 3
      %s424 = scalar_select %p423, %s422, 3
      %s425 = smul.addr %s424, 8
      %s426 = scalar_lea.vmem %s11, %s425
      %s427 = smul.u32 2, %s22
      %v429 = vld [vmem:[%s410] sm:$0xff]
      %v430 = vld [vmem:[%s410 + $0x8] sm:$0xff]
      %v431 = vld [vmem:[%s415] sm:$0x3]
      %v432 = vld [vmem:[%s420] sm:$0x3]
      %v433 = vadd.s32 %v431, 4294967295
      %vm434 = vcmp.ge.s32.totalorder %v433, 0
      %vm435 = vcmp.lt.s32.totalorder %v433, 16
      %vm436 = vmand %vm434, %vm435
      %v437 = vadd.s32 %v432, 4294967295
      %vm438 = vcmp.ge.s32.totalorder %v437, 0
      %vm439 = vmand %vm436, %vm438
      %vm440 = vcmp.lt.s32.totalorder %v437, 16
      %vm441 = vmand %vm439, %vm440
      %v442 = vsel %vm441, 1, 0
      %v443 = vcvt.s32.f32 %v442
      %vm444 = vcmp.ge.s32.totalorder %v432, 0
      %vm445 = vmand %vm436, %vm444
      %vm446 = vcmp.lt.s32.totalorder %v432, 16
      %vm447 = vmand %vm445, %vm446
      %v448 = vsel %vm447, 1, 0
      %v449 = vcvt.s32.f32 %v448
      %v450 = vadd.s32 %v432, 1
      %vm451 = vcmp.ge.s32.totalorder %v450, 0
      %vm452 = vmand %vm436, %vm451
      %vm453 = vcmp.lt.s32.totalorder %v450, 16
      %vm454 = vmand %vm452, %vm453
      %v455 = vsel %vm454, 1, 0
      %v456 = vcvt.s32.f32 %v455
      %vm457 = vcmp.ge.s32.totalorder %v431, 0
      %vm458 = vcmp.lt.s32.totalorder %v431, 16
      %vm459 = vmand %vm457, %vm458
      %vm460 = vmand %vm459, %vm438
      %vm461 = vmand %vm460, %vm440
      %v462 = vsel %vm461, 1, 0
      %v463 = vcvt.s32.f32 %v462
      %vm464 = vmand %vm459, %vm451
      %vm465 = vmand %vm464, %vm453
      %v466 = vsel %vm465, 1, 0
      %v467 = vcvt.s32.f32 %v466
      %v468 = vadd.s32 %v431, 1
      %vm469 = vcmp.ge.s32.totalorder %v468, 0
      %vm470 = vcmp.lt.s32.totalorder %v468, 16
      %vm471 = vmand %vm469, %vm470
      %vm472 = vmand %vm471, %vm438
      %vm473 = vmand %vm472, %vm440
      %v474 = vsel %vm473, 1, 0
      %v475 = vcvt.s32.f32 %v474
      %vm476 = vmand %vm471, %vm444
      %vm477 = vmand %vm476, %vm446
      %v478 = vsel %vm477, 1, 0
      %v479 = vcvt.s32.f32 %v478
      %vm480 = vmand %vm471, %vm451
      %vm481 = vmand %vm480, %vm453
      %v482 = vsel %vm481, 1, 0
      %v483 = vcvt.s32.f32 %v482
      %v484 = vld [vmem:[%s3] sm:$0xff]
      %486 = vset.pattern.permute.xlu0 0
      %487 = vperm.xlu0 %486, %v484
      %v488 = vpop.permute.xlu0 %487
      %v490 = vmul.f32 %v429, %v488
      %v491 = vmul.f32 %v430, %v488
      %v492 = vld [vmem:[%s4] sm:$0xff]
      %494 = vset.pattern.permute.xlu0 0
      %495 = vperm.xlu0 %494, %v492
      %v496 = vpop.permute.xlu0 %495
      %v498 = vadd.f32 %v490, %v496
      %v499 = vadd.f32 %v491, %v496
      %v500 = vld [vmem:[%s5] sm:$0xf]
      %v501 = vld [vmem:[%s5 + $0x4] sm:$0xf]
      %v502 = vld [vmem:[%s5 + $0x8] sm:$0xf]
      %v503 = vld [vmem:[%s5 + $0xc] sm:$0xf]
      %v504 = vpack.c.bf16 %v498, %v498
      %v505 = vpack.c.bf16 %v499, %v499
      %v506 = vld [vmem:[%s6] sm:$0xff]
      %v507 = vld [vmem:[%s6 + $0x8] sm:$0xff]
      %v508 = vld [vmem:[%s6 + $0x10] sm:$0xff]
      %v509 = vld [vmem:[%s6 + $0x18] sm:$0xff]
      %511 = vset.pattern.permute.xlu0 0
      %512 = vperm.xlu0 %511, %v506
      %v513 = vpop.permute.xlu0 %512
      %516 = vset.pattern.permute.xlu0 0
      %517 = vperm.xlu0 %516, %v507
      %v518 = vpop.permute.xlu0 %517
      %521 = vset.pattern.permute.xlu0 0
      %522 = vperm.xlu0 %521, %v508
      %v523 = vpop.permute.xlu0 %522
      %526 = vset.pattern.permute.xlu0 0
      %527 = vperm.xlu0 %526, %v509
      %v528 = vpop.permute.xlu0 %527
      %v534 = vunpack.c.l.b16 %v500
      %v535 = vunpack.c.l.b16 %v501
      %v536 = vunpack.c.l.b16 %v502
      %v537 = vunpack.c.l.b16 %v503
      %v538 = vpack.c.b16 %v535, %v534
      %v539 = vpack.c.b16 %v537, %v536
      %vm540 = vcmask 64512
      %v542 = vsel %vm540, %v538, 0
      %v545 = vsel %vm540, %v539, 0
      %vm547 = vcmask 1043456
      %v549 = vsel %vm547, %v504, 0
      %v552 = vsel %vm547, %v505, 0
      %554 = vmatprep.subr.bf16.mxu0 %v552
      %555 = vmatpush1.bf16.msra.mxu0 %v549
      %556 = vmatprep.subr.bf16.mxu0 0
      %557 = vmatpush1.bf16.msra.mxu0 0
      %558 = vmatprep.subr.bf16.mxu0 0
      %559 = vmatpush1.bf16.msra.mxu0 0
      %560 = vmatprep.subr.bf16.mxu0 0
      %561 = vmatpush1.bf16.msra.mxu0 0
      %562 = vmatprep.subr.bf16.mxu0 0
      %563 = vmatpush1.bf16.msra.mxu0 0
      %564 = vmatprep.subr.bf16.mxu0 0
      %565 = vmatpush1.bf16.msra.mxu0 0
      %566 = vmatprep.subr.bf16.mxu0 0
      %567 = vmatpush1.bf16.msra.mxu0 0
      %568 = vmatprep.subr.bf16.mxu0 0
      %569 = vmatpush1.bf16.msra.mxu0 0
      %570 = vmatprep.subr.bf16.mxu0 0
      %571 = vmatpush1.bf16.msra.mxu0 0
      %572 = vmatprep.subr.bf16.mxu0 0
      %573 = vmatpush1.bf16.msra.mxu0 0
      %574 = vmatprep.subr.bf16.mxu0 0
      %575 = vmatpush1.bf16.msra.mxu0 0
      %576 = vmatprep.subr.bf16.mxu0 0
      %577 = vmatpush1.bf16.msra.mxu0 0
      %578 = vmatprep.subr.bf16.mxu0 0
      %579 = vmatpush1.bf16.msra.mxu0 0
      %580 = vmatprep.subr.bf16.mxu0 0
      %581 = vmatpush1.bf16.msra.mxu0 0
      %582 = vmatprep.subr.bf16.mxu0 0
      %583 = vmatpush1.bf16.msra.mxu0 0
      %584 = vmatprep.subr.bf16.mxu0 0
      %585 = vmatpush1.bf16.msra.mxu0 0
      %586 = vmatprep.mubr.bf16.mxu0 0
      %587 = vmatmul.mubr.bf16.gmra.mrb[0].mxu0 %v542
      %v588 = vpop.f32.mrb[0].mxu0
      %v589 = vadd.f32 %v513, %v588
      %v590 = vpop.f32.mrb[0].mxu0
      %v591 = vadd.f32 %v513, %v590
      %v592 = vpop.f32.mrb[0].mxu0
      %v593 = vadd.f32 %v518, %v592
      %v594 = vpop.f32.mrb[0].mxu0
      %v595 = vadd.f32 %v518, %v594
      %596 = vmatprep.mubr.bf16.mxu0 0
      %597 = vmatmul.mubr.bf16.gmra.mrb[0].mxu0 %v545
      %v598 = vpop.f32.mrb[0].mxu0
      %v599 = vadd.f32 %v523, %v598
      %v600 = vpop.f32.mrb[0].mxu0
      %v601 = vadd.f32 %v523, %v600
      %v602 = vpop.f32.mrb[0].mxu0
      %v603 = vadd.f32 %v528, %v602
      %v604 = vpop.f32.mrb[0].mxu0
      %v605 = vadd.f32 %v528, %v604
      %606 = vdwg.mxu0
      %607 = vrot.lane.b32.xlu0 %v589, 17
      %v608 = vpop.permute.xlu0 %607
      %609 = vrot.lane.b32.xlu0 %v593, 17
      %v610 = vpop.permute.xlu0 %609
      %611 = vrot.lane.b32.xlu0 %v599, 17
      %v612 = vpop.permute.xlu0 %611
      %613 = vrot.lane.b32.xlu0 %v603, 17
      %v614 = vpop.permute.xlu0 %613
      %615 = vrot.lane.b32.xlu0 %v591, 17
      %v616 = vpop.permute.xlu0 %615
      %617 = vrot.lane.b32.xlu0 %v595, 17
      %v618 = vpop.permute.xlu0 %617
      %619 = vrot.lane.b32.xlu0 %v601, 17
      %v620 = vpop.permute.xlu0 %619
      %621 = vrot.lane.b32.xlu0 %v605, 17
      %v622 = vpop.permute.xlu0 %621
      %v623 = vlaneseq
      %v624 = vand.u32 %v623, 127
      %vm625 = vcmp.lt.s32.totalorder %v624, 17
      %v626 = vsel %vm625, %v608, %v616
      %v627 = vsel %vm625, %v610, %v618
      %v628 = vsel %vm625, %v612, %v620
      %v629 = vsel %vm625, %v614, %v622
      %v630 = vsel %vm625, %v616, %v608
      %v631 = vsel %vm625, %v618, %v610
      %v632 = vsel %vm625, %v620, %v612
      %v633 = vsel %vm625, %v622, %v614
      %v635 = vlaneseq
      %v636 = vshrl.u32 %v635, 7
      %v637 = vsub.s32 0, %v636
      %v638 = vrot.slane %v443, %v637
      %v639 = vlaneseq
      %v640 = vshrl.u32 %v639, 7
      %v641 = vsub.s32 1, %v640
      %v642 = vrot.slane %v443, %v641
      %v645 = vmul.f32 %v630, %v638
      %v646 = vmul.f32 %v626, %v642
      %v647 = vmul.f32 %v631, %v638
      %v648 = vmul.f32 %v627, %v642
      %v649 = vmul.f32 %v632, %v638
      %v650 = vmul.f32 %v628, %v642
      %v651 = vmul.f32 %v633, %v638
      %v652 = vmul.f32 %v629, %v642
      %v653 = vpack.c.bf16 %v647, %v645
      %v654 = vpack.c.bf16 %v648, %v646
      %v655 = vpack.c.bf16 %v651, %v649
      %v656 = vpack.c.bf16 %v652, %v650
      %657 = vst [vmem:[#allocation2] sm:$0xff] %v653
      %658 = vst [vmem:[#allocation2 + $0x8] sm:$0xff] %v654
      %659 = vst [vmem:[#allocation2 + $0x10] sm:$0xff] %v655
      %660 = vst [vmem:[#allocation2 + $0x18] sm:$0xff] %v656
      %661 = vrot.lane.b32.xlu0 %v589, 16
      %v662 = vpop.permute.xlu0 %661
      %663 = vrot.lane.b32.xlu0 %v593, 16
      %v664 = vpop.permute.xlu0 %663
      %665 = vrot.lane.b32.xlu0 %v599, 16
      %v666 = vpop.permute.xlu0 %665
      %667 = vrot.lane.b32.xlu0 %v603, 16
      %v668 = vpop.permute.xlu0 %667
      %669 = vrot.lane.b32.xlu0 %v591, 16
      %v670 = vpop.permute.xlu0 %669
      %671 = vrot.lane.b32.xlu0 %v595, 16
      %v672 = vpop.permute.xlu0 %671
      %673 = vrot.lane.b32.xlu0 %v601, 16
      %v674 = vpop.permute.xlu0 %673
      %675 = vrot.lane.b32.xlu0 %v605, 16
      %v676 = vpop.permute.xlu0 %675
      %vm677 = vcmp.lt.s32.totalorder %v624, 16
      %v678 = vsel %vm677, %v662, %v670
      %v679 = vsel %vm677, %v664, %v672
      %v680 = vsel %vm677, %v666, %v674
      %v681 = vsel %vm677, %v668, %v676
      %v682 = vsel %vm677, %v670, %v662
      %v683 = vsel %vm677, %v672, %v664
      %v684 = vsel %vm677, %v674, %v666
      %v685 = vsel %vm677, %v676, %v668
      %v687 = vlaneseq
      %v688 = vshrl.u32 %v687, 7
      %v689 = vsub.s32 0, %v688
      %v690 = vrot.slane %v449, %v689
      %v691 = vlaneseq
      %v692 = vshrl.u32 %v691, 7
      %v693 = vsub.s32 1, %v692
      %v694 = vrot.slane %v449, %v693
      %v697 = vmul.f32 %v682, %v690
      %v698 = vmul.f32 %v678, %v694
      %v699 = vmul.f32 %v683, %v690
      %v700 = vmul.f32 %v679, %v694
      %v701 = vmul.f32 %v684, %v690
      %v702 = vmul.f32 %v680, %v694
      %v703 = vmul.f32 %v685, %v690
      %v704 = vmul.f32 %v681, %v694
      %v705 = vpack.c.bf16 %v699, %v697
      %v706 = vpack.c.bf16 %v700, %v698
      %v707 = vpack.c.bf16 %v703, %v701
      %v708 = vpack.c.bf16 %v704, %v702
      %709 = vst [vmem:[#allocation2 + $0x20] sm:$0xff] %v705
      %710 = vst [vmem:[#allocation2 + $0x28] sm:$0xff] %v706
      %711 = vst [vmem:[#allocation2 + $0x30] sm:$0xff] %v707
      %712 = vst [vmem:[#allocation2 + $0x38] sm:$0xff] %v708
      %713 = vrot.lane.b32.xlu0 %v589, 15
      %v714 = vpop.permute.xlu0 %713
      %715 = vrot.lane.b32.xlu0 %v593, 15
      %v716 = vpop.permute.xlu0 %715
      %717 = vrot.lane.b32.xlu0 %v599, 15
      %v718 = vpop.permute.xlu0 %717
      %719 = vrot.lane.b32.xlu0 %v603, 15
      %v720 = vpop.permute.xlu0 %719
      %721 = vrot.lane.b32.xlu0 %v591, 15
      %v722 = vpop.permute.xlu0 %721
      %723 = vrot.lane.b32.xlu0 %v595, 15
      %v724 = vpop.permute.xlu0 %723
      %725 = vrot.lane.b32.xlu0 %v601, 15
      %v726 = vpop.permute.xlu0 %725
      %727 = vrot.lane.b32.xlu0 %v605, 15
      %v728 = vpop.permute.xlu0 %727
      %vm729 = vcmp.lt.s32.totalorder %v624, 15
      %v730 = vsel %vm729, %v714, %v722
      %v731 = vsel %vm729, %v716, %v724
      %v732 = vsel %vm729, %v718, %v726
      %v733 = vsel %vm729, %v720, %v728
      %v734 = vsel %vm729, %v722, %v714
      %v735 = vsel %vm729, %v724, %v716
      %v736 = vsel %vm729, %v726, %v718
      %v737 = vsel %vm729, %v728, %v720
      %v739 = vlaneseq
      %v740 = vshrl.u32 %v739, 7
      %v741 = vsub.s32 0, %v740
      %v742 = vrot.slane %v456, %v741
      %v743 = vlaneseq
      %v744 = vshrl.u32 %v743, 7
      %v745 = vsub.s32 1, %v744
      %v746 = vrot.slane %v456, %v745
      %v749 = vmul.f32 %v734, %v742
      %v750 = vmul.f32 %v730, %v746
      %v751 = vmul.f32 %v735, %v742
      %v752 = vmul.f32 %v731, %v746
      %v753 = vmul.f32 %v736, %v742
      %v754 = vmul.f32 %v732, %v746
      %v755 = vmul.f32 %v737, %v742
      %v756 = vmul.f32 %v733, %v746
      %v757 = vpack.c.bf16 %v751, %v749
      %v758 = vpack.c.bf16 %v752, %v750
      %v759 = vpack.c.bf16 %v755, %v753
      %v760 = vpack.c.bf16 %v756, %v754
      %761 = vst [vmem:[#allocation2 + $0x40] sm:$0xff] %v757
      %762 = vst [vmem:[#allocation2 + $0x48] sm:$0xff] %v758
      %763 = vst [vmem:[#allocation2 + $0x50] sm:$0xff] %v759
      %764 = vst [vmem:[#allocation2 + $0x58] sm:$0xff] %v760
      %765 = vrot.lane.b32.xlu0 %v589, 1
      %v766 = vpop.permute.xlu0 %765
      %767 = vrot.lane.b32.xlu0 %v593, 1
      %v768 = vpop.permute.xlu0 %767
      %769 = vrot.lane.b32.xlu0 %v599, 1
      %v770 = vpop.permute.xlu0 %769
      %771 = vrot.lane.b32.xlu0 %v603, 1
      %v772 = vpop.permute.xlu0 %771
      %773 = vrot.lane.b32.xlu0 %v591, 1
      %v774 = vpop.permute.xlu0 %773
      %775 = vrot.lane.b32.xlu0 %v595, 1
      %v776 = vpop.permute.xlu0 %775
      %777 = vrot.lane.b32.xlu0 %v601, 1
      %v778 = vpop.permute.xlu0 %777
      %779 = vrot.lane.b32.xlu0 %v605, 1
      %v780 = vpop.permute.xlu0 %779
      %vm781 = vcmp.lt.s32.totalorder %v624, 1
      %v782 = vsel %vm781, %v766, %v774
      %v783 = vsel %vm781, %v768, %v776
      %v784 = vsel %vm781, %v770, %v778
      %v785 = vsel %vm781, %v772, %v780
      %v786 = vsel %vm781, %v774, %v766
      %v787 = vsel %vm781, %v776, %v768
      %v788 = vsel %vm781, %v778, %v770
      %v789 = vsel %vm781, %v780, %v772
      %v791 = vlaneseq
      %v792 = vshrl.u32 %v791, 7
      %v793 = vsub.s32 0, %v792
      %v794 = vrot.slane %v463, %v793
      %v795 = vlaneseq
      %v796 = vshrl.u32 %v795, 7
      %v797 = vsub.s32 1, %v796
      %v798 = vrot.slane %v463, %v797
      %v801 = vmul.f32 %v786, %v794
      %v802 = vmul.f32 %v782, %v798
      %v803 = vmul.f32 %v787, %v794
      %v804 = vmul.f32 %v783, %v798
      %v805 = vmul.f32 %v788, %v794
      %v806 = vmul.f32 %v784, %v798
      %v807 = vmul.f32 %v789, %v794
      %v808 = vmul.f32 %v785, %v798
      %v809 = vpack.c.bf16 %v803, %v801
      %v810 = vpack.c.bf16 %v804, %v802
      %v811 = vpack.c.bf16 %v807, %v805
      %v812 = vpack.c.bf16 %v808, %v806
      %813 = vst [vmem:[#allocation2 + $0x60] sm:$0xff] %v809
      %814 = vst [vmem:[#allocation2 + $0x68] sm:$0xff] %v810
      %815 = vst [vmem:[#allocation2 + $0x70] sm:$0xff] %v811
      %816 = vst [vmem:[#allocation2 + $0x78] sm:$0xff] %v812
      %v817 = vpack.c.bf16 %v593, %v589
      %v818 = vpack.c.bf16 %v595, %v591
      %v819 = vpack.c.bf16 %v603, %v599
      %v820 = vpack.c.bf16 %v605, %v601
      %821 = vst [vmem:[#allocation2 + $0x80] sm:$0xff] %v817
      %822 = vst [vmem:[#allocation2 + $0x88] sm:$0xff] %v818
      %823 = vst [vmem:[#allocation2 + $0x90] sm:$0xff] %v819
      %824 = vst [vmem:[#allocation2 + $0x98] sm:$0xff] %v820
      %825 = vrot.lane.b32.xlu0 %v589, 127
      %v826 = vpop.permute.xlu0 %825
      %827 = vrot.lane.b32.xlu0 %v593, 127
      %v828 = vpop.permute.xlu0 %827
      %829 = vrot.lane.b32.xlu0 %v599, 127
      %v830 = vpop.permute.xlu0 %829
      %831 = vrot.lane.b32.xlu0 %v603, 127
      %v832 = vpop.permute.xlu0 %831
      %833 = vrot.lane.b32.xlu0 %v591, 127
      %v834 = vpop.permute.xlu0 %833
      %835 = vrot.lane.b32.xlu0 %v595, 127
      %v836 = vpop.permute.xlu0 %835
      %837 = vrot.lane.b32.xlu0 %v601, 127
      %v838 = vpop.permute.xlu0 %837
      %839 = vrot.lane.b32.xlu0 %v605, 127
      %v840 = vpop.permute.xlu0 %839
      %vm841 = vcmp.lt.s32.totalorder %v624, 127
      %v842 = vsel %vm841, %v826, %v834
      %v843 = vsel %vm841, %v828, %v836
      %v844 = vsel %vm841, %v830, %v838
      %v845 = vsel %vm841, %v832, %v840
      %v846 = vsel %vm841, %v834, %v826
      %v847 = vsel %vm841, %v836, %v828
      %v848 = vsel %vm841, %v838, %v830
      %v849 = vsel %vm841, %v840, %v832
      %v851 = vlaneseq
      %v852 = vshrl.u32 %v851, 7
      %v853 = vsub.s32 0, %v852
      %v854 = vrot.slane %v467, %v853
      %v855 = vlaneseq
      %v856 = vshrl.u32 %v855, 7
      %v857 = vsub.s32 1, %v856
      %v858 = vrot.slane %v467, %v857
      %v861 = vmul.f32 %v842, %v854
      %v862 = vmul.f32 %v846, %v858
      %v863 = vmul.f32 %v843, %v854
      %v864 = vmul.f32 %v847, %v858
      %v865 = vmul.f32 %v844, %v854
      %v866 = vmul.f32 %v848, %v858
      %v867 = vmul.f32 %v845, %v854
      %v868 = vmul.f32 %v849, %v858
      %v869 = vpack.c.bf16 %v863, %v861
      %v870 = vpack.c.bf16 %v864, %v862
      %v871 = vpack.c.bf16 %v867, %v865
      %v872 = vpack.c.bf16 %v868, %v866
      %873 = vst [vmem:[#allocation2 + $0xa0] sm:$0xff] %v869
      %874 = vst [vmem:[#allocation2 + $0xa8] sm:$0xff] %v870
      %875 = vst [vmem:[#allocation2 + $0xb0] sm:$0xff] %v871
      %876 = vst [vmem:[#allocation2 + $0xb8] sm:$0xff] %v872
      %877 = vrot.lane.b32.xlu0 %v589, 113
      %v878 = vpop.permute.xlu0 %877
      %879 = vrot.lane.b32.xlu0 %v593, 113
      %v880 = vpop.permute.xlu0 %879
      %881 = vrot.lane.b32.xlu0 %v599, 113
      %v882 = vpop.permute.xlu0 %881
      %883 = vrot.lane.b32.xlu0 %v603, 113
      %v884 = vpop.permute.xlu0 %883
      %885 = vrot.lane.b32.xlu0 %v591, 113
      %v886 = vpop.permute.xlu0 %885
      %887 = vrot.lane.b32.xlu0 %v595, 113
      %v888 = vpop.permute.xlu0 %887
      %889 = vrot.lane.b32.xlu0 %v601, 113
      %v890 = vpop.permute.xlu0 %889
      %891 = vrot.lane.b32.xlu0 %v605, 113
      %v892 = vpop.permute.xlu0 %891
      %vm893 = vcmp.lt.s32.totalorder %v624, 113
      %v894 = vsel %vm893, %v878, %v886
      %v895 = vsel %vm893, %v880, %v888
      %v896 = vsel %vm893, %v882, %v890
      %v897 = vsel %vm893, %v884, %v892
      %v898 = vsel %vm893, %v886, %v878
      %v899 = vsel %vm893, %v888, %v880
      %v900 = vsel %vm893, %v890, %v882
      %v901 = vsel %vm893, %v892, %v884
      %v903 = vlaneseq
      %v904 = vshrl.u32 %v903, 7
      %v905 = vsub.s32 0, %v904
      %v906 = vrot.slane %v475, %v905
      %v907 = vlaneseq
      %v908 = vshrl.u32 %v907, 7
      %v909 = vsub.s32 1, %v908
      %v910 = vrot.slane %v475, %v909
      %v913 = vmul.f32 %v894, %v906
      %v914 = vmul.f32 %v898, %v910
      %v915 = vmul.f32 %v895, %v906
      %v916 = vmul.f32 %v899, %v910
      %v917 = vmul.f32 %v896, %v906
      %v918 = vmul.f32 %v900, %v910
      %v919 = vmul.f32 %v897, %v906
      %v920 = vmul.f32 %v901, %v910
      %v921 = vpack.c.bf16 %v915, %v913
      %v922 = vpack.c.bf16 %v916, %v914
      %v923 = vpack.c.bf16 %v919, %v917
      %v924 = vpack.c.bf16 %v920, %v918
      %925 = vst [vmem:[#allocation2 + $0xc0] sm:$0xff] %v921
      %926 = vst [vmem:[#allocation2 + $0xc8] sm:$0xff] %v922
      %927 = vst [vmem:[#allocation2 + $0xd0] sm:$0xff] %v923
      %928 = vst [vmem:[#allocation2 + $0xd8] sm:$0xff] %v924
      %929 = vrot.lane.b32.xlu0 %v589, 112
      %v930 = vpop.permute.xlu0 %929
      %931 = vrot.lane.b32.xlu0 %v593, 112
      %v932 = vpop.permute.xlu0 %931
      %933 = vrot.lane.b32.xlu0 %v599, 112
      %v934 = vpop.permute.xlu0 %933
      %935 = vrot.lane.b32.xlu0 %v603, 112
      %v936 = vpop.permute.xlu0 %935
      %937 = vrot.lane.b32.xlu0 %v591, 112
      %v938 = vpop.permute.xlu0 %937
      %939 = vrot.lane.b32.xlu0 %v595, 112
      %v940 = vpop.permute.xlu0 %939
      %941 = vrot.lane.b32.xlu0 %v601, 112
      %v942 = vpop.permute.xlu0 %941
      %943 = vrot.lane.b32.xlu0 %v605, 112
      %v944 = vpop.permute.xlu0 %943
      %vm945 = vcmp.lt.s32.totalorder %v624, 112
      %v946 = vsel %vm945, %v930, %v938
      %v947 = vsel %vm945, %v932, %v940
      %v948 = vsel %vm945, %v934, %v942
      %v949 = vsel %vm945, %v936, %v944
      %v950 = vsel %vm945, %v938, %v930
      %v951 = vsel %vm945, %v940, %v932
      %v952 = vsel %vm945, %v942, %v934
      %v953 = vsel %vm945, %v944, %v936
      %v955 = vlaneseq
      %v956 = vshrl.u32 %v955, 7
      %v957 = vsub.s32 0, %v956
      %v958 = vrot.slane %v479, %v957
      %v959 = vlaneseq
      %v960 = vshrl.u32 %v959, 7
      %v961 = vsub.s32 1, %v960
      %v962 = vrot.slane %v479, %v961
      %v965 = vmul.f32 %v946, %v958
      %v966 = vmul.f32 %v950, %v962
      %v967 = vmul.f32 %v947, %v958
      %v968 = vmul.f32 %v951, %v962
      %v969 = vmul.f32 %v948, %v958
      %v970 = vmul.f32 %v952, %v962
      %v971 = vmul.f32 %v949, %v958
      %v972 = vmul.f32 %v953, %v962
      %v973 = vpack.c.bf16 %v967, %v965
      %v974 = vpack.c.bf16 %v968, %v966
      %v975 = vpack.c.bf16 %v971, %v969
      %v976 = vpack.c.bf16 %v972, %v970
      %977 = vst [vmem:[#allocation2 + $0xe0] sm:$0xff] %v973
      %978 = vst [vmem:[#allocation2 + $0xe8] sm:$0xff] %v974
      %979 = vst [vmem:[#allocation2 + $0xf0] sm:$0xff] %v975
      %980 = vst [vmem:[#allocation2 + $0xf8] sm:$0xff] %v976
      %981 = vrot.lane.b32.xlu0 %v589, 111
      %v982 = vpop.permute.xlu0 %981
      %983 = vrot.lane.b32.xlu0 %v593, 111
      %v984 = vpop.permute.xlu0 %983
      %985 = vrot.lane.b32.xlu0 %v599, 111
      %v986 = vpop.permute.xlu0 %985
      %987 = vrot.lane.b32.xlu0 %v603, 111
      %v988 = vpop.permute.xlu0 %987
      %989 = vrot.lane.b32.xlu0 %v591, 111
      %v990 = vpop.permute.xlu0 %989
      %991 = vrot.lane.b32.xlu0 %v595, 111
      %v992 = vpop.permute.xlu0 %991
      %993 = vrot.lane.b32.xlu0 %v601, 111
      %v994 = vpop.permute.xlu0 %993
      %995 = vrot.lane.b32.xlu0 %v605, 111
      %v996 = vpop.permute.xlu0 %995
      %vm997 = vcmp.lt.s32.totalorder %v624, 111
      %v998 = vsel %vm997, %v982, %v990
      %v999 = vsel %vm997, %v984, %v992
      %v1000 = vsel %vm997, %v986, %v994
      %v1001 = vsel %vm997, %v988, %v996
      %v1002 = vsel %vm997, %v990, %v982
      %v1003 = vsel %vm997, %v992, %v984
      %v1004 = vsel %vm997, %v994, %v986
      %v1005 = vsel %vm997, %v996, %v988
      %v1007 = vlaneseq
      %v1008 = vshrl.u32 %v1007, 7
      %v1009 = vsub.s32 0, %v1008
      %v1010 = vrot.slane %v483, %v1009
      %v1011 = vlaneseq
      %v1012 = vshrl.u32 %v1011, 7
      %v1013 = vsub.s32 1, %v1012
      %v1014 = vrot.slane %v483, %v1013
      %v1017 = vmul.f32 %v998, %v1010
      %v1018 = vmul.f32 %v1002, %v1014
      %v1019 = vmul.f32 %v999, %v1010
      %v1020 = vmul.f32 %v1003, %v1014
      %v1021 = vmul.f32 %v1000, %v1010
      %v1022 = vmul.f32 %v1004, %v1014
      %v1023 = vmul.f32 %v1001, %v1010
      %v1024 = vmul.f32 %v1005, %v1014
      %v1025 = vpack.c.bf16 %v1019, %v1017
      %v1026 = vpack.c.bf16 %v1020, %v1018
      %v1027 = vpack.c.bf16 %v1023, %v1021
      %v1028 = vpack.c.bf16 %v1024, %v1022
      %1029 = vst [vmem:[#allocation2 + $0x100] sm:$0xff] %v1025
      %1030 = vst [vmem:[#allocation2 + $0x108] sm:$0xff] %v1026
      %1031 = vst [vmem:[#allocation2 + $0x110] sm:$0xff] %v1027
      %1032 = vst [vmem:[#allocation2 + $0x118] sm:$0xff] %v1028
      %v1033 = vld [vmem:[%s7] sm:$0xff]
      %v1034 = vld [vmem:[%s7 + $0x8] sm:$0xf]
      %v1035 = vld [vmem:[%s7 + $0xc] sm:$0xff]
      %v1036 = vld [vmem:[%s7 + $0x14] sm:$0xf]
      %v1037 = vld [vmem:[%s7 + $0x18] sm:$0xff]
      %v1038 = vld [vmem:[%s7 + $0x20] sm:$0xf]
      %v1039 = vld [vmem:[%s7 + $0x24] sm:$0xff]
      %v1040 = vld [vmem:[%s7 + $0x2c] sm:$0xf]
      %v1041 = vld [vmem:[#allocation2] sm:$0xff]
      %v1042 = vld [vmem:[#allocation2 + $0x8] sm:$0xff]
      %v1043 = vld [vmem:[#allocation2 + $0x10] sm:$0xff]
      %v1044 = vld [vmem:[#allocation2 + $0x18] sm:$0xff]
      %v1045 = vld [vmem:[#allocation2 + $0x20] sm:$0xff]
      %v1046 = vld [vmem:[#allocation2 + $0x28] sm:$0xff]
      %v1047 = vld [vmem:[#allocation2 + $0x30] sm:$0xff]
      %v1048 = vld [vmem:[#allocation2 + $0x38] sm:$0xff]
      %v1049 = vld [vmem:[#allocation2 + $0x40] sm:$0xff]
      %v1050 = vld [vmem:[#allocation2 + $0x48] sm:$0xff]
      %v1051 = vld [vmem:[#allocation2 + $0x50] sm:$0xff]
      %v1052 = vld [vmem:[#allocation2 + $0x58] sm:$0xff]
      %v1053 = vld [vmem:[#allocation2 + $0x60] sm:$0xff]
      %v1054 = vld [vmem:[#allocation2 + $0x68] sm:$0xff]
      %v1055 = vld [vmem:[#allocation2 + $0x70] sm:$0xff]
      %v1056 = vld [vmem:[#allocation2 + $0x78] sm:$0xff]
      %v1057 = vld [vmem:[#allocation2 + $0x80] sm:$0xff]
      %v1058 = vld [vmem:[#allocation2 + $0x88] sm:$0xff]
      %v1059 = vld [vmem:[#allocation2 + $0x90] sm:$0xff]
      %v1060 = vld [vmem:[#allocation2 + $0x98] sm:$0xff]
      %v1061 = vld [vmem:[#allocation2 + $0xa0] sm:$0xff]
      %v1062 = vld [vmem:[#allocation2 + $0xa8] sm:$0xff]
      %v1063 = vld [vmem:[#allocation2 + $0xb0] sm:$0xff]
      %v1064 = vld [vmem:[#allocation2 + $0xb8] sm:$0xff]
      %v1065 = vld [vmem:[#allocation2 + $0xc0] sm:$0xff]
      %v1066 = vld [vmem:[#allocation2 + $0xc8] sm:$0xff]
      %v1067 = vld [vmem:[#allocation2 + $0xd0] sm:$0xff]
      %v1068 = vld [vmem:[#allocation2 + $0xd8] sm:$0xff]
      %v1069 = vld [vmem:[#allocation2 + $0xe0] sm:$0xff]
      %v1070 = vld [vmem:[#allocation2 + $0xe8] sm:$0xff]
      %v1071 = vld [vmem:[#allocation2 + $0xf0] sm:$0xff]
      %v1072 = vld [vmem:[#allocation2 + $0xf8] sm:$0xff]
      %v1073 = vld [vmem:[#allocation2 + $0x100] sm:$0xff]
      %v1074 = vld [vmem:[#allocation2 + $0x108] sm:$0xff]
      %v1075 = vld [vmem:[#allocation2 + $0x110] sm:$0xff]
      %v1076 = vld [vmem:[#allocation2 + $0x118] sm:$0xff]
      %v1077 = vld [vmem:[%s8] sm:$0xff]
      %v1078 = vld [vmem:[%s8 + $0x8] sm:$0xff]
      %v1079 = vld [vmem:[%s8 + $0x10] sm:$0xff]
      %v1080 = vld [vmem:[%s8 + $0x18] sm:$0xff]
      %1082 = vset.pattern.permute.xlu0 0
      %1083 = vperm.xlu0 %1082, %v1077
      %v1084 = vpop.permute.xlu0 %1083
      %1087 = vset.pattern.permute.xlu0 0
      %1088 = vperm.xlu0 %1087, %v1078
      %v1089 = vpop.permute.xlu0 %1088
      %1092 = vset.pattern.permute.xlu0 0
      %1093 = vperm.xlu0 %1092, %v1079
      %v1094 = vpop.permute.xlu0 %1093
      %1097 = vset.pattern.permute.xlu0 0
      %1098 = vperm.xlu0 %1097, %v1080
      %v1099 = vpop.permute.xlu0 %1098
      %v1109 = vunpack.c.l.b16 %v1033
      %v1110 = vunpack.c.h.b16 %v1033
      %v1111 = vunpack.c.l.b16 %v1034
      %v1112 = vunpack.c.l.b16 %v1035
      %v1113 = vunpack.c.h.b16 %v1035
      %v1114 = vunpack.c.l.b16 %v1036
      %v1115 = vunpack.c.l.b16 %v1037
      %v1116 = vunpack.c.h.b16 %v1037
      %v1117 = vunpack.c.l.b16 %v1038
      %v1118 = vunpack.c.l.b16 %v1039
      %v1119 = vunpack.c.h.b16 %v1039
      %v1120 = vunpack.c.l.b16 %v1040
      %v1121 = vpack.c.b16 %v1112, %v1109
      %v1122 = vpack.c.b16 %v1113, %v1110
      %v1123 = vpack.c.b16 %v1114, %v1111
      %v1124 = vpack.c.b16 %v1118, %v1115
      %v1125 = vpack.c.b16 %v1119, %v1116
      %v1126 = vpack.c.b16 %v1120, %v1117
      %vm1131 = vcmask 261120
      %v1133 = vsel %vm1131, %v1123, 0
      %v1136 = vsel %vm1131, %v1126, 0
      %1138 = vmatprep.subr.bf16.mxu0 %v1042
      %1139 = vmatpush1.bf16.msra.mxu0 %v1041
      %1140 = vmatprep.subr.bf16.mxu0 %v1044
      %1141 = vmatpush1.bf16.msra.mxu0 %v1043
      %1142 = vmatprep.subr.bf16.mxu0 %v1046
      %1143 = vmatpush1.bf16.msra.mxu0 %v1045
      %1144 = vmatprep.subr.bf16.mxu0 %v1048
      %1145 = vmatpush1.bf16.msra.mxu0 %v1047
      %1146 = vmatprep.subr.bf16.mxu0 %v1050
      %1147 = vmatpush1.bf16.msra.mxu0 %v1049
      %1148 = vmatprep.subr.bf16.mxu0 %v1052
      %1149 = vmatpush1.bf16.msra.mxu0 %v1051
      %1150 = vmatprep.subr.bf16.mxu0 %v1054
      %1151 = vmatpush1.bf16.msra.mxu0 %v1053
      %1152 = vmatprep.subr.bf16.mxu0 %v1056
      %1153 = vmatpush1.bf16.msra.mxu0 %v1055
      %1154 = vmatprep.subr.bf16.mxu0 %v1058
      %1155 = vmatpush1.bf16.msra.mxu0 %v1057
      %1156 = vmatprep.subr.bf16.mxu0 %v1060
      %1157 = vmatpush1.bf16.msra.mxu0 %v1059
      %1158 = vmatprep.subr.bf16.mxu0 %v1062
      %1159 = vmatpush1.bf16.msra.mxu0 %v1061
      %1160 = vmatprep.subr.bf16.mxu0 %v1064
      %1161 = vmatpush1.bf16.msra.mxu0 %v1063
      %1162 = vmatprep.subr.bf16.mxu0 %v1066
      %1163 = vmatpush1.bf16.msra.mxu0 %v1065
      %1164 = vmatprep.subr.bf16.mxu0 %v1068
      %1165 = vmatpush1.bf16.msra.mxu0 %v1067
      %1166 = vmatprep.subr.bf16.mxu0 %v1070
      %1167 = vmatpush1.bf16.msra.mxu0 %v1069
      %1168 = vmatprep.subr.bf16.mxu0 %v1072
      %1169 = vmatpush1.bf16.msra.mxu0 %v1071
      %1170 = vmatprep.mubr.bf16.mxu0 %v1122
      %1171 = vmatmul.mubr.bf16.gmra.mrb[0].mxu0 %v1121
      %v1172 = vpop.f32.mrb[0].mxu0
      %v1173 = vadd.f32 %v1084, %v1172
      %v1174 = vpop.f32.mrb[0].mxu0
      %v1175 = vadd.f32 %v1084, %v1174
      %v1176 = vpop.f32.mrb[0].mxu0
      %v1177 = vadd.f32 %v1089, %v1176
      %v1178 = vpop.f32.mrb[0].mxu0
      %v1179 = vadd.f32 %v1089, %v1178
      %1180 = vmatprep.mubr.bf16.mxu0 %v1125
      %1181 = vmatmul.mubr.bf16.gmra.mrb[0].mxu0 %v1124
      %v1182 = vpop.f32.mrb[0].mxu0
      %v1183 = vadd.f32 %v1094, %v1182
      %v1184 = vpop.f32.mrb[0].mxu0
      %v1185 = vadd.f32 %v1094, %v1184
      %v1186 = vpop.f32.mrb[0].mxu0
      %v1187 = vadd.f32 %v1099, %v1186
      %v1188 = vpop.f32.mrb[0].mxu0
      %v1189 = vadd.f32 %v1099, %v1188
      %1190 = vdwg.mxu0
      %1191 = vmatprep.subr.bf16.mxu0 %v1074
      %1192 = vmatpush1.bf16.msra.mxu0 %v1073
      %1193 = vmatprep.subr.bf16.mxu0 %v1076
      %1194 = vmatpush1.bf16.msra.mxu0 %v1075
      %1195 = vmatprep.subr.bf16.mxu0 0
      %1196 = vmatpush1.bf16.msra.mxu0 0
      %1197 = vmatprep.subr.bf16.mxu0 0
      %1198 = vmatpush1.bf16.msra.mxu0 0
      %1199 = vmatprep.subr.bf16.mxu0 0
      %1200 = vmatpush1.bf16.msra.mxu0 0
      %1201 = vmatprep.subr.bf16.mxu0 0
      %1202 = vmatpush1.bf16.msra.mxu0 0
      %1203 = vmatprep.subr.bf16.mxu0 0
      %1204 = vmatpush1.bf16.msra.mxu0 0
      %1205 = vmatprep.subr.bf16.mxu0 0
      %1206 = vmatpush1.bf16.msra.mxu0 0
      %1207 = vmatprep.subr.bf16.mxu0 0
      %1208 = vmatpush1.bf16.msra.mxu0 0
      %1209 = vmatprep.subr.bf16.mxu0 0
      %1210 = vmatpush1.bf16.msra.mxu0 0
      %1211 = vmatprep.subr.bf16.mxu0 0
      %1212 = vmatpush1.bf16.msra.mxu0 0
      %1213 = vmatprep.subr.bf16.mxu0 0
      %1214 = vmatpush1.bf16.msra.mxu0 0
      %1215 = vmatprep.subr.bf16.mxu0 0
      %1216 = vmatpush1.bf16.msra.mxu0 0
      %1217 = vmatprep.subr.bf16.mxu0 0
      %1218 = vmatpush1.bf16.msra.mxu0 0
      %1219 = vmatprep.subr.bf16.mxu0 0
      %1220 = vmatpush1.bf16.msra.mxu0 0
      %1221 = vmatprep.subr.bf16.mxu0 0
      %1222 = vmatpush1.bf16.msra.mxu0 0
      %1223 = vmatprep.mubr.bf16.mxu0 0
      %1224 = vmatmul.mubr.bf16.gmra.mrb[0].mxu0 %v1133
      %v1225 = vpop.f32.mrb[0].mxu0
      %v1226 = vadd.f32 %v1173, %v1225
      %v1227 = vpop.f32.mrb[0].mxu0
      %v1228 = vadd.f32 %v1175, %v1227
      %v1229 = vpop.f32.mrb[0].mxu0
      %v1230 = vadd.f32 %v1177, %v1229
      %v1231 = vpop.f32.mrb[0].mxu0
      %v1232 = vadd.f32 %v1179, %v1231
      %1233 = vmatprep.mubr.bf16.mxu0 0
      %1234 = vmatmul.mubr.bf16.gmra.mrb[0].mxu0 %v1136
      %v1235 = vpop.f32.mrb[0].mxu0
      %v1236 = vadd.f32 %v1183, %v1235
      %v1237 = vpop.f32.mrb[0].mxu0
      %v1238 = vadd.f32 %v1185, %v1237
      %v1239 = vpop.f32.mrb[0].mxu0
      %v1240 = vadd.f32 %v1187, %v1239
      %v1241 = vpop.f32.mrb[0].mxu0
      %v1242 = vadd.f32 %v1189, %v1241
      %1243 = vdwg.mxu0
      %v1244 = vmul.f32 %v1226, 0.5
      %v1245 = vmul.f32 %v1228, 0.5
      %v1246 = vmul.f32 %v1230, 0.5
      %v1247 = vmul.f32 %v1232, 0.5
      %v1248 = vmul.f32 %v1236, 0.5
      %v1249 = vmul.f32 %v1238, 0.5
      %v1250 = vmul.f32 %v1240, 0.5
      %v1251 = vmul.f32 %v1242, 0.5
      %v1252 = vmul.f32 %v1226, 0.044715
      %v1253 = vmul.f32 %v1228, 0.044715
      %v1254 = vmul.f32 %v1230, 0.044715
      %v1255 = vmul.f32 %v1232, 0.044715
      %v1256 = vmul.f32 %v1236, 0.044715
      %v1257 = vmul.f32 %v1238, 0.044715
      %v1258 = vmul.f32 %v1240, 0.044715
      %v1259 = vmul.f32 %v1242, 0.044715
      %v1260 = vmul.f32 %v1252, %v1226
      %v1261 = vmul.f32 %v1253, %v1228
      %v1262 = vmul.f32 %v1254, %v1230
      %v1263 = vmul.f32 %v1255, %v1232
      %v1264 = vmul.f32 %v1256, %v1236
      %v1265 = vmul.f32 %v1257, %v1238
      %v1266 = vmul.f32 %v1258, %v1240
      %v1267 = vmul.f32 %v1259, %v1242
      %v1268 = vmul.f32 %v1260, %v1226
      %v1269 = vmul.f32 %v1261, %v1228
      %v1270 = vmul.f32 %v1262, %v1230
      %v1271 = vmul.f32 %v1263, %v1232
      %v1272 = vmul.f32 %v1264, %v1236
      %v1273 = vmul.f32 %v1265, %v1238
      %v1274 = vmul.f32 %v1266, %v1240
      %v1275 = vmul.f32 %v1267, %v1242
      %v1276 = vadd.f32 %v1226, %v1268
      %v1277 = vadd.f32 %v1228, %v1269
      %v1278 = vadd.f32 %v1230, %v1270
      %v1279 = vadd.f32 %v1232, %v1271
      %v1280 = vadd.f32 %v1236, %v1272
      %v1281 = vadd.f32 %v1238, %v1273
      %v1282 = vadd.f32 %v1240, %v1274
      %v1283 = vadd.f32 %v1242, %v1275
      %v1284 = vmul.f32 %v1276, 0.7978846
      %v1285 = vmul.f32 %v1277, 0.7978846
      %v1286 = vmul.f32 %v1278, 0.7978846
      %v1287 = vmul.f32 %v1279, 0.7978846
      %v1288 = vmul.f32 %v1280, 0.7978846
      %v1289 = vmul.f32 %v1281, 0.7978846
      %v1290 = vmul.f32 %v1282, 0.7978846
      %v1291 = vmul.f32 %v1283, 0.7978846
      %v1292 = vtanh.pop %v1284
      %v1293 = vtanh.pop %v1285
      %v1294 = vtanh.pop %v1286
      %v1295 = vtanh.pop %v1287
      %v1296 = vtanh.pop %v1288
      %v1297 = vtanh.pop %v1289
      %v1298 = vtanh.pop %v1290
      %v1299 = vtanh.pop %v1291
      %v1300 = vadd.f32 %v1292, 1.0
      %v1301 = vadd.f32 %v1293, 1.0
      %v1302 = vadd.f32 %v1294, 1.0
      %v1303 = vadd.f32 %v1295, 1.0
      %v1304 = vadd.f32 %v1296, 1.0
      %v1305 = vadd.f32 %v1297, 1.0
      %v1306 = vadd.f32 %v1298, 1.0
      %v1307 = vadd.f32 %v1299, 1.0
      %v1308 = vmul.f32 %v1244, %v1300
      %v1309 = vmul.f32 %v1245, %v1301
      %v1310 = vmul.f32 %v1246, %v1302
      %v1311 = vmul.f32 %v1247, %v1303
      %v1312 = vmul.f32 %v1248, %v1304
      %v1313 = vmul.f32 %v1249, %v1305
      %v1314 = vmul.f32 %v1250, %v1306
      %v1315 = vmul.f32 %v1251, %v1307
      %v1316 = vld [vmem:[%s9] sm:$0xf]
      %v1317 = vpack.c.bf16 %v1310, %v1308
      %v1318 = vpack.c.bf16 %v1311, %v1309
      %v1319 = vpack.c.bf16 %v1314, %v1312
      %v1320 = vpack.c.bf16 %v1315, %v1313
      %v1321 = vld [vmem:[%s10] sm:$0xff]
      %1323 = vset.pattern.permute.xlu0 0
      %1324 = vperm.xlu0 %1323, %v1321
      %v1325 = vpop.permute.xlu0 %1324
      %v1328 = vsel %vm1131, %v1316, 0
      %1330 = vmatprep.subr.bf16.mxu0 %v1318
      %1331 = vmatpush1.bf16.msra.mxu0 %v1317
      %1332 = vmatprep.subr.bf16.mxu0 %v1320
      %1333 = vmatpush1.bf16.msra.mxu0 %v1319
      %1334 = vmatprep.subr.bf16.mxu0 0
      %1335 = vmatpush1.bf16.msra.mxu0 0
      %1336 = vmatprep.subr.bf16.mxu0 0
      %1337 = vmatpush1.bf16.msra.mxu0 0
      %1338 = vmatprep.subr.bf16.mxu0 0
      %1339 = vmatpush1.bf16.msra.mxu0 0
      %1340 = vmatprep.subr.bf16.mxu0 0
      %1341 = vmatpush1.bf16.msra.mxu0 0
      %1342 = vmatprep.subr.bf16.mxu0 0
      %1343 = vmatpush1.bf16.msra.mxu0 0
      %1344 = vmatprep.subr.bf16.mxu0 0
      %1345 = vmatpush1.bf16.msra.mxu0 0
      %1346 = vmatprep.subr.bf16.mxu0 0
      %1347 = vmatpush1.bf16.msra.mxu0 0
      %1348 = vmatprep.subr.bf16.mxu0 0
      %1349 = vmatpush1.bf16.msra.mxu0 0
      %1350 = vmatprep.subr.bf16.mxu0 0
      %1351 = vmatpush1.bf16.msra.mxu0 0
      %1352 = vmatprep.subr.bf16.mxu0 0
      %1353 = vmatpush1.bf16.msra.mxu0 0
      %1354 = vmatprep.subr.bf16.mxu0 0
      %1355 = vmatpush1.bf16.msra.mxu0 0
      %1356 = vmatprep.subr.bf16.mxu0 0
      %1357 = vmatpush1.bf16.msra.mxu0 0
      %1358 = vmatprep.subr.bf16.mxu0 0
      %1359 = vmatpush1.bf16.msra.mxu0 0
      %1360 = vmatprep.subr.bf16.mxu0 0
      %1361 = vmatpush1.bf16.msra.mxu0 0
      %1362 = vmatprep.mubr.bf16.mxu0 0
      %1363 = vmatmul.mubr.bf16.gmra.mrb[0].mxu0 %v1328
      %v1364 = vpop.f32.mrb[0].mxu0
      %v1365 = vadd.f32 %v1325, %v1364
      %v1366 = vpop.f32.mrb[0].mxu0
      %v1367 = vadd.f32 %v1325, %v1366
      %v1368 = vpop.f32.mrb[0].mxu0
      %v1369 = vpop.f32.mrb[0].mxu0
      %1370 = vdwg.mxu0
      %v1371 = vadd.f32 %v429, %v1365
      %v1372 = vadd.f32 %v430, %v1367
      %1373 = vst [vmem:[%s426] sm:$0xff] %v1371
      %1374 = vst [vmem:[%s426 + $0x8] sm:$0xff] %v1372
      %s1375 = smul.u32 2, %s22
      %p1376 = scmp.lt.s32.totalorder %s1375, 3
      %s1377 = scalar_select %p1376, %s1375, 3
      %s1378 = smul.addr %s1377, 8
      %s1379 = scalar_lea.vmem %s11, %s1378
      // Predicated region
      $region65: #{block_forward.5} parent=63 // pred_check
        %p1380 = pneg %p286
      $region66: #{block_forward.5} parent=63 // pred_check_branch
        %1382 = sbr.rel (%p1380) target = $region68
      $region67: #{block_forward.5} parent=63 // pred_region
        %s1383 = smul.u32 2, %s22
      $region68: #{block_forward.5} parent=63 // pred_fallthru
        _
    $region64: #{block_forward.5} parent=5 // pred_fallthru
      _
    %p1384 = scmp.le.s32.totalorder 2, %s17
    // Predicated region
    $region69: #{block_forward.5} parent=5 // pred_check
      %p1385 = pneg %p1384
    $region70: #{block_forward.5} parent=5 // pred_check_branch
      %1387 = sbr.rel (%p1385) target = $region72
    $region71: #{block_forward.5} parent=5 // pred_region
      %s1388 = ssub.s32 %s17, 2
      // Predicated region
      $region73: #{block_forward.5} parent=71 // pred_check
        %p1389 = pneg %p292
      $region74: #{block_forward.5} parent=71 // pred_check_branch
        %1391 = sbr.rel (%p1389) target = $region76
      $region75: #{block_forward.5} parent=71 // pred_region
        %s1392 = smul.u32 2, %s23
        %p1393 = scmp.lt.s32.totalorder %s1392, 3
        %s1394 = scalar_select %p1393, %s1392, 3
        %s1395 = smul.addr %s1394, 8
        %s1396 = scalar_lea.vmem %s11, %s1395
      $region76: #{block_forward.5} parent=71 // pred_fallthru
        _
    $region72: #{block_forward.5} parent=5 // pred_fallthru
      _
  $region6: #{block_forward.5} parent=0 // loop_footer
    %s21 = sadd.s32 1, %s17
  $region7: #{block_forward.5} parent=0 // loop_footer_branch
    %16 = sbr.rel target = $region3
  $region8: #{block_forward.5} parent=0 // loop_exit
    _

// kernel: block_forward.4
$region0: #{block_forward.4}
  #allocation0 [shape = 'u32[]', space=smem, size = 0x4, offset = 0x4, fixed_abs, tag = 'smem constant byte address 0x4 - core index']
  #allocation1 [shape = 'u32[144,128]{1,0:T(1,128)}', space=vmem, size = 0x12000, scoped, tag = 'internal scratch']
  #allocation2 [shape = 'bf16[72,256]{1,0:T(8,128)(2,1)}', space=vmem, size = 0x9000, scoped, tag = 'scratch operand']
  %s0 = inlined_call_operand.vmem [shape: f32[8,512], index: 0, kind: input, shape index: {}, may-alias: {0,15}]
  %s1 = inlined_call_operand.vmem [shape: s32[1,512], index: 1, kind: input, shape index: {}]
  %s2 = inlined_call_operand.vmem [shape: s32[1,512], index: 2, kind: input, shape index: {}]
  %s3 = inlined_call_operand.vmem [shape: f32[8,1], index: 3, kind: input, shape index: {}]
  %s4 = inlined_call_operand.vmem [shape: f32[8,1], index: 4, kind: input, shape index: {}]
  %s5 = inlined_call_operand.vmem [shape: bf16[8,72], index: 5, kind: input, shape index: {}]
  %s6 = inlined_call_operand.vmem [shape: f32[8,1], index: 6, kind: input, shape index: {}]
  %s7 = inlined_call_operand.vmem [shape: bf16[8,72], index: 7, kind: input, shape index: {}]
  %s8 = inlined_call_operand.vmem [shape: f32[8,1], index: 8, kind: input, shape index: {}]
  %s9 = inlined_call_operand.vmem [shape: bf16[8,72], index: 9, kind: input, shape index: {}]
  %s10 = inlined_call_operand.vmem [shape: f32[8,1], index: 10, kind: input, shape index: {}]
  %s11 = inlined_call_operand.vmem [shape: bf16[8,8], index: 11, kind: input, shape index: {}]
  %s12 = inlined_call_operand.vmem [shape: f32[8,1], index: 12, kind: input, shape index: {}]
  %s13 = inlined_call_operand.vmem [shape: bf16[8,8], index: 13, kind: input, shape index: {}]
  %s14 = inlined_call_operand.vmem [shape: f32[8,1], index: 14, kind: input, shape index: {}]
  %s15 = inlined_call_operand.vmem [shape: f32[8,512], index: 15, kind: output, shape index: {0}, may-alias: {0,15}]
  %s16 = inlined_call_operand.vmem [shape: f32[2,8,1], index: 16, kind: output, shape index: {1}]
  %s17 = inlined_call_operand.vmem [shape: f32[2,8,1], index: 17, kind: output, shape index: {2}]
  %18 = xla_tuple %s15, %s16, %s17
  %s19 = sld [smem:[#allocation0]]
  $region109: #{block_forward.4} parent=0
    _
  %s21 = ssub.s32 1, %s19
  %s22 = scalar_select 0, %s21, %s19
  loop: start=0, step=1, limit=4
  $region2: #{block_forward.4} parent=0 // loop_pre_header
    _
  $region3: #{block_forward.4} parent=0 // loop_header
    %s24 = sphi 0, %s28
    %p25 = scmp.ge.s32.totalorder %s24, 4
    %s34 = sphi 0, %s36
    %s37 = sphi 0, %s34
    %s38 = sphi 0, %s37
    %s54 = sphi 0, %s38
    %s60 = sphi 0, %s62
    %s63 = sphi 0, %s60
    %s64 = sphi 0, %s63
    %s80 = sphi 0, %s64
    %s86 = sphi 0, %s88
    %s89 = sphi 0, %s86
    %s90 = sphi 0, %s89
    %s106 = sphi 0, %s90
    %s110 = sphi 0, %s110
    %s112 = sphi 0, %s110
    %s113 = sphi 0, %s112
    %s127 = sphi 0, %s113
    %s131 = sphi 0, %s131
    %s133 = sphi 0, %s131
    %s134 = sphi 0, %s133
    %s148 = sphi 0, %s134
    %s152 = sphi 0, %s152
    %s154 = sphi 0, %s152
    %s155 = sphi 0, %s154
    %s169 = sphi 0, %s155
    %s173 = sphi 0, %s173
    %s175 = sphi 0, %s173
    %s176 = sphi 0, %s175
    %s190 = sphi 0, %s176
    %s194 = sphi 0, %s194
    %s196 = sphi 0, %s194
    %s197 = sphi 0, %s196
    %s211 = sphi 0, %s197
    %s215 = sphi 0, %s215
    %s217 = sphi 0, %s215
    %s218 = sphi 0, %s217
    %s232 = sphi 0, %s218
    %s236 = sphi 0, %s236
    %s238 = sphi 0, %s236
    %s239 = sphi 0, %s238
    %s253 = sphi 0, %s239
    %s257 = sphi 0, %s257
    %s259 = sphi 0, %s257
    %s260 = sphi 0, %s259
    %s274 = sphi 0, %s260
    %s278 = sphi 0, %s278
    %s280 = sphi 0, %s278
    %s281 = sphi 0, %s280
    %s295 = sphi 0, %s281
    %s299 = sphi 0, %s299
    %s301 = sphi 0, %s299
    %s302 = sphi 0, %s301
    %s316 = sphi 0, %s302
    %s320 = sphi 0, %s320
    %s322 = sphi 0, %s320
    %s323 = sphi 0, %s322
    %s337 = sphi 0, %s323
    %s341 = sphi 0, %s341
    %s343 = sphi 0, %s341
    %s344 = sphi 0, %s343
    %s358 = sphi 0, %s344
    %s364 = sphi 0, %s366
    %s367 = sphi 0, %s364
    %s368 = sphi 0, %s367
    %s384 = sphi 0, %s368
    %s390 = sphi 0, %s392
    %s393 = sphi 0, %s390
    %s394 = sphi 0, %s393
    %s410 = sphi 0, %s394
    %s416 = sphi 0, %s418
    %s419 = sphi 0, %s416
    %s420 = sphi 0, %s419
    %s436 = sphi 0, %s420
  $region4: #{block_forward.4} parent=0 // loop_header_branch
    %27 = sbr.rel (%p25) target = $region8
  $region5: #{block_forward.4} parent=0 // loop_body
    %s29 = ssub.s32 %s24, 1
    %s30 = ssub.s32 %s24, 2
    %s31 = sadd.s32 %s24, 1
    %s32 = ssub.s32 %s24, %s31
    %p33 = scmp.eq.s32.totalorder %s32, 0
    %s35 = sadd.s32 %s34, 1
    %s36 = scalar_select %p33, %s34, %s35
    %p39 = pneg %p33
    %p40 = scmp.eq.s32.totalorder %s24, 1
    %p41 = por %p39, %p40
    %p42 = scmp.ne.s32.totalorder %s34, %s37
    %p43 = scmp.eq.s32.totalorder %s24, 0
    %p44 = por %p42, %p43
    %p45 = scmp.ne.s32.totalorder %s34, %s37
    %p46 = scmp.eq.s32.totalorder %s29, 1
    %p47 = por %p45, %p46
    %p48 = scmp.ne.s32.totalorder %s37, %s38
    %p49 = scmp.eq.s32.totalorder %s29, 0
    %p50 = por %p48, %p49
    %p51 = scmp.ne.s32.totalorder %s37, %s38
    %p52 = scmp.eq.s32.totalorder %s30, 1
    %p53 = por %p51, %p52
    %p55 = scmp.ne.s32.totalorder %s38, %s54
    %p56 = scmp.eq.s32.totalorder %s30, 0
    %p57 = por %p55, %p56
    %s58 = ssub.s32 %s24, %s31
    %p59 = scmp.eq.s32.totalorder %s58, 0
    %s61 = sadd.s32 %s60, 1
    %s62 = scalar_select %p59, %s60, %s61
    %p65 = pneg %p59
    %p66 = scmp.eq.s32.totalorder %s24, 1
    %p67 = por %p65, %p66
    %p68 = scmp.ne.s32.totalorder %s60, %s63
    %p69 = scmp.eq.s32.totalorder %s24, 0
    %p70 = por %p68, %p69
    %p71 = scmp.ne.s32.totalorder %s60, %s63
    %p72 = scmp.eq.s32.totalorder %s29, 1
    %p73 = por %p71, %p72
    %p74 = scmp.ne.s32.totalorder %s63, %s64
    %p75 = scmp.eq.s32.totalorder %s29, 0
    %p76 = por %p74, %p75
    %p77 = scmp.ne.s32.totalorder %s63, %s64
    %p78 = scmp.eq.s32.totalorder %s30, 1
    %p79 = por %p77, %p78
    %p81 = scmp.ne.s32.totalorder %s64, %s80
    %p82 = scmp.eq.s32.totalorder %s30, 0
    %p83 = por %p81, %p82
    %s84 = ssub.s32 %s24, %s31
    %p85 = scmp.eq.s32.totalorder %s84, 0
    %s87 = sadd.s32 %s86, 1
    %s88 = scalar_select %p85, %s86, %s87
    %p91 = pneg %p85
    %p92 = scmp.eq.s32.totalorder %s24, 1
    %p93 = por %p91, %p92
    %p94 = scmp.ne.s32.totalorder %s86, %s89
    %p95 = scmp.eq.s32.totalorder %s24, 0
    %p96 = por %p94, %p95
    %p97 = scmp.ne.s32.totalorder %s86, %s89
    %p98 = scmp.eq.s32.totalorder %s29, 1
    %p99 = por %p97, %p98
    %p100 = scmp.ne.s32.totalorder %s89, %s90
    %p101 = scmp.eq.s32.totalorder %s29, 0
    %p102 = por %p100, %p101
    %p103 = scmp.ne.s32.totalorder %s89, %s90
    %p104 = scmp.eq.s32.totalorder %s30, 1
    %p105 = por %p103, %p104
    %p107 = scmp.ne.s32.totalorder %s90, %s106
    %p108 = scmp.eq.s32.totalorder %s30, 0
    %p109 = por %p107, %p108
    %s111 = sadd.s32 %s110, 1
    %p114 = scmp.eq.s32.totalorder %s24, 1
    %p115 = scmp.ne.s32.totalorder %s110, %s112
    %p116 = scmp.eq.s32.totalorder %s24, 0
    %p117 = por %p115, %p116
    %p118 = scmp.ne.s32.totalorder %s110, %s112
    %p119 = scmp.eq.s32.totalorder %s29, 1
    %p120 = por %p118, %p119
    %p121 = scmp.ne.s32.totalorder %s112, %s113
    %p122 = scmp.eq.s32.totalorder %s29, 0
    %p123 = por %p121, %p122
    %p124 = scmp.ne.s32.totalorder %s112, %s113
    %p125 = scmp.eq.s32.totalorder %s30, 1
    %p126 = por %p124, %p125
    %p128 = scmp.ne.s32.totalorder %s113, %s127
    %p129 = scmp.eq.s32.totalorder %s30, 0
    %p130 = por %p128, %p129
    %s132 = sadd.s32 %s131, 1
    %p135 = scmp.eq.s32.totalorder %s24, 1
    %p136 = scmp.ne.s32.totalorder %s131, %s133
    %p137 = scmp.eq.s32.totalorder %s24, 0
    %p138 = por %p136, %p137
    %p139 = scmp.ne.s32.totalorder %s131, %s133
    %p140 = scmp.eq.s32.totalorder %s29, 1
    %p141 = por %p139, %p140
    %p142 = scmp.ne.s32.totalorder %s133, %s134
    %p143 = scmp.eq.s32.totalorder %s29, 0
    %p144 = por %p142, %p143
    %p145 = scmp.ne.s32.totalorder %s133, %s134
    %p146 = scmp.eq.s32.totalorder %s30, 1
    %p147 = por %p145, %p146
    %p149 = scmp.ne.s32.totalorder %s134, %s148
    %p150 = scmp.eq.s32.totalorder %s30, 0
    %p151 = por %p149, %p150
    %s153 = sadd.s32 %s152, 1
    %p156 = scmp.eq.s32.totalorder %s24, 1
    %p157 = scmp.ne.s32.totalorder %s152, %s154
    %p158 = scmp.eq.s32.totalorder %s24, 0
    %p159 = por %p157, %p158
    %p160 = scmp.ne.s32.totalorder %s152, %s154
    %p161 = scmp.eq.s32.totalorder %s29, 1
    %p162 = por %p160, %p161
    %p163 = scmp.ne.s32.totalorder %s154, %s155
    %p164 = scmp.eq.s32.totalorder %s29, 0
    %p165 = por %p163, %p164
    %p166 = scmp.ne.s32.totalorder %s154, %s155
    %p167 = scmp.eq.s32.totalorder %s30, 1
    %p168 = por %p166, %p167
    %p170 = scmp.ne.s32.totalorder %s155, %s169
    %p171 = scmp.eq.s32.totalorder %s30, 0
    %p172 = por %p170, %p171
    %s174 = sadd.s32 %s173, 1
    %p177 = scmp.eq.s32.totalorder %s24, 1
    %p178 = scmp.ne.s32.totalorder %s173, %s175
    %p179 = scmp.eq.s32.totalorder %s24, 0
    %p180 = por %p178, %p179
    %p181 = scmp.ne.s32.totalorder %s173, %s175
    %p182 = scmp.eq.s32.totalorder %s29, 1
    %p183 = por %p181, %p182
    %p184 = scmp.ne.s32.totalorder %s175, %s176
    %p185 = scmp.eq.s32.totalorder %s29, 0
    %p186 = por %p184, %p185
    %p187 = scmp.ne.s32.totalorder %s175, %s176
    %p188 = scmp.eq.s32.totalorder %s30, 1
    %p189 = por %p187, %p188
    %p191 = scmp.ne.s32.totalorder %s176, %s190
    %p192 = scmp.eq.s32.totalorder %s30, 0
    %p193 = por %p191, %p192
    %s195 = sadd.s32 %s194, 1
    %p198 = scmp.eq.s32.totalorder %s24, 1
    %p199 = scmp.ne.s32.totalorder %s194, %s196
    %p200 = scmp.eq.s32.totalorder %s24, 0
    %p201 = por %p199, %p200
    %p202 = scmp.ne.s32.totalorder %s194, %s196
    %p203 = scmp.eq.s32.totalorder %s29, 1
    %p204 = por %p202, %p203
    %p205 = scmp.ne.s32.totalorder %s196, %s197
    %p206 = scmp.eq.s32.totalorder %s29, 0
    %p207 = por %p205, %p206
    %p208 = scmp.ne.s32.totalorder %s196, %s197
    %p209 = scmp.eq.s32.totalorder %s30, 1
    %p210 = por %p208, %p209
    %p212 = scmp.ne.s32.totalorder %s197, %s211
    %p213 = scmp.eq.s32.totalorder %s30, 0
    %p214 = por %p212, %p213
    %s216 = sadd.s32 %s215, 1
    %p219 = scmp.eq.s32.totalorder %s24, 1
    %p220 = scmp.ne.s32.totalorder %s215, %s217
    %p221 = scmp.eq.s32.totalorder %s24, 0
    %p222 = por %p220, %p221
    %p223 = scmp.ne.s32.totalorder %s215, %s217
    %p224 = scmp.eq.s32.totalorder %s29, 1
    %p225 = por %p223, %p224
    %p226 = scmp.ne.s32.totalorder %s217, %s218
    %p227 = scmp.eq.s32.totalorder %s29, 0
    %p228 = por %p226, %p227
    %p229 = scmp.ne.s32.totalorder %s217, %s218
    %p230 = scmp.eq.s32.totalorder %s30, 1
    %p231 = por %p229, %p230
    %p233 = scmp.ne.s32.totalorder %s218, %s232
    %p234 = scmp.eq.s32.totalorder %s30, 0
    %p235 = por %p233, %p234
    %s237 = sadd.s32 %s236, 1
    %p240 = scmp.eq.s32.totalorder %s24, 1
    %p241 = scmp.ne.s32.totalorder %s236, %s238
    %p242 = scmp.eq.s32.totalorder %s24, 0
    %p243 = por %p241, %p242
    %p244 = scmp.ne.s32.totalorder %s236, %s238
    %p245 = scmp.eq.s32.totalorder %s29, 1
    %p246 = por %p244, %p245
    %p247 = scmp.ne.s32.totalorder %s238, %s239
    %p248 = scmp.eq.s32.totalorder %s29, 0
    %p249 = por %p247, %p248
    %p250 = scmp.ne.s32.totalorder %s238, %s239
    %p251 = scmp.eq.s32.totalorder %s30, 1
    %p252 = por %p250, %p251
    %p254 = scmp.ne.s32.totalorder %s239, %s253
    %p255 = scmp.eq.s32.totalorder %s30, 0
    %p256 = por %p254, %p255
    %s258 = sadd.s32 %s257, 1
    %p261 = scmp.eq.s32.totalorder %s24, 1
    %p262 = scmp.ne.s32.totalorder %s257, %s259
    %p263 = scmp.eq.s32.totalorder %s24, 0
    %p264 = por %p262, %p263
    %p265 = scmp.ne.s32.totalorder %s257, %s259
    %p266 = scmp.eq.s32.totalorder %s29, 1
    %p267 = por %p265, %p266
    %p268 = scmp.ne.s32.totalorder %s259, %s260
    %p269 = scmp.eq.s32.totalorder %s29, 0
    %p270 = por %p268, %p269
    %p271 = scmp.ne.s32.totalorder %s259, %s260
    %p272 = scmp.eq.s32.totalorder %s30, 1
    %p273 = por %p271, %p272
    %p275 = scmp.ne.s32.totalorder %s260, %s274
    %p276 = scmp.eq.s32.totalorder %s30, 0
    %p277 = por %p275, %p276
    %s279 = sadd.s32 %s278, 1
    %p282 = scmp.eq.s32.totalorder %s24, 1
    %p283 = scmp.ne.s32.totalorder %s278, %s280
    %p284 = scmp.eq.s32.totalorder %s24, 0
    %p285 = por %p283, %p284
    %p286 = scmp.ne.s32.totalorder %s278, %s280
    %p287 = scmp.eq.s32.totalorder %s29, 1
    %p288 = por %p286, %p287
    %p289 = scmp.ne.s32.totalorder %s280, %s281
    %p290 = scmp.eq.s32.totalorder %s29, 0
    %p291 = por %p289, %p290
    %p292 = scmp.ne.s32.totalorder %s280, %s281
    %p293 = scmp.eq.s32.totalorder %s30, 1
    %p294 = por %p292, %p293
    %p296 = scmp.ne.s32.totalorder %s281, %s295
    %p297 = scmp.eq.s32.totalorder %s30, 0
    %p298 = por %p296, %p297
    %s300 = sadd.s32 %s299, 1
    %p303 = scmp.eq.s32.totalorder %s24, 1
    %p304 = scmp.ne.s32.totalorder %s299, %s301
    %p305 = scmp.eq.s32.totalorder %s24, 0
    %p306 = por %p304, %p305
    %p307 = scmp.ne.s32.totalorder %s299, %s301
    %p308 = scmp.eq.s32.totalorder %s29, 1
    %p309 = por %p307, %p308
    %p310 = scmp.ne.s32.totalorder %s301, %s302
    %p311 = scmp.eq.s32.totalorder %s29, 0
    %p312 = por %p310, %p311
    %p313 = scmp.ne.s32.totalorder %s301, %s302
    %p314 = scmp.eq.s32.totalorder %s30, 1
    %p315 = por %p313, %p314
    %p317 = scmp.ne.s32.totalorder %s302, %s316
    %p318 = scmp.eq.s32.totalorder %s30, 0
    %p319 = por %p317, %p318
    %s321 = sadd.s32 %s320, 1
    %p324 = scmp.eq.s32.totalorder %s24, 1
    %p325 = scmp.ne.s32.totalorder %s320, %s322
    %p326 = scmp.eq.s32.totalorder %s24, 0
    %p327 = por %p325, %p326
    %p328 = scmp.ne.s32.totalorder %s320, %s322
    %p329 = scmp.eq.s32.totalorder %s29, 1
    %p330 = por %p328, %p329
    %p331 = scmp.ne.s32.totalorder %s322, %s323
    %p332 = scmp.eq.s32.totalorder %s29, 0
    %p333 = por %p331, %p332
    %p334 = scmp.ne.s32.totalorder %s322, %s323
    %p335 = scmp.eq.s32.totalorder %s30, 1
    %p336 = por %p334, %p335
    %p338 = scmp.ne.s32.totalorder %s323, %s337
    %p339 = scmp.eq.s32.totalorder %s30, 0
    %p340 = por %p338, %p339
    %s342 = sadd.s32 %s341, 1
    %p345 = scmp.eq.s32.totalorder %s24, 1
    %p346 = scmp.ne.s32.totalorder %s341, %s343
    %p347 = scmp.eq.s32.totalorder %s24, 0
    %p348 = por %p346, %p347
    %p349 = scmp.ne.s32.totalorder %s341, %s343
    %p350 = scmp.eq.s32.totalorder %s29, 1
    %p351 = por %p349, %p350
    %p352 = scmp.ne.s32.totalorder %s343, %s344
    %p353 = scmp.eq.s32.totalorder %s29, 0
    %p354 = por %p352, %p353
    %p355 = scmp.ne.s32.totalorder %s343, %s344
    %p356 = scmp.eq.s32.totalorder %s30, 1
    %p357 = por %p355, %p356
    %p359 = scmp.ne.s32.totalorder %s344, %s358
    %p360 = scmp.eq.s32.totalorder %s30, 0
    %p361 = por %p359, %p360
    %s362 = ssub.s32 %s24, %s31
    %p363 = scmp.eq.s32.totalorder %s362, 0
    %s365 = sadd.s32 %s364, 1
    %s366 = scalar_select %p363, %s364, %s365
    %p369 = pneg %p363
    %p370 = scmp.eq.s32.totalorder %s24, 1
    %p371 = por %p369, %p370
    %p372 = scmp.ne.s32.totalorder %s364, %s367
    %p373 = scmp.eq.s32.totalorder %s24, 0
    %p374 = por %p372, %p373
    %p375 = scmp.ne.s32.totalorder %s364, %s367
    %p376 = scmp.eq.s32.totalorder %s29, 1
    %p377 = por %p375, %p376
    %p378 = scmp.ne.s32.totalorder %s367, %s368
    %p379 = scmp.eq.s32.totalorder %s29, 0
    %p380 = por %p378, %p379
    %p381 = scmp.ne.s32.totalorder %s367, %s368
    %p382 = scmp.eq.s32.totalorder %s30, 1
    %p383 = por %p381, %p382
    %p385 = scmp.ne.s32.totalorder %s368, %s384
    %p386 = scmp.eq.s32.totalorder %s30, 0
    %p387 = por %p385, %p386
    %s388 = ssub.s32 %s24, %s31
    %p389 = scmp.eq.s32.totalorder %s388, 0
    %s391 = sadd.s32 %s390, 1
    %s392 = scalar_select %p389, %s390, %s391
    %p395 = pneg %p389
    %p396 = scmp.eq.s32.totalorder %s24, 1
    %p397 = por %p395, %p396
    %p398 = scmp.ne.s32.totalorder %s390, %s393
    %p399 = scmp.eq.s32.totalorder %s24, 0
    %p400 = por %p398, %p399
    %p401 = scmp.ne.s32.totalorder %s390, %s393
    %p402 = scmp.eq.s32.totalorder %s29, 1
    %p403 = por %p401, %p402
    %p404 = scmp.ne.s32.totalorder %s393, %s394
    %p405 = scmp.eq.s32.totalorder %s29, 0
    %p406 = por %p404, %p405
    %p407 = scmp.ne.s32.totalorder %s393, %s394
    %p408 = scmp.eq.s32.totalorder %s30, 1
    %p409 = por %p407, %p408
    %p411 = scmp.ne.s32.totalorder %s394, %s410
    %p412 = scmp.eq.s32.totalorder %s30, 0
    %p413 = por %p411, %p412
    %s414 = ssub.s32 %s24, %s31
    %p415 = scmp.eq.s32.totalorder %s414, 0
    %s417 = sadd.s32 %s416, 1
    %s418 = scalar_select %p415, %s416, %s417
    %p421 = pneg %p415
    %p422 = scmp.eq.s32.totalorder %s24, 1
    %p423 = por %p421, %p422
    %p424 = scmp.ne.s32.totalorder %s416, %s419
    %p425 = scmp.eq.s32.totalorder %s24, 0
    %p426 = por %p424, %p425
    %p427 = scmp.ne.s32.totalorder %s416, %s419
    %p428 = scmp.eq.s32.totalorder %s29, 1
    %p429 = por %p427, %p428
    %p430 = scmp.ne.s32.totalorder %s419, %s420
    %p431 = scmp.eq.s32.totalorder %s29, 0
    %p432 = por %p430, %p431
    %p433 = scmp.ne.s32.totalorder %s419, %s420
    %p434 = scmp.eq.s32.totalorder %s30, 1
    %p435 = por %p433, %p434
    %p437 = scmp.ne.s32.totalorder %s420, %s436
    %p438 = scmp.eq.s32.totalorder %s30, 0
    %p439 = por %p437, %p438
    %p440 = scmp.le.s32.totalorder 1, %s24
    %p441 = scmp.lt.s32.totalorder %s24, 3
    %p442 = pnand %p440, %p441
    %p443 = pneg %p442
    // Predicated region
    $region9: #{block_forward.4} parent=5 // pred_check
      _
    $region10: #{block_forward.4} parent=5 // pred_check_branch
      %445 = sbr.rel (%p442) target = $region12
    $region11: #{block_forward.4} parent=5 // pred_region
      %s446 = ssub.s32 %s24, 1
      // Predicated region
      $region13: #{block_forward.4} parent=11 // pred_check
        %p447 = pneg %p123
      $region14: #{block_forward.4} parent=11 // pred_check_branch
        %449 = sbr.rel (%p447) target = $region16
      $region15: #{block_forward.4} parent=11 // pred_region
        _
      $region16: #{block_forward.4} parent=11 // pred_fallthru
        _
      // Predicated region
      $region17: #{block_forward.4} parent=11 // pred_check
        %p450 = pneg %p144
      $region18: #{block_forward.4} parent=11 // pred_check_branch
        %452 = sbr.rel (%p450) target = $region20
      $region19: #{block_forward.4} parent=11 // pred_region
        _
      $region20: #{block_forward.4} parent=11 // pred_fallthru
        _
      // Predicated region
      $region21: #{block_forward.4} parent=11 // pred_check
        %p453 = pneg %p165
      $region22: #{block_forward.4} parent=11 // pred_check_branch
        %455 = sbr.rel (%p453) target = $region24
      $region23: #{block_forward.4} parent=11 // pred_region
        _
      $region24: #{block_forward.4} parent=11 // pred_fallthru
        _
      // Predicated region
      $region25: #{block_forward.4} parent=11 // pred_check
        %p456 = pneg %p186
      $region26: #{block_forward.4} parent=11 // pred_check_branch
        %458 = sbr.rel (%p456) target = $region28
      $region27: #{block_forward.4} parent=11 // pred_region
        _
      $region28: #{block_forward.4} parent=11 // pred_fallthru
        _
      // Predicated region
      $region29: #{block_forward.4} parent=11 // pred_check
        %p459 = pneg %p207
      $region30: #{block_forward.4} parent=11 // pred_check_branch
        %461 = sbr.rel (%p459) target = $region32
      $region31: #{block_forward.4} parent=11 // pred_region
        _
      $region32: #{block_forward.4} parent=11 // pred_fallthru
        _
      // Predicated region
      $region33: #{block_forward.4} parent=11 // pred_check
        %p462 = pneg %p228
      $region34: #{block_forward.4} parent=11 // pred_check_branch
        %464 = sbr.rel (%p462) target = $region36
      $region35: #{block_forward.4} parent=11 // pred_region
        _
      $region36: #{block_forward.4} parent=11 // pred_fallthru
        _
      // Predicated region
      $region37: #{block_forward.4} parent=11 // pred_check
        %p465 = pneg %p249
      $region38: #{block_forward.4} parent=11 // pred_check_branch
        %467 = sbr.rel (%p465) target = $region40
      $region39: #{block_forward.4} parent=11 // pred_region
        _
      $region40: #{block_forward.4} parent=11 // pred_fallthru
        _
      // Predicated region
      $region41: #{block_forward.4} parent=11 // pred_check
        %p468 = pneg %p270
      $region42: #{block_forward.4} parent=11 // pred_check_branch
        %470 = sbr.rel (%p468) target = $region44
      $region43: #{block_forward.4} parent=11 // pred_region
        _
      $region44: #{block_forward.4} parent=11 // pred_fallthru
        _
      // Predicated region
      $region45: #{block_forward.4} parent=11 // pred_check
        %p471 = pneg %p291
      $region46: #{block_forward.4} parent=11 // pred_check_branch
        %473 = sbr.rel (%p471) target = $region48
      $region47: #{block_forward.4} parent=11 // pred_region
        _
      $region48: #{block_forward.4} parent=11 // pred_fallthru
        _
      // Predicated region
      $region49: #{block_forward.4} parent=11 // pred_check
        %p474 = pneg %p312
      $region50: #{block_forward.4} parent=11 // pred_check_branch
        %476 = sbr.rel (%p474) target = $region52
      $region51: #{block_forward.4} parent=11 // pred_region
        _
      $region52: #{block_forward.4} parent=11 // pred_fallthru
        _
      // Predicated region
      $region53: #{block_forward.4} parent=11 // pred_check
        %p477 = pneg %p333
      $region54: #{block_forward.4} parent=11 // pred_check_branch
        %479 = sbr.rel (%p477) target = $region56
      $region55: #{block_forward.4} parent=11 // pred_region
        _
      $region56: #{block_forward.4} parent=11 // pred_fallthru
        _
      // Predicated region
      $region57: #{block_forward.4} parent=11 // pred_check
        %p480 = pneg %p354
      $region58: #{block_forward.4} parent=11 // pred_check_branch
        %482 = sbr.rel (%p480) target = $region60
      $region59: #{block_forward.4} parent=11 // pred_region
        _
      $region60: #{block_forward.4} parent=11 // pred_fallthru
        _
    $region12: #{block_forward.4} parent=5 // pred_fallthru
      _
    %p483 = scmp.lt.s32.totalorder %s24, 2
    // Predicated region
    $region61: #{block_forward.4} parent=5 // pred_check
      %p484 = pneg %p483
    $region62: #{block_forward.4} parent=5 // pred_check_branch
      %486 = sbr.rel (%p484) target = $region64
    $region63: #{block_forward.4} parent=5 // pred_region
      // Predicated region
      $region65: #{block_forward.4} parent=63 // pred_check
        %p487 = pneg %p44
      $region66: #{block_forward.4} parent=63 // pred_check_branch
        %489 = sbr.rel (%p487) target = $region68
      $region67: #{block_forward.4} parent=63 // pred_region
        %s490 = smul.u32 2, %s24
        %p491 = scmp.lt.s32.totalorder %s490, 3
        %s492 = scalar_select %p491, %s490, 3
        %s493 = smul.addr %s492, 8
        %s494 = scalar_lea.vmem %s0, %s493
        %s495 = smul.u32 2, %s24
      $region68: #{block_forward.4} parent=63 // pred_fallthru
        _
      // Predicated region
      $region69: #{block_forward.4} parent=63 // pred_check
        %p496 = pneg %p70
      $region70: #{block_forward.4} parent=63 // pred_check_branch
        %498 = sbr.rel (%p496) target = $region72
      $region71: #{block_forward.4} parent=63 // pred_region
        %s499 = smul.u32 2, %s24
        %p500 = scmp.lt.s32.totalorder %s499, 3
        %s501 = scalar_select %p500, %s499, 3
        %s502 = scalar_lea.vmem %s1, %s501
        %s503 = smul.u32 2, %s24
      $region72: #{block_forward.4} parent=63 // pred_fallthru
        _
      // Predicated region
      $region73: #{block_forward.4} parent=63 // pred_check
        %p504 = pneg %p96
      $region74: #{block_forward.4} parent=63 // pred_check_branch
        %506 = sbr.rel (%p504) target = $region76
      $region75: #{block_forward.4} parent=63 // pred_region
        %s507 = smul.u32 2, %s24
        %p508 = scmp.lt.s32.totalorder %s507, 3
        %s509 = scalar_select %p508, %s507, 3
        %s510 = scalar_lea.vmem %s2, %s509
        %s511 = smul.u32 2, %s24
      $region76: #{block_forward.4} parent=63 // pred_fallthru
        _
    $region64: #{block_forward.4} parent=5 // pred_fallthru
      _
    %p512 = scmp.le.s32.totalorder 1, %s24
    %p513 = scmp.lt.s32.totalorder %s24, 3
    %p514 = pnand %p512, %p513
    %p515 = pneg %p514
    // Predicated region
    $region77: #{block_forward.4} parent=5 // pred_check
      _
    $region78: #{block_forward.4} parent=5 // pred_check_branch
      %517 = sbr.rel (%p514) target = $region80
    $region79: #{block_forward.4} parent=5 // pred_region
      %s518 = ssub.s32 %s24, 1
      %s519 = smul.u32 2, %s29
      %p520 = scmp.lt.s32.totalorder %s519, 3
      %s521 = scalar_select %p520, %s519, 3
      %s522 = smul.addr %s521, 8
      %s523 = scalar_lea.vmem %s0, %s522
      %p524 = pneg %p50
      %p525 = pneg %p47
      %s526 = smul.u32 2, %s29
      %p527 = scmp.lt.s32.totalorder %s526, 3
      %s528 = scalar_select %p527, %s526, 3
      %s529 = scalar_lea.vmem %s1, %s528
      %p530 = pneg %p76
      %p531 = pneg %p73
      %s532 = smul.u32 2, %s29
      %p533 = scmp.lt.s32.totalorder %s532, 3
      %s534 = scalar_select %p533, %s532, 3
      %s535 = scalar_lea.vmem %s2, %s534
      %p536 = pneg %p102
      %p537 = pneg %p99
      %p538 = pneg %p123
      %p539 = pneg %p120
      %p540 = pneg %p144
      %p541 = pneg %p141
      %p542 = pneg %p165
      %p543 = pneg %p162
      %p544 = pneg %p186
      %p545 = pneg %p183
      %p546 = pneg %p207
      %p547 = pneg %p204
      %p548 = pneg %p228
      %p549 = pneg %p225
      %p550 = pneg %p249
      %p551 = pneg %p246
      %p552 = pneg %p270
      %p553 = pneg %p267
      %p554 = pneg %p291
      %p555 = pneg %p288
      %p556 = pneg %p312
      %p557 = pneg %p309
      %p558 = pneg %p333
      %p559 = pneg %p330
      %p560 = pneg %p354
      %p561 = pneg %p351
      %p562 = pneg %p380
      %p563 = pneg %p377
      %s564 = smul.u32 2, %s29
      %p565 = scmp.lt.s32.totalorder %s564, 3
      %s566 = scalar_select %p565, %s564, 3
      %s567 = smul.addr %s566, 8
      %s568 = scalar_lea.vmem %s15, %s567
      %p569 = pneg %p406
      %p570 = pneg %p403
      %p571 = scmp.lt.s32.totalorder %s29, 1
      %s572 = scalar_select %p571, %s29, 1
      %s573 = smul.addr %s572, 8
      %s574 = scalar_lea.vmem %s16, %s573
      %p575 = pneg %p432
      %p576 = pneg %p429
      %p577 = scmp.lt.s32.totalorder %s29, 1
      %s578 = scalar_select %p577, %s29, 1
      %s579 = smul.addr %s578, 8
      %s580 = scalar_lea.vmem %s17, %s579
      %s581 = smul.u32 2, %s29
      %p582 = scmp.lt.s32.totalorder %s581, 3
      %s583 = scalar_select %p582, %s581, 3
      %s584 = smul.addr %s583, 8
      %s585 = scalar_lea.vmem %s0, %s584
      %s586 = smul.u32 2, %s29
      %s587 = smul.u32 2, %s29
      %p588 = scmp.lt.s32.totalorder %s587, 3
      %s589 = scalar_select %p588, %s587, 3
      %s590 = scalar_lea.vmem %s1, %s589
      %s591 = smul.u32 2, %s29
      %s592 = smul.u32 2, %s29
      %p593 = scmp.lt.s32.totalorder %s592, 3
      %s594 = scalar_select %p593, %s592, 3
      %s595 = scalar_lea.vmem %s2, %s594
      %s596 = smul.u32 2, %s29
      %s597 = smul.u32 2, %s29
      %p598 = scmp.lt.s32.totalorder %s597, 3
      %s599 = scalar_select %p598, %s597, 3
      %s600 = smul.addr %s599, 8
      %s601 = scalar_lea.vmem %s15, %s600
      %s602 = smul.u32 2, %s29
      %p603 = scmp.lt.s32.totalorder %s29, 1
      %s604 = scalar_select %p603, %s29, 1
      %s605 = smul.addr %s604, 8
      %s606 = scalar_lea.vmem %s16, %s605
      %p607 = scmp.lt.s32.totalorder %s29, 1
      %s608 = scalar_select %p607, %s29, 1
      %s609 = smul.addr %s608, 8
      %s610 = scalar_lea.vmem %s17, %s609
      %v612 = vld [vmem:[%s585] sm:$0xff]
      %v613 = vld [vmem:[%s585 + $0x8] sm:$0xff]
      %v614 = vld [vmem:[%s590] sm:$0x3]
      %v615 = vld [vmem:[%s595] sm:$0x3]
      %v616 = vadd.s32 %v614, 4294967295
      %vm617 = vcmp.ge.s32.totalorder %v616, 0
      %vm618 = vcmp.lt.s32.totalorder %v616, 16
      %vm619 = vmand %vm617, %vm618
      %v620 = vadd.s32 %v615, 4294967295
      %vm621 = vcmp.ge.s32.totalorder %v620, 0
      %vm622 = vmand %vm619, %vm621
      %vm623 = vcmp.lt.s32.totalorder %v620, 16
      %vm624 = vmand %vm622, %vm623
      %v625 = vsel %vm624, 1, 0
      %v626 = vcvt.s32.f32 %v625
      %vm627 = vcmp.ge.s32.totalorder %v615, 0
      %vm628 = vmand %vm619, %vm627
      %vm629 = vcmp.lt.s32.totalorder %v615, 16
      %vm630 = vmand %vm628, %vm629
      %v631 = vsel %vm630, 1, 0
      %v632 = vcvt.s32.f32 %v631
      %v633 = vadd.s32 %v615, 1
      %vm634 = vcmp.ge.s32.totalorder %v633, 0
      %vm635 = vmand %vm619, %vm634
      %vm636 = vcmp.lt.s32.totalorder %v633, 16
      %vm637 = vmand %vm635, %vm636
      %v638 = vsel %vm637, 1, 0
      %v639 = vcvt.s32.f32 %v638
      %vm640 = vcmp.ge.s32.totalorder %v614, 0
      %vm641 = vcmp.lt.s32.totalorder %v614, 16
      %vm642 = vmand %vm640, %vm641
      %vm643 = vmand %vm642, %vm621
      %vm644 = vmand %vm643, %vm623
      %v645 = vsel %vm644, 1, 0
      %v646 = vcvt.s32.f32 %v645
      %vm647 = vmand %vm642, %vm634
      %vm648 = vmand %vm647, %vm636
      %v649 = vsel %vm648, 1, 0
      %v650 = vcvt.s32.f32 %v649
      %v651 = vadd.s32 %v614, 1
      %vm652 = vcmp.ge.s32.totalorder %v651, 0
      %vm653 = vcmp.lt.s32.totalorder %v651, 16
      %vm654 = vmand %vm652, %vm653
      %vm655 = vmand %vm654, %vm621
      %vm656 = vmand %vm655, %vm623
      %v657 = vsel %vm656, 1, 0
      %v658 = vcvt.s32.f32 %v657
      %vm659 = vmand %vm654, %vm627
      %vm660 = vmand %vm659, %vm629
      %v661 = vsel %vm660, 1, 0
      %v662 = vcvt.s32.f32 %v661
      %vm663 = vmand %vm654, %vm634
      %vm664 = vmand %vm663, %vm636
      %v665 = vsel %vm664, 1, 0
      %v666 = vcvt.s32.f32 %v665
      %v667 = vadd.s32 %v614, 4294967293
      %vm668 = vcmp.ge.s32.totalorder %v667, 0
      %vm669 = vcmp.lt.s32.totalorder %v667, 16
      %vm670 = vmand %vm668, %vm669
      %v671 = vadd.s32 %v615, 4294967293
      %vm672 = vcmp.ge.s32.totalorder %v671, 0
      %vm673 = vmand %vm670, %vm672
      %vm674 = vcmp.lt.s32.totalorder %v671, 16
      %vm675 = vmand %vm673, %vm674
      %v676 = vsel %vm675, 1, 0
      %v677 = vcvt.s32.f32 %v676
      %vm678 = vmand %vm670, %vm627
      %vm679 = vmand %vm678, %vm629
      %v680 = vsel %vm679, 1, 0
      %v681 = vcvt.s32.f32 %v680
      %v682 = vadd.s32 %v615, 3
      %vm683 = vcmp.ge.s32.totalorder %v682, 0
      %vm684 = vmand %vm670, %vm683
      %vm685 = vcmp.lt.s32.totalorder %v682, 16
      %vm686 = vmand %vm684, %vm685
      %v687 = vsel %vm686, 1, 0
      %v688 = vcvt.s32.f32 %v687
      %vm689 = vmand %vm642, %vm672
      %vm690 = vmand %vm689, %vm674
      %v691 = vsel %vm690, 1, 0
      %v692 = vcvt.s32.f32 %v691
      %vm693 = vmand %vm642, %vm683
      %vm694 = vmand %vm693, %vm685
      %v695 = vsel %vm694, 1, 0
      %v696 = vcvt.s32.f32 %v695
      %v697 = vadd.s32 %v614, 3
      %vm698 = vcmp.ge.s32.totalorder %v697, 0
      %vm699 = vcmp.lt.s32.totalorder %v697, 16
      %vm700 = vmand %vm698, %vm699
      %vm701 = vmand %vm700, %vm672
      %vm702 = vmand %vm701, %vm674
      %v703 = vsel %vm702, 1, 0
      %v704 = vcvt.s32.f32 %v703
      %vm705 = vmand %vm700, %vm627
      %vm706 = vmand %vm705, %vm629
      %v707 = vsel %vm706, 1, 0
      %v708 = vcvt.s32.f32 %v707
      %vm709 = vmand %vm700, %vm683
      %vm710 = vmand %vm709, %vm685
      %v711 = vsel %vm710, 1, 0
      %v712 = vcvt.s32.f32 %v711
      %v713 = vld [vmem:[%s3] sm:$0xff]
      %715 = vset.pattern.permute.xlu0 0
      %716 = vperm.xlu0 %715, %v713
      %v717 = vpop.permute.xlu0 %716
      %v719 = vmul.f32 %v612, %v717
      %v720 = vmul.f32 %v613, %v717
      %v721 = vld [vmem:[%s4] sm:$0xff]
      %723 = vset.pattern.permute.xlu0 0
      %724 = vperm.xlu0 %723, %v721
      %v725 = vpop.permute.xlu0 %724
      %v727 = vadd.f32 %v719, %v725
      %v728 = vadd.f32 %v720, %v725
      %729 = vrot.lane.b32.xlu0 %v727, 17
      %v730 = vpop.permute.xlu0 %729
      %731 = vrot.lane.b32.xlu0 %v728, 17
      %v732 = vpop.permute.xlu0 %731
      %v733 = vlaneseq
      %v734 = vand.u32 %v733, 127
      %vm735 = vcmp.lt.s32.totalorder %v734, 17
      %v736 = vsel %vm735, %v730, %v732
      %v737 = vsel %vm735, %v732, %v730
      %v739 = vlaneseq
      %v740 = vshrl.u32 %v739, 7
      %v741 = vsub.s32 0, %v740
      %v742 = vrot.slane %v626, %v741
      %v743 = vlaneseq
      %v744 = vshrl.u32 %v743, 7
      %v745 = vsub.s32 1, %v744
      %v746 = vrot.slane %v626, %v745
      %v749 = vmul.f32 %v737, %v742
      %v750 = vmul.f32 %v736, %v746
      %v751 = vpack.c.bf16 %v749, %v749
      %v752 = vpack.c.bf16 %v750, %v750
      %v755 = vunpack.c.l.b16 %v751
      %v756 = vunpack.c.l.b16 %v752
      %v757 = vpack.c.b16 %v756, %v755
      %759 = vst [vmem:[#allocation2] sm:$0xff] %v757
      %760 = vrot.lane.b32.xlu0 %v727, 16
      %v761 = vpop.permute.xlu0 %760
      %762 = vrot.lane.b32.xlu0 %v728, 16
      %v763 = vpop.permute.xlu0 %762
      %vm764 = vcmp.lt.s32.totalorder %v734, 16
      %v765 = vsel %vm764, %v761, %v763
      %v766 = vsel %vm764, %v763, %v761
      %v768 = vlaneseq
      %v769 = vshrl.u32 %v768, 7
      %v770 = vsub.s32 0, %v769
      %v771 = vrot.slane %v632, %v770
      %v772 = vlaneseq
      %v773 = vshrl.u32 %v772, 7
      %v774 = vsub.s32 1, %v773
      %v775 = vrot.slane %v632, %v774
      %v778 = vmul.f32 %v766, %v771
      %v779 = vmul.f32 %v765, %v775
      %v780 = vpack.c.bf16 %v778, %v778
      %v781 = vpack.c.bf16 %v779, %v779
      %v784 = vunpack.c.l.b16 %v780
      %v785 = vunpack.c.l.b16 %v781
      %v786 = vpack.c.b16 %v785, %v784
      %788 = vst [vmem:[#allocation2 + $0x8] sm:$0xff] %v786
      %789 = vrot.lane.b32.xlu0 %v727, 15
      %v790 = vpop.permute.xlu0 %789
      %791 = vrot.lane.b32.xlu0 %v728, 15
      %v792 = vpop.permute.xlu0 %791
      %vm793 = vcmp.lt.s32.totalorder %v734, 15
      %v794 = vsel %vm793, %v790, %v792
      %v795 = vsel %vm793, %v792, %v790
      %v797 = vlaneseq
      %v798 = vshrl.u32 %v797, 7
      %v799 = vsub.s32 0, %v798
      %v800 = vrot.slane %v639, %v799
      %v801 = vlaneseq
      %v802 = vshrl.u32 %v801, 7
      %v803 = vsub.s32 1, %v802
      %v804 = vrot.slane %v639, %v803
      %v807 = vmul.f32 %v795, %v800
      %v808 = vmul.f32 %v794, %v804
      %v809 = vpack.c.bf16 %v807, %v807
      %v810 = vpack.c.bf16 %v808, %v808
      %v813 = vunpack.c.l.b16 %v809
      %v814 = vunpack.c.l.b16 %v810
      %v815 = vpack.c.b16 %v814, %v813
      %817 = vst [vmem:[#allocation2 + $0x10] sm:$0xff] %v815
      %818 = vrot.lane.b32.xlu0 %v727, 1
      %v819 = vpop.permute.xlu0 %818
      %820 = vrot.lane.b32.xlu0 %v728, 1
      %v821 = vpop.permute.xlu0 %820
      %vm822 = vcmp.lt.s32.totalorder %v734, 1
      %v823 = vsel %vm822, %v819, %v821
      %v824 = vsel %vm822, %v821, %v819
      %v826 = vlaneseq
      %v827 = vshrl.u32 %v826, 7
      %v828 = vsub.s32 0, %v827
      %v829 = vrot.slane %v646, %v828
      %v830 = vlaneseq
      %v831 = vshrl.u32 %v830, 7
      %v832 = vsub.s32 1, %v831
      %v833 = vrot.slane %v646, %v832
      %v836 = vmul.f32 %v824, %v829
      %v837 = vmul.f32 %v823, %v833
      %v838 = vpack.c.bf16 %v836, %v836
      %v839 = vpack.c.bf16 %v837, %v837
      %v842 = vunpack.c.l.b16 %v838
      %v843 = vunpack.c.l.b16 %v839
      %v844 = vpack.c.b16 %v843, %v842
      %846 = vst [vmem:[#allocation2 + $0x18] sm:$0xff] %v844
      %v847 = vpack.c.bf16 %v727, %v727
      %v848 = vpack.c.bf16 %v728, %v728
      %v851 = vunpack.c.l.b16 %v847
      %v852 = vunpack.c.l.b16 %v848
      %v853 = vpack.c.b16 %v852, %v851
      %855 = vst [vmem:[#allocation2 + $0x20] sm:$0xff] %v853
      %856 = vrot.lane.b32.xlu0 %v727, 127
      %v857 = vpop.permute.xlu0 %856
      %858 = vrot.lane.b32.xlu0 %v728, 127
      %v859 = vpop.permute.xlu0 %858
      %vm860 = vcmp.lt.s32.totalorder %v734, 127
      %v861 = vsel %vm860, %v857, %v859
      %v862 = vsel %vm860, %v859, %v857
      %v864 = vlaneseq
      %v865 = vshrl.u32 %v864, 7
      %v866 = vsub.s32 0, %v865
      %v867 = vrot.slane %v650, %v866
      %v868 = vlaneseq
      %v869 = vshrl.u32 %v868, 7
      %v870 = vsub.s32 1, %v869
      %v871 = vrot.slane %v650, %v870
      %v874 = vmul.f32 %v861, %v867
      %v875 = vmul.f32 %v862, %v871
      %v876 = vpack.c.bf16 %v874, %v874
      %v877 = vpack.c.bf16 %v875, %v875
      %v880 = vunpack.c.l.b16 %v876
      %v881 = vunpack.c.l.b16 %v877
      %v882 = vpack.c.b16 %v881, %v880
      %884 = vst [vmem:[#allocation2 + $0x28] sm:$0xff] %v882
      %885 = vrot.lane.b32.xlu0 %v727, 113
      %v886 = vpop.permute.xlu0 %885
      %887 = vrot.lane.b32.xlu0 %v728, 113
      %v888 = vpop.permute.xlu0 %887
      %vm889 = vcmp.lt.s32.totalorder %v734, 113
      %v890 = vsel %vm889, %v886, %v888
      %v891 = vsel %vm889, %v888, %v886
      %v893 = vlaneseq
      %v894 = vshrl.u32 %v893, 7
      %v895 = vsub.s32 0, %v894
      %v896 = vrot.slane %v658, %v895
      %v897 = vlaneseq
      %v898 = vshrl.u32 %v897, 7
      %v899 = vsub.s32 1, %v898
      %v900 = vrot.slane %v658, %v899
      %v903 = vmul.f32 %v890, %v896
      %v904 = vmul.f32 %v891, %v900
      %v905 = vpack.c.bf16 %v903, %v903
      %v906 = vpack.c.bf16 %v904, %v904
      %v909 = vunpack.c.l.b16 %v905
      %v910 = vunpack.c.l.b16 %v906
      %v911 = vpack.c.b16 %v910, %v909
      %913 = vst [vmem:[#allocation2 + $0x30] sm:$0xff] %v911
      %914 = vrot.lane.b32.xlu0 %v727, 112
      %v915 = vpop.permute.xlu0 %914
      %916 = vrot.lane.b32.xlu0 %v728, 112
      %v917 = vpop.permute.xlu0 %916
      %vm918 = vcmp.lt.s32.totalorder %v734, 112
      %v919 = vsel %vm918, %v915, %v917
      %v920 = vsel %vm918, %v917, %v915
      %v922 = vlaneseq
      %v923 = vshrl.u32 %v922, 7
      %v924 = vsub.s32 0, %v923
      %v925 = vrot.slane %v662, %v924
      %v926 = vlaneseq
      %v927 = vshrl.u32 %v926, 7
      %v928 = vsub.s32 1, %v927
      %v929 = vrot.slane %v662, %v928
      %v932 = vmul.f32 %v919, %v925
      %v933 = vmul.f32 %v920, %v929
      %v934 = vpack.c.bf16 %v932, %v932
      %v935 = vpack.c.bf16 %v933, %v933
      %v938 = vunpack.c.l.b16 %v934
      %v939 = vunpack.c.l.b16 %v935
      %v940 = vpack.c.b16 %v939, %v938
      %942 = vst [vmem:[#allocation2 + $0x38] sm:$0xff] %v940
      %943 = vrot.lane.b32.xlu0 %v727, 111
      %v944 = vpop.permute.xlu0 %943
      %945 = vrot.lane.b32.xlu0 %v728, 111
      %v946 = vpop.permute.xlu0 %945
      %vm947 = vcmp.lt.s32.totalorder %v734, 111
      %v948 = vsel %vm947, %v944, %v946
      %v949 = vsel %vm947, %v946, %v944
      %v951 = vlaneseq
      %v952 = vshrl.u32 %v951, 7
      %v953 = vsub.s32 0, %v952
      %v954 = vrot.slane %v666, %v953
      %v955 = vlaneseq
      %v956 = vshrl.u32 %v955, 7
      %v957 = vsub.s32 1, %v956
      %v958 = vrot.slane %v666, %v957
      %v961 = vmul.f32 %v948, %v954
      %v962 = vmul.f32 %v949, %v958
      %v963 = vpack.c.bf16 %v961, %v961
      %v964 = vpack.c.bf16 %v962, %v962
      %v967 = vunpack.c.l.b16 %v963
      %v968 = vunpack.c.l.b16 %v964
      %v969 = vpack.c.b16 %v968, %v967
      %971 = vst [vmem:[#allocation2 + $0x40] sm:$0xff] %v969
      %v972 = vld [vmem:[%s5] sm:$0xf]
      %v973 = vld [vmem:[#allocation2] sm:$0xff]
      %v974 = vld [vmem:[#allocation2 + $0x8] sm:$0xff]
      %v975 = vld [vmem:[#allocation2 + $0x10] sm:$0xff]
      %v976 = vld [vmem:[#allocation2 + $0x18] sm:$0xff]
      %v977 = vld [vmem:[#allocation2 + $0x20] sm:$0xff]
      %v978 = vld [vmem:[#allocation2 + $0x28] sm:$0xff]
      %v979 = vld [vmem:[#allocation2 + $0x30] sm:$0xff]
      %v980 = vld [vmem:[#allocation2 + $0x38] sm:$0xff]
      %v981 = vld [vmem:[#allocation2 + $0x40] sm:$0xff]
      %v982 = vld [vmem:[%s6] sm:$0xff]
      %984 = vset.pattern.permute.xlu0 0
      %985 = vperm.xlu0 %984, %v982
      %v986 = vpop.permute.xlu0 %985
      %v997 = vunpack.c.l.b16 %v973
      %v998 = vunpack.c.h.b16 %v973
      %v999 = vunpack.c.l.b16 %v974
      %v1000 = vunpack.c.h.b16 %v974
      %v1001 = vunpack.c.l.b16 %v975
      %v1002 = vunpack.c.h.b16 %v975
      %v1003 = vunpack.c.l.b16 %v976
      %v1004 = vunpack.c.h.b16 %v976
      %v1005 = vunpack.c.l.b16 %v977
      %v1006 = vunpack.c.h.b16 %v977
      %v1007 = vunpack.c.l.b16 %v978
      %v1008 = vunpack.c.h.b16 %v978
      %v1009 = vunpack.c.l.b16 %v979
      %v1010 = vunpack.c.h.b16 %v979
      %v1011 = vunpack.c.l.b16 %v980
      %v1012 = vunpack.c.h.b16 %v980
      %v1013 = vunpack.c.l.b16 %v981
      %v1014 = vunpack.c.h.b16 %v981
      %v1015 = vpack.c.b16 %v999, %v997
      %v1016 = vpack.c.b16 %v1000, %v998
      %v1017 = vpack.c.b16 %v1003, %v1001
      %v1018 = vpack.c.b16 %v1004, %v1002
      %v1019 = vpack.c.b16 %v1007, %v1005
      %v1020 = vpack.c.b16 %v1008, %v1006
      %v1021 = vpack.c.b16 %v1011, %v1009
      %v1022 = vpack.c.b16 %v1012, %v1010
      %v1023 = vpack.c.b16 %v1013, %v1013
      %v1024 = vpack.c.b16 %v1014, %v1014
      %vm1033 = vcmask 588800
      %v1035 = vsel %vm1033, %v972, 0
      %vm1037 = vcmask 1043456
      %v1039 = vsel %vm1037, %v1023, 0
      %v1042 = vsel %vm1037, %v1024, 0
      %1044 = vmatprep.subr.bf16.mxu0 %v1016
      %1045 = vmatpush1.bf16.msra.mxu0 %v1015
      %1046 = vmatprep.subr.bf16.mxu0 %v1018
      %1047 = vmatpush1.bf16.msra.mxu0 %v1017
      %1048 = vmatprep.subr.bf16.mxu0 %v1020
      %1049 = vmatpush1.bf16.msra.mxu0 %v1019
      %1050 = vmatprep.subr.bf16.mxu0 %v1022
      %1051 = vmatpush1.bf16.msra.mxu0 %v1021
      %1052 = vmatprep.subr.bf16.mxu0 %v1042
      %1053 = vmatpush1.bf16.msra.mxu0 %v1039
      %1054 = vmatprep.subr.bf16.mxu0 0
      %1055 = vmatpush1.bf16.msra.mxu0 0
      %1056 = vmatprep.subr.bf16.mxu0 0
      %1057 = vmatpush1.bf16.msra.mxu0 0
      %1058 = vmatprep.subr.bf16.mxu0 0
      %1059 = vmatpush1.bf16.msra.mxu0 0
      %1060 = vmatprep.subr.bf16.mxu0 0
      %1061 = vmatpush1.bf16.msra.mxu0 0
      %1062 = vmatprep.subr.bf16.mxu0 0
      %1063 = vmatpush1.bf16.msra.mxu0 0
      %1064 = vmatprep.subr.bf16.mxu0 0
      %1065 = vmatpush1.bf16.msra.mxu0 0
      %1066 = vmatprep.subr.bf16.mxu0 0
      %1067 = vmatpush1.bf16.msra.mxu0 0
      %1068 = vmatprep.subr.bf16.mxu0 0
      %1069 = vmatpush1.bf16.msra.mxu0 0
      %1070 = vmatprep.subr.bf16.mxu0 0
      %1071 = vmatpush1.bf16.msra.mxu0 0
      %1072 = vmatprep.subr.bf16.mxu0 0
      %1073 = vmatpush1.bf16.msra.mxu0 0
      %1074 = vmatprep.subr.bf16.mxu0 0
      %1075 = vmatpush1.bf16.msra.mxu0 0
      %1076 = vmatprep.mubr.bf16.mxu0 0
      %1077 = vmatmul.mubr.bf16.gmra.mrb[0].mxu0 %v1035
      %v1078 = vpop.f32.mrb[0].mxu0
      %v1079 = vadd.f32 %v986, %v1078
      %v1080 = vpop.f32.mrb[0].mxu0
      %v1081 = vadd.f32 %v986, %v1080
      %v1082 = vpop.f32.mrb[0].mxu0
      %v1083 = vpop.f32.mrb[0].mxu0
      %1084 = vdwg.mxu0
      %v1085 = vmul.f32 %v1079, 0.5
      %v1086 = vmul.f32 %v1081, 0.5
      %v1087 = vmul.f32 %v1079, 0.044715
      %v1088 = vmul.f32 %v1081, 0.044715
      %v1089 = vmul.f32 %v1087, %v1079
      %v1090 = vmul.f32 %v1088, %v1081
      %v1091 = vmul.f32 %v1089, %v1079
      %v1092 = vmul.f32 %v1090, %v1081
      %v1093 = vadd.f32 %v1079, %v1091
      %v1094 = vadd.f32 %v1081, %v1092
      %v1095 = vmul.f32 %v1093, 0.7978846
      %v1096 = vmul.f32 %v1094, 0.7978846
      %v1097 = vtanh.pop %v1095
      %v1098 = vtanh.pop %v1096
      %v1099 = vadd.f32 %v1097, 1.0
      %v1100 = vadd.f32 %v1098, 1.0
      %v1101 = vmul.f32 %v1085, %v1099
      %v1102 = vmul.f32 %v1086, %v1100
      %1103 = vrot.lane.b32.xlu0 %v1101, 17
      %v1104 = vpop.permute.xlu0 %1103
      %1105 = vrot.lane.b32.xlu0 %v1102, 17
      %v1106 = vpop.permute.xlu0 %1105
      %v1107 = vsel %vm735, %v1104, %v1106
      %v1108 = vsel %vm735, %v1106, %v1104
      %v1109 = vmul.f32 %v1108, %v742
      %v1110 = vmul.f32 %v1107, %v746
      %v1111 = vpack.c.bf16 %v1109, %v1109
      %v1112 = vpack.c.bf16 %v1110, %v1110
      %v1115 = vunpack.c.l.b16 %v1111
      %v1116 = vunpack.c.l.b16 %v1112
      %v1117 = vpack.c.b16 %v1116, %v1115
      %1119 = vst [vmem:[#allocation2] sm:$0xff] %v1117
      %1120 = vrot.lane.b32.xlu0 %v1101, 16
      %v1121 = vpop.permute.xlu0 %1120
      %1122 = vrot.lane.b32.xlu0 %v1102, 16
      %v1123 = vpop.permute.xlu0 %1122
      %v1124 = vsel %vm764, %v1121, %v1123
      %v1125 = vsel %vm764, %v1123, %v1121
      %v1126 = vmul.f32 %v1125, %v771
      %v1127 = vmul.f32 %v1124, %v775
      %v1128 = vpack.c.bf16 %v1126, %v1126
      %v1129 = vpack.c.bf16 %v1127, %v1127
      %v1132 = vunpack.c.l.b16 %v1128
      %v1133 = vunpack.c.l.b16 %v1129
      %v1134 = vpack.c.b16 %v1133, %v1132
      %1136 = vst [vmem:[#allocation2 + $0x8] sm:$0xff] %v1134
      %1137 = vrot.lane.b32.xlu0 %v1101, 15
      %v1138 = vpop.permute.xlu0 %1137
      %1139 = vrot.lane.b32.xlu0 %v1102, 15
      %v1140 = vpop.permute.xlu0 %1139
      %v1141 = vsel %vm793, %v1138, %v1140
      %v1142 = vsel %vm793, %v1140, %v1138
      %v1143 = vmul.f32 %v1142, %v800
      %v1144 = vmul.f32 %v1141, %v804
      %v1145 = vpack.c.bf16 %v1143, %v1143
      %v1146 = vpack.c.bf16 %v1144, %v1144
      %v1149 = vunpack.c.l.b16 %v1145
      %v1150 = vunpack.c.l.b16 %v1146
      %v1151 = vpack.c.b16 %v1150, %v1149
      %1153 = vst [vmem:[#allocation2 + $0x10] sm:$0xff] %v1151
      %1154 = vrot.lane.b32.xlu0 %v1101, 1
      %v1155 = vpop.permute.xlu0 %1154
      %1156 = vrot.lane.b32.xlu0 %v1102, 1
      %v1157 = vpop.permute.xlu0 %1156
      %v1158 = vsel %vm822, %v1155, %v1157
      %v1159 = vsel %vm822, %v1157, %v1155
      %v1160 = vmul.f32 %v1159, %v829
      %v1161 = vmul.f32 %v1158, %v833
      %v1162 = vpack.c.bf16 %v1160, %v1160
      %v1163 = vpack.c.bf16 %v1161, %v1161
      %v1166 = vunpack.c.l.b16 %v1162
      %v1167 = vunpack.c.l.b16 %v1163
      %v1168 = vpack.c.b16 %v1167, %v1166
      %1170 = vst [vmem:[#allocation2 + $0x18] sm:$0xff] %v1168
      %v1171 = vpack.c.bf16 %v1101, %v1101
      %v1172 = vpack.c.bf16 %v1102, %v1102
      %v1175 = vunpack.c.l.b16 %v1171
      %v1176 = vunpack.c.l.b16 %v1172
      %v1177 = vpack.c.b16 %v1176, %v1175
      %1179 = vst [vmem:[#allocation2 + $0x20] sm:$0xff] %v1177
      %1180 = vrot.lane.b32.xlu0 %v1101, 127
      %v1181 = vpop.permute.xlu0 %1180
      %1182 = vrot.lane.b32.xlu0 %v1102, 127
      %v1183 = vpop.permute.xlu0 %1182
      %v1184 = vsel %vm860, %v1181, %v1183
      %v1185 = vsel %vm860, %v1183, %v1181
      %v1186 = vmul.f32 %v1184, %v867
      %v1187 = vmul.f32 %v1185, %v871
      %v1188 = vpack.c.bf16 %v1186, %v1186
      %v1189 = vpack.c.bf16 %v1187, %v1187
      %v1192 = vunpack.c.l.b16 %v1188
      %v1193 = vunpack.c.l.b16 %v1189
      %v1194 = vpack.c.b16 %v1193, %v1192
      %1196 = vst [vmem:[#allocation2 + $0x28] sm:$0xff] %v1194
      %1197 = vrot.lane.b32.xlu0 %v1101, 113
      %v1198 = vpop.permute.xlu0 %1197
      %1199 = vrot.lane.b32.xlu0 %v1102, 113
      %v1200 = vpop.permute.xlu0 %1199
      %v1201 = vsel %vm889, %v1198, %v1200
      %v1202 = vsel %vm889, %v1200, %v1198
      %v1203 = vmul.f32 %v1201, %v896
      %v1204 = vmul.f32 %v1202, %v900
      %v1205 = vpack.c.bf16 %v1203, %v1203
      %v1206 = vpack.c.bf16 %v1204, %v1204
      %v1209 = vunpack.c.l.b16 %v1205
      %v1210 = vunpack.c.l.b16 %v1206
      %v1211 = vpack.c.b16 %v1210, %v1209
      %1213 = vst [vmem:[#allocation2 + $0x30] sm:$0xff] %v1211
      %1214 = vrot.lane.b32.xlu0 %v1101, 112
      %v1215 = vpop.permute.xlu0 %1214
      %1216 = vrot.lane.b32.xlu0 %v1102, 112
      %v1217 = vpop.permute.xlu0 %1216
      %v1218 = vsel %vm918, %v1215, %v1217
      %v1219 = vsel %vm918, %v1217, %v1215
      %v1220 = vmul.f32 %v1218, %v925
      %v1221 = vmul.f32 %v1219, %v929
      %v1222 = vpack.c.bf16 %v1220, %v1220
      %v1223 = vpack.c.bf16 %v1221, %v1221
      %v1226 = vunpack.c.l.b16 %v1222
      %v1227 = vunpack.c.l.b16 %v1223
      %v1228 = vpack.c.b16 %v1227, %v1226
      %1230 = vst [vmem:[#allocation2 + $0x38] sm:$0xff] %v1228
      %1231 = vrot.lane.b32.xlu0 %v1101, 111
      %v1232 = vpop.permute.xlu0 %1231
      %1233 = vrot.lane.b32.xlu0 %v1102, 111
      %v1234 = vpop.permute.xlu0 %1233
      %v1235 = vsel %vm947, %v1232, %v1234
      %v1236 = vsel %vm947, %v1234, %v1232
      %v1237 = vmul.f32 %v1235, %v954
      %v1238 = vmul.f32 %v1236, %v958
      %v1239 = vpack.c.bf16 %v1237, %v1237
      %v1240 = vpack.c.bf16 %v1238, %v1238
      %v1243 = vunpack.c.l.b16 %v1239
      %v1244 = vunpack.c.l.b16 %v1240
      %v1245 = vpack.c.b16 %v1244, %v1243
      %1247 = vst [vmem:[#allocation2 + $0x40] sm:$0xff] %v1245
      %v1248 = vld [vmem:[%s7] sm:$0xf]
      %v1249 = vld [vmem:[#allocation2] sm:$0xff]
      %v1250 = vld [vmem:[#allocation2 + $0x8] sm:$0xff]
      %v1251 = vld [vmem:[#allocation2 + $0x10] sm:$0xff]
      %v1252 = vld [vmem:[#allocation2 + $0x18] sm:$0xff]
      %v1253 = vld [vmem:[#allocation2 + $0x20] sm:$0xff]
      %v1254 = vld [vmem:[#allocation2 + $0x28] sm:$0xff]
      %v1255 = vld [vmem:[#allocation2 + $0x30] sm:$0xff]
      %v1256 = vld [vmem:[#allocation2 + $0x38] sm:$0xff]
      %v1257 = vld [vmem:[#allocation2 + $0x40] sm:$0xff]
      %v1258 = vld [vmem:[%s8] sm:$0xff]
      %1260 = vset.pattern.permute.xlu0 0
      %1261 = vperm.xlu0 %1260, %v1258
      %v1262 = vpop.permute.xlu0 %1261
      %v1273 = vunpack.c.l.b16 %v1249
      %v1274 = vunpack.c.h.b16 %v1249
      %v1275 = vunpack.c.l.b16 %v1250
      %v1276 = vunpack.c.h.b16 %v1250
      %v1277 = vunpack.c.l.b16 %v1251
      %v1278 = vunpack.c.h.b16 %v1251
      %v1279 = vunpack.c.l.b16 %v1252
      %v1280 = vunpack.c.h.b16 %v1252
      %v1281 = vunpack.c.l.b16 %v1253
      %v1282 = vunpack.c.h.b16 %v1253
      %v1283 = vunpack.c.l.b16 %v1254
      %v1284 = vunpack.c.h.b16 %v1254
      %v1285 = vunpack.c.l.b16 %v1255
      %v1286 = vunpack.c.h.b16 %v1255
      %v1287 = vunpack.c.l.b16 %v1256
      %v1288 = vunpack.c.h.b16 %v1256
      %v1289 = vunpack.c.l.b16 %v1257
      %v1290 = vunpack.c.h.b16 %v1257
      %v1291 = vpack.c.b16 %v1275, %v1273
      %v1292 = vpack.c.b16 %v1276, %v1274
      %v1293 = vpack.c.b16 %v1279, %v1277
      %v1294 = vpack.c.b16 %v1280, %v1278
      %v1295 = vpack.c.b16 %v1283, %v1281
      %v1296 = vpack.c.b16 %v1284, %v1282
      %v1297 = vpack.c.b16 %v1287, %v1285
      %v1298 = vpack.c.b16 %v1288, %v1286
      %v1299 = vpack.c.b16 %v1289, %v1289
      %v1300 = vpack.c.b16 %v1290, %v1290
      %v1310 = vsel %vm1033, %v1248, 0
      %v1313 = vsel %vm1037, %v1299, 0
      %v1316 = vsel %vm1037, %v1300, 0
      %1318 = vmatprep.subr.bf16.mxu0 %v1292
      %1319 = vmatpush1.bf16.msra.mxu0 %v1291
      %1320 = vmatprep.subr.bf16.mxu0 %v1294
      %1321 = vmatpush1.bf16.msra.mxu0 %v1293
      %1322 = vmatprep.subr.bf16.mxu0 %v1296
      %1323 = vmatpush1.bf16.msra.mxu0 %v1295
      %1324 = vmatprep.subr.bf16.mxu0 %v1298
      %1325 = vmatpush1.bf16.msra.mxu0 %v1297
      %1326 = vmatprep.subr.bf16.mxu0 %v1316
      %1327 = vmatpush1.bf16.msra.mxu0 %v1313
      %1328 = vmatprep.subr.bf16.mxu0 0
      %1329 = vmatpush1.bf16.msra.mxu0 0
      %1330 = vmatprep.subr.bf16.mxu0 0
      %1331 = vmatpush1.bf16.msra.mxu0 0
      %1332 = vmatprep.subr.bf16.mxu0 0
      %1333 = vmatpush1.bf16.msra.mxu0 0
      %1334 = vmatprep.subr.bf16.mxu0 0
      %1335 = vmatpush1.bf16.msra.mxu0 0
      %1336 = vmatprep.subr.bf16.mxu0 0
      %1337 = vmatpush1.bf16.msra.mxu0 0
      %1338 = vmatprep.subr.bf16.mxu0 0
      %1339 = vmatpush1.bf16.msra.mxu0 0
      %1340 = vmatprep.subr.bf16.mxu0 0
      %1341 = vmatpush1.bf16.msra.mxu0 0
      %1342 = vmatprep.subr.bf16.mxu0 0
      %1343 = vmatpush1.bf16.msra.mxu0 0
      %1344 = vmatprep.subr.bf16.mxu0 0
      %1345 = vmatpush1.bf16.msra.mxu0 0
      %1346 = vmatprep.subr.bf16.mxu0 0
      %1347 = vmatpush1.bf16.msra.mxu0 0
      %1348 = vmatprep.subr.bf16.mxu0 0
      %1349 = vmatpush1.bf16.msra.mxu0 0
      %1350 = vmatprep.mubr.bf16.mxu0 0
      %1351 = vmatmul.mubr.bf16.gmra.mrb[0].mxu0 %v1310
      %v1352 = vpop.f32.mrb[0].mxu0
      %v1353 = vadd.f32 %v1262, %v1352
      %v1354 = vpop.f32.mrb[0].mxu0
      %v1355 = vadd.f32 %v1262, %v1354
      %v1356 = vpop.f32.mrb[0].mxu0
      %v1357 = vpop.f32.mrb[0].mxu0
      %1358 = vdwg.mxu0
      %1359 = vrot.lane.b32.xlu0 %v1353, 51
      %v1360 = vpop.permute.xlu0 %1359
      %1361 = vrot.lane.b32.xlu0 %v1355, 51
      %v1362 = vpop.permute.xlu0 %1361
      %vm1363 = vcmp.lt.s32.totalorder %v734, 51
      %v1364 = vsel %vm1363, %v1360, %v1362
      %v1365 = vsel %vm1363, %v1362, %v1360
      %v1367 = vlaneseq
      %v1368 = vshrl.u32 %v1367, 7
      %v1369 = vsub.s32 0, %v1368
      %v1370 = vrot.slane %v677, %v1369
      %v1371 = vlaneseq
      %v1372 = vshrl.u32 %v1371, 7
      %v1373 = vsub.s32 1, %v1372
      %v1374 = vrot.slane %v677, %v1373
      %v1377 = vmul.f32 %v1365, %v1370
      %v1378 = vmul.f32 %v1364, %v1374
      %v1379 = vpack.c.bf16 %v1377, %v1377
      %v1380 = vpack.c.bf16 %v1378, %v1378
      %v1383 = vunpack.c.l.b16 %v1379
      %v1384 = vunpack.c.l.b16 %v1380
      %v1385 = vpack.c.b16 %v1384, %v1383
      %1387 = vst [vmem:[#allocation2] sm:$0xff] %v1385
      %1388 = vrot.lane.b32.xlu0 %v1353, 48
      %v1389 = vpop.permute.xlu0 %1388
      %1390 = vrot.lane.b32.xlu0 %v1355, 48
      %v1391 = vpop.permute.xlu0 %1390
      %vm1392 = vcmp.lt.s32.totalorder %v734, 48
      %v1393 = vsel %vm1392, %v1389, %v1391
      %v1394 = vsel %vm1392, %v1391, %v1389
      %v1396 = vlaneseq
      %v1397 = vshrl.u32 %v1396, 7
      %v1398 = vsub.s32 0, %v1397
      %v1399 = vrot.slane %v681, %v1398
      %v1400 = vlaneseq
      %v1401 = vshrl.u32 %v1400, 7
      %v1402 = vsub.s32 1, %v1401
      %v1403 = vrot.slane %v681, %v1402
      %v1406 = vmul.f32 %v1394, %v1399
      %v1407 = vmul.f32 %v1393, %v1403
      %v1408 = vpack.c.bf16 %v1406, %v1406
      %v1409 = vpack.c.bf16 %v1407, %v1407
      %v1412 = vunpack.c.l.b16 %v1408
      %v1413 = vunpack.c.l.b16 %v1409
      %v1414 = vpack.c.b16 %v1413, %v1412
      %1416 = vst [vmem:[#allocation2 + $0x8] sm:$0xff] %v1414
      %1417 = vrot.lane.b32.xlu0 %v1353, 45
      %v1418 = vpop.permute.xlu0 %1417
      %1419 = vrot.lane.b32.xlu0 %v1355, 45
      %v1420 = vpop.permute.xlu0 %1419
      %vm1421 = vcmp.lt.s32.totalorder %v734, 45
      %v1422 = vsel %vm1421, %v1418, %v1420
      %v1423 = vsel %vm1421, %v1420, %v1418
      %v1425 = vlaneseq
      %v1426 = vshrl.u32 %v1425, 7
      %v1427 = vsub.s32 0, %v1426
      %v1428 = vrot.slane %v688, %v1427
      %v1429 = vlaneseq
      %v1430 = vshrl.u32 %v1429, 7
      %v1431 = vsub.s32 1, %v1430
      %v1432 = vrot.slane %v688, %v1431
      %v1435 = vmul.f32 %v1423, %v1428
      %v1436 = vmul.f32 %v1422, %v1432
      %v1437 = vpack.c.bf16 %v1435, %v1435
      %v1438 = vpack.c.bf16 %v1436, %v1436
      %v1441 = vunpack.c.l.b16 %v1437
      %v1442 = vunpack.c.l.b16 %v1438
      %v1443 = vpack.c.b16 %v1442, %v1441
      %1445 = vst [vmem:[#allocation2 + $0x10] sm:$0xff] %v1443
      %1446 = vrot.lane.b32.xlu0 %v1353, 3
      %v1447 = vpop.permute.xlu0 %1446
      %1448 = vrot.lane.b32.xlu0 %v1355, 3
      %v1449 = vpop.permute.xlu0 %1448
      %vm1450 = vcmp.lt.s32.totalorder %v734, 3
      %v1451 = vsel %vm1450, %v1447, %v1449
      %v1452 = vsel %vm1450, %v1449, %v1447
      %v1454 = vlaneseq
      %v1455 = vshrl.u32 %v1454, 7
      %v1456 = vsub.s32 0, %v1455
      %v1457 = vrot.slane %v692, %v1456
      %v1458 = vlaneseq
      %v1459 = vshrl.u32 %v1458, 7
      %v1460 = vsub.s32 1, %v1459
      %v1461 = vrot.slane %v692, %v1460
      %v1464 = vmul.f32 %v1452, %v1457
      %v1465 = vmul.f32 %v1451, %v1461
      %v1466 = vpack.c.bf16 %v1464, %v1464
      %v1467 = vpack.c.bf16 %v1465, %v1465
      %v1470 = vunpack.c.l.b16 %v1466
      %v1471 = vunpack.c.l.b16 %v1467
      %v1472 = vpack.c.b16 %v1471, %v1470
      %1474 = vst [vmem:[#allocation2 + $0x18] sm:$0xff] %v1472
      %v1475 = vpack.c.bf16 %v1353, %v1353
      %v1476 = vpack.c.bf16 %v1355, %v1355
      %v1479 = vunpack.c.l.b16 %v1475
      %v1480 = vunpack.c.l.b16 %v1476
      %v1481 = vpack.c.b16 %v1480, %v1479
      %1483 = vst [vmem:[#allocation2 + $0x20] sm:$0xff] %v1481
      %1484 = vrot.lane.b32.xlu0 %v1353, 125
      %v1485 = vpop.permute.xlu0 %1484
      %1486 = vrot.lane.b32.xlu0 %v1355, 125
      %v1487 = vpop.permute.xlu0 %1486
      %vm1488 = vcmp.lt.s32.totalorder %v734, 125
      %v1489 = vsel %vm1488, %v1485, %v1487
      %v1490 = vsel %vm1488, %v1487, %v1485
      %v1492 = vlaneseq
      %v1493 = vshrl.u32 %v1492, 7
      %v1494 = vsub.s32 0, %v1493
      %v1495 = vrot.slane %v696, %v1494
      %v1496 = vlaneseq
      %v1497 = vshrl.u32 %v1496, 7
      %v1498 = vsub.s32 1, %v1497
      %v1499 = vrot.slane %v696, %v1498
      %v1502 = vmul.f32 %v1489, %v1495
      %v1503 = vmul.f32 %v1490, %v1499
      %v1504 = vpack.c.bf16 %v1502, %v1502
      %v1505 = vpack.c.bf16 %v1503, %v1503
      %v1508 = vunpack.c.l.b16 %v1504
      %v1509 = vunpack.c.l.b16 %v1505
      %v1510 = vpack.c.b16 %v1509, %v1508
      %1512 = vst [vmem:[#allocation2 + $0x28] sm:$0xff] %v1510
      %1513 = vrot.lane.b32.xlu0 %v1353, 83
      %v1514 = vpop.permute.xlu0 %1513
      %1515 = vrot.lane.b32.xlu0 %v1355, 83
      %v1516 = vpop.permute.xlu0 %1515
      %vm1517 = vcmp.lt.s32.totalorder %v734, 83
      %v1518 = vsel %vm1517, %v1514, %v1516
      %v1519 = vsel %vm1517, %v1516, %v1514
      %v1521 = vlaneseq
      %v1522 = vshrl.u32 %v1521, 7
      %v1523 = vsub.s32 0, %v1522
      %v1524 = vrot.slane %v704, %v1523
      %v1525 = vlaneseq
      %v1526 = vshrl.u32 %v1525, 7
      %v1527 = vsub.s32 1, %v1526
      %v1528 = vrot.slane %v704, %v1527
      %v1531 = vmul.f32 %v1518, %v1524
      %v1532 = vmul.f32 %v1519, %v1528
      %v1533 = vpack.c.bf16 %v1531, %v1531
      %v1534 = vpack.c.bf16 %v1532, %v1532
      %v1537 = vunpack.c.l.b16 %v1533
      %v1538 = vunpack.c.l.b16 %v1534
      %v1539 = vpack.c.b16 %v1538, %v1537
      %1541 = vst [vmem:[#allocation2 + $0x30] sm:$0xff] %v1539
      %1542 = vrot.lane.b32.xlu0 %v1353, 80
      %v1543 = vpop.permute.xlu0 %1542
      %1544 = vrot.lane.b32.xlu0 %v1355, 80
      %v1545 = vpop.permute.xlu0 %1544
      %vm1546 = vcmp.lt.s32.totalorder %v734, 80
      %v1547 = vsel %vm1546, %v1543, %v1545
      %v1548 = vsel %vm1546, %v1545, %v1543
      %v1550 = vlaneseq
      %v1551 = vshrl.u32 %v1550, 7
      %v1552 = vsub.s32 0, %v1551
      %v1553 = vrot.slane %v708, %v1552
      %v1554 = vlaneseq
      %v1555 = vshrl.u32 %v1554, 7
      %v1556 = vsub.s32 1, %v1555
      %v1557 = vrot.slane %v708, %v1556
      %v1560 = vmul.f32 %v1547, %v1553
      %v1561 = vmul.f32 %v1548, %v1557
      %v1562 = vpack.c.bf16 %v1560, %v1560
      %v1563 = vpack.c.bf16 %v1561, %v1561
      %v1566 = vunpack.c.l.b16 %v1562
      %v1567 = vunpack.c.l.b16 %v1563
      %v1568 = vpack.c.b16 %v1567, %v1566
      %1570 = vst [vmem:[#allocation2 + $0x38] sm:$0xff] %v1568
      %1571 = vrot.lane.b32.xlu0 %v1353, 77
      %v1572 = vpop.permute.xlu0 %1571
      %1573 = vrot.lane.b32.xlu0 %v1355, 77
      %v1574 = vpop.permute.xlu0 %1573
      %vm1575 = vcmp.lt.s32.totalorder %v734, 77
      %v1576 = vsel %vm1575, %v1572, %v1574
      %v1577 = vsel %vm1575, %v1574, %v1572
      %v1579 = vlaneseq
      %v1580 = vshrl.u32 %v1579, 7
      %v1581 = vsub.s32 0, %v1580
      %v1582 = vrot.slane %v712, %v1581
      %v1583 = vlaneseq
      %v1584 = vshrl.u32 %v1583, 7
      %v1585 = vsub.s32 1, %v1584
      %v1586 = vrot.slane %v712, %v1585
      %v1589 = vmul.f32 %v1576, %v1582
      %v1590 = vmul.f32 %v1577, %v1586
      %v1591 = vpack.c.bf16 %v1589, %v1589
      %v1592 = vpack.c.bf16 %v1590, %v1590
      %v1595 = vunpack.c.l.b16 %v1591
      %v1596 = vunpack.c.l.b16 %v1592
      %v1597 = vpack.c.b16 %v1596, %v1595
      %1599 = vst [vmem:[#allocation2 + $0x40] sm:$0xff] %v1597
      %v1600 = vld [vmem:[%s9] sm:$0xf]
      %v1601 = vld [vmem:[#allocation2] sm:$0xff]
      %v1602 = vld [vmem:[#allocation2 + $0x8] sm:$0xff]
      %v1603 = vld [vmem:[#allocation2 + $0x10] sm:$0xff]
      %v1604 = vld [vmem:[#allocation2 + $0x18] sm:$0xff]
      %v1605 = vld [vmem:[#allocation2 + $0x20] sm:$0xff]
      %v1606 = vld [vmem:[#allocation2 + $0x28] sm:$0xff]
      %v1607 = vld [vmem:[#allocation2 + $0x30] sm:$0xff]
      %v1608 = vld [vmem:[#allocation2 + $0x38] sm:$0xff]
      %v1609 = vld [vmem:[#allocation2 + $0x40] sm:$0xff]
      %v1610 = vld [vmem:[%s10] sm:$0xff]
      %1612 = vset.pattern.permute.xlu0 0
      %1613 = vperm.xlu0 %1612, %v1610
      %v1614 = vpop.permute.xlu0 %1613
      %v1625 = vunpack.c.l.b16 %v1601
      %v1626 = vunpack.c.h.b16 %v1601
      %v1627 = vunpack.c.l.b16 %v1602
      %v1628 = vunpack.c.h.b16 %v1602
      %v1629 = vunpack.c.l.b16 %v1603
      %v1630 = vunpack.c.h.b16 %v1603
      %v1631 = vunpack.c.l.b16 %v1604
      %v1632 = vunpack.c.h.b16 %v1604
      %v1633 = vunpack.c.l.b16 %v1605
      %v1634 = vunpack.c.h.b16 %v1605
      %v1635 = vunpack.c.l.b16 %v1606
      %v1636 = vunpack.c.h.b16 %v1606
      %v1637 = vunpack.c.l.b16 %v1607
      %v1638 = vunpack.c.h.b16 %v1607
      %v1639 = vunpack.c.l.b16 %v1608
      %v1640 = vunpack.c.h.b16 %v1608
      %v1641 = vunpack.c.l.b16 %v1609
      %v1642 = vunpack.c.h.b16 %v1609
      %v1643 = vpack.c.b16 %v1627, %v1625
      %v1644 = vpack.c.b16 %v1628, %v1626
      %v1645 = vpack.c.b16 %v1631, %v1629
      %v1646 = vpack.c.b16 %v1632, %v1630
      %v1647 = vpack.c.b16 %v1635, %v1633
      %v1648 = vpack.c.b16 %v1636, %v1634
      %v1649 = vpack.c.b16 %v1639, %v1637
      %v1650 = vpack.c.b16 %v1640, %v1638
      %v1651 = vpack.c.b16 %v1641, %v1641
      %v1652 = vpack.c.b16 %v1642, %v1642
      %v1662 = vsel %vm1033, %v1600, 0
      %v1665 = vsel %vm1037, %v1651, 0
      %v1668 = vsel %vm1037, %v1652, 0
      %1670 = vmatprep.subr.bf16.mxu0 %v1644
      %1671 = vmatpush1.bf16.msra.mxu0 %v1643
      %1672 = vmatprep.subr.bf16.mxu0 %v1646
      %1673 = vmatpush1.bf16.msra.mxu0 %v1645
      %1674 = vmatprep.subr.bf16.mxu0 %v1648
      %1675 = vmatpush1.bf16.msra.mxu0 %v1647
      %1676 = vmatprep.subr.bf16.mxu0 %v1650
      %1677 = vmatpush1.bf16.msra.mxu0 %v1649
      %1678 = vmatprep.subr.bf16.mxu0 %v1668
      %1679 = vmatpush1.bf16.msra.mxu0 %v1665
      %1680 = vmatprep.subr.bf16.mxu0 0
      %1681 = vmatpush1.bf16.msra.mxu0 0
      %1682 = vmatprep.subr.bf16.mxu0 0
      %1683 = vmatpush1.bf16.msra.mxu0 0
      %1684 = vmatprep.subr.bf16.mxu0 0
      %1685 = vmatpush1.bf16.msra.mxu0 0
      %1686 = vmatprep.subr.bf16.mxu0 0
      %1687 = vmatpush1.bf16.msra.mxu0 0
      %1688 = vmatprep.subr.bf16.mxu0 0
      %1689 = vmatpush1.bf16.msra.mxu0 0
      %1690 = vmatprep.subr.bf16.mxu0 0
      %1691 = vmatpush1.bf16.msra.mxu0 0
      %1692 = vmatprep.subr.bf16.mxu0 0
      %1693 = vmatpush1.bf16.msra.mxu0 0
      %1694 = vmatprep.subr.bf16.mxu0 0
      %1695 = vmatpush1.bf16.msra.mxu0 0
      %1696 = vmatprep.subr.bf16.mxu0 0
      %1697 = vmatpush1.bf16.msra.mxu0 0
      %1698 = vmatprep.subr.bf16.mxu0 0
      %1699 = vmatpush1.bf16.msra.mxu0 0
      %1700 = vmatprep.subr.bf16.mxu0 0
      %1701 = vmatpush1.bf16.msra.mxu0 0
      %1702 = vmatprep.mubr.bf16.mxu0 0
      %1703 = vmatmul.mubr.bf16.gmra.mrb[0].mxu0 %v1662
      %v1704 = vpop.f32.mrb[0].mxu0
      %v1705 = vadd.f32 %v1614, %v1704
      %v1706 = vpop.f32.mrb[0].mxu0
      %v1707 = vadd.f32 %v1614, %v1706
      %v1708 = vpop.f32.mrb[0].mxu0
      %v1709 = vpop.f32.mrb[0].mxu0
      %1710 = vdwg.mxu0
      %v1711 = vld [vmem:[%s11] sm:$0xf]
      %v1712 = vpack.c.bf16 %v1705, %v1705
      %v1713 = vpack.c.bf16 %v1707, %v1707
      %v1714 = vld [vmem:[%s12] sm:$0xff]
      %1716 = vset.pattern.permute.xlu0 0
      %1717 = vperm.xlu0 %1716, %v1714
      %v1718 = vpop.permute.xlu0 %1717
      %vm1720 = vcmask 64512
      %v1722 = vsel %vm1720, %v1711, 0
      %v1725 = vsel %vm1037, %v1712, 0
      %v1728 = vsel %vm1037, %v1713, 0
      %1730 = vmatprep.subr.bf16.mxu0 %v1728
      %1731 = vmatpush1.bf16.msra.mxu0 %v1725
      %1732 = vmatprep.subr.bf16.mxu0 0
      %1733 = vmatpush1.bf16.msra.mxu0 0
      %1734 = vmatprep.subr.bf16.mxu0 0
      %1735 = vmatpush1.bf16.msra.mxu0 0
      %1736 = vmatprep.subr.bf16.mxu0 0
      %1737 = vmatpush1.bf16.msra.mxu0 0
      %1738 = vmatprep.subr.bf16.mxu0 0
      %1739 = vmatpush1.bf16.msra.mxu0 0
      %1740 = vmatprep.subr.bf16.mxu0 0
      %1741 = vmatpush1.bf16.msra.mxu0 0
      %1742 = vmatprep.subr.bf16.mxu0 0
      %1743 = vmatpush1.bf16.msra.mxu0 0
      %1744 = vmatprep.subr.bf16.mxu0 0
      %1745 = vmatpush1.bf16.msra.mxu0 0
      %1746 = vmatprep.subr.bf16.mxu0 0
      %1747 = vmatpush1.bf16.msra.mxu0 0
      %1748 = vmatprep.subr.bf16.mxu0 0
      %1749 = vmatpush1.bf16.msra.mxu0 0
      %1750 = vmatprep.subr.bf16.mxu0 0
      %1751 = vmatpush1.bf16.msra.mxu0 0
      %1752 = vmatprep.subr.bf16.mxu0 0
      %1753 = vmatpush1.bf16.msra.mxu0 0
      %1754 = vmatprep.subr.bf16.mxu0 0
      %1755 = vmatpush1.bf16.msra.mxu0 0
      %1756 = vmatprep.subr.bf16.mxu0 0
      %1757 = vmatpush1.bf16.msra.mxu0 0
      %1758 = vmatprep.subr.bf16.mxu0 0
      %1759 = vmatpush1.bf16.msra.mxu0 0
      %1760 = vmatprep.subr.bf16.mxu0 0
      %1761 = vmatpush1.bf16.msra.mxu0 0
      %1762 = vmatprep.mubr.bf16.mxu0 0
      %1763 = vmatmul.mubr.bf16.gmra.mrb[0].mxu0 %v1722
      %v1764 = vpop.f32.mrb[0].mxu0
      %v1765 = vadd.f32 %v1718, %v1764
      %v1766 = vpop.f32.mrb[0].mxu0
      %v1767 = vadd.f32 %v1718, %v1766
      %v1768 = vpop.f32.mrb[0].mxu0
      %v1769 = vpop.f32.mrb[0].mxu0
      %1770 = vdwg.mxu0
      %v1771 = vmul.f32 %v1101, %v1765
      %v1772 = vmul.f32 %v1102, %v1767
      %v1773 = vld [vmem:[%s13] sm:$0xf]
      %v1774 = vpack.c.bf16 %v1771, %v1771
      %v1775 = vpack.c.bf16 %v1772, %v1772
      %v1776 = vld [vmem:[%s14] sm:$0xff]
      %1778 = vset.pattern.permute.xlu0 0
      %1779 = vperm.xlu0 %1778, %v1776
      %v1780 = vpop.permute.xlu0 %1779
      %v1783 = vsel %vm1720, %v1773, 0
      %v1786 = vsel %vm1037, %v1774, 0
      %v1789 = vsel %vm1037, %v1775, 0
      %1791 = vmatprep.subr.bf16.mxu0 %v1789
      %1792 = vmatpush1.bf16.msra.mxu0 %v1786
      %1793 = vmatprep.subr.bf16.mxu0 0
      %1794 = vmatpush1.bf16.msra.mxu0 0
      %1795 = vmatprep.subr.bf16.mxu0 0
      %1796 = vmatpush1.bf16.msra.mxu0 0
      %1797 = vmatprep.subr.bf16.mxu0 0
      %1798 = vmatpush1.bf16.msra.mxu0 0
      %1799 = vmatprep.subr.bf16.mxu0 0
      %1800 = vmatpush1.bf16.msra.mxu0 0
      %1801 = vmatprep.subr.bf16.mxu0 0
      %1802 = vmatpush1.bf16.msra.mxu0 0
      %1803 = vmatprep.subr.bf16.mxu0 0
      %1804 = vmatpush1.bf16.msra.mxu0 0
      %1805 = vmatprep.subr.bf16.mxu0 0
      %1806 = vmatpush1.bf16.msra.mxu0 0
      %1807 = vmatprep.subr.bf16.mxu0 0
      %1808 = vmatpush1.bf16.msra.mxu0 0
      %1809 = vmatprep.subr.bf16.mxu0 0
      %1810 = vmatpush1.bf16.msra.mxu0 0
      %1811 = vmatprep.subr.bf16.mxu0 0
      %1812 = vmatpush1.bf16.msra.mxu0 0
      %1813 = vmatprep.subr.bf16.mxu0 0
      %1814 = vmatpush1.bf16.msra.mxu0 0
      %1815 = vmatprep.subr.bf16.mxu0 0
      %1816 = vmatpush1.bf16.msra.mxu0 0
      %1817 = vmatprep.subr.bf16.mxu0 0
      %1818 = vmatpush1.bf16.msra.mxu0 0
      %1819 = vmatprep.subr.bf16.mxu0 0
      %1820 = vmatpush1.bf16.msra.mxu0 0
      %1821 = vmatprep.subr.bf16.mxu0 0
      %1822 = vmatpush1.bf16.msra.mxu0 0
      %1823 = vmatprep.mubr.bf16.mxu0 0
      %1824 = vmatmul.mubr.bf16.gmra.mrb[0].mxu0 %v1783
      %v1825 = vpop.f32.mrb[0].mxu0
      %v1826 = vadd.f32 %v1780, %v1825
      %v1827 = vpop.f32.mrb[0].mxu0
      %v1828 = vadd.f32 %v1780, %v1827
      %v1829 = vpop.f32.mrb[0].mxu0
      %v1830 = vpop.f32.mrb[0].mxu0
      %1831 = vdwg.mxu0
      %v1832 = vadd.f32 %v612, %v1826
      %v1833 = vadd.f32 %v613, %v1828
      %v1834 = vadd.f32 %v1832, %v727
      %v1835 = vadd.f32 %v1833, %v728
      %1836 = vst [vmem:[%s601] sm:$0xff] %v1834
      %1837 = vst [vmem:[%s601 + $0x8] sm:$0xff] %v1835
      %v1838 = vadd.f32 %v1834, %v1835
      %1839 = vadd.xlane.f32.xlu0 %v1838
      %v1840 = vpop.xlane.xlu0 %1839
      %vm1841 = vcmask 7168
      %1842 = vst.msk [vmem:[%s606] sm:$0xff] %vm1841, %v1840
      %v1843 = vmul.f32 %v1834, %v1834
      %v1844 = vmul.f32 %v1835, %v1835
      %v1845 = vadd.f32 %v1843, %v1844
      %1846 = vadd.xlane.f32.xlu0 %v1845
      %v1847 = vpop.xlane.xlu0 %1846
      %1848 = vst.msk [vmem:[%s610] sm:$0xff] %vm1841, %v1847
      %s1849 = smul.u32 2, %s29
      %p1850 = scmp.lt.s32.totalorder %s1849, 3
      %s1851 = scalar_select %p1850, %s1849, 3
      %s1852 = smul.addr %s1851, 8
      %s1853 = scalar_lea.vmem %s15, %s1852
      %p1854 = scmp.lt.s32.totalorder %s29, 1
      %s1855 = scalar_select %p1854, %s29, 1
      %s1856 = smul.addr %s1855, 8
      %s1857 = scalar_lea.vmem %s16, %s1856
      %p1858 = scmp.lt.s32.totalorder %s29, 1
      %s1859 = scalar_select %p1858, %s29, 1
      %s1860 = smul.addr %s1859, 8
      %s1861 = scalar_lea.vmem %s17, %s1860
      // Predicated region
      $region81: #{block_forward.4} parent=79 // pred_check
        %p1862 = pneg %p377
      $region82: #{block_forward.4} parent=79 // pred_check_branch
        %1864 = sbr.rel (%p1862) target = $region84
      $region83: #{block_forward.4} parent=79 // pred_region
        %s1865 = smul.u32 2, %s29
      $region84: #{block_forward.4} parent=79 // pred_fallthru
        _
      // Predicated region
      $region85: #{block_forward.4} parent=79 // pred_check
        %p1866 = pneg %p403
      $region86: #{block_forward.4} parent=79 // pred_check_branch
        %1868 = sbr.rel (%p1866) target = $region88
      $region87: #{block_forward.4} parent=79 // pred_region
        _
      $region88: #{block_forward.4} parent=79 // pred_fallthru
        _
      // Predicated region
      $region89: #{block_forward.4} parent=79 // pred_check
        %p1869 = pneg %p429
      $region90: #{block_forward.4} parent=79 // pred_check_branch
        %1871 = sbr.rel (%p1869) target = $region92
      $region91: #{block_forward.4} parent=79 // pred_region
        _
      $region92: #{block_forward.4} parent=79 // pred_fallthru
        _
    $region80: #{block_forward.4} parent=5 // pred_fallthru
      _
    %p1872 = scmp.le.s32.totalorder 2, %s24
    // Predicated region
    $region93: #{block_forward.4} parent=5 // pred_check
      %p1873 = pneg %p1872
    $region94: #{block_forward.4} parent=5 // pred_check_branch
      %1875 = sbr.rel (%p1873) target = $region96
    $region95: #{block_forward.4} parent=5 // pred_region
      %s1876 = ssub.s32 %s24, 2
      // Predicated region
      $region97: #{block_forward.4} parent=95 // pred_check
        %p1877 = pneg %p383
      $region98: #{block_forward.4} parent=95 // pred_check_branch
        %1879 = sbr.rel (%p1877) target = $region100
      $region99: #{block_forward.4} parent=95 // pred_region
        %s1880 = smul.u32 2, %s30
        %p1881 = scmp.lt.s32.totalorder %s1880, 3
        %s1882 = scalar_select %p1881, %s1880, 3
        %s1883 = smul.addr %s1882, 8
        %s1884 = scalar_lea.vmem %s15, %s1883
      $region100: #{block_forward.4} parent=95 // pred_fallthru
        _
      // Predicated region
      $region101: #{block_forward.4} parent=95 // pred_check
        %p1885 = pneg %p409
      $region102: #{block_forward.4} parent=95 // pred_check_branch
        %1887 = sbr.rel (%p1885) target = $region104
      $region103: #{block_forward.4} parent=95 // pred_region
        %p1888 = scmp.lt.s32.totalorder %s30, 1
        %s1889 = scalar_select %p1888, %s30, 1
        %s1890 = smul.addr %s1889, 8
        %s1891 = scalar_lea.vmem %s16, %s1890
      $region104: #{block_forward.4} parent=95 // pred_fallthru
        _
      // Predicated region
      $region105: #{block_forward.4} parent=95 // pred_check
        %p1892 = pneg %p435
      $region106: #{block_forward.4} parent=95 // pred_check_branch
        %1894 = sbr.rel (%p1892) target = $region108
      $region107: #{block_forward.4} parent=95 // pred_region
        %p1895 = scmp.lt.s32.totalorder %s30, 1
        %s1896 = scalar_select %p1895, %s30, 1
        %s1897 = smul.addr %s1896, 8
        %s1898 = scalar_lea.vmem %s17, %s1897
      $region108: #{block_forward.4} parent=95 // pred_fallthru
        _
    $region96: #{block_forward.4} parent=5 // pred_fallthru
      _
  $region6: #{block_forward.4} parent=0 // loop_footer
    %s28 = sadd.s32 1, %s24
  $region7: #{block_forward.4} parent=0 // loop_footer_branch
    %23 = sbr.rel target = $region3
  $region8: #{block_forward.4} parent=0 // loop_exit
    _

</llo_original>
